<compile_context>
chip_gen: v7x
topology: tpu7x:2x2x1
jax: 0.10.0
libtpu: 0.0.40
codegen_flags: <defaults>
</compile_context>

<pallas_src>
import functools

import numpy as np
import jax
import jax.numpy as jnp
from jax import lax
from jax.experimental import pallas as pl
from jax.experimental.pallas import tpu as pltpu

_BIG = 1.0e9       # stands in for +inf padding of the min-pool distance transform
_MAX_DIS = 1.0e5   # constant padding value used in get_orientation

# Pixel neighborhood (same order as the PyTorch reference):
#   | 4 | 0 | 5 |
#   | 2 | 8 | 3 |
#   | 6 | 1 | 7 |
_NEIGHBOR_ROW = (1, -1, 0, 0, -1, 1, -1, 1, 0)
_NEIGHBOR_COL = (0, 0, -1, 1, 1, 1, -1, -1, 0)

_EPS_LADDER_LEN = 200   # eps0 * 1.2**199 ~ 6e10; see TODO below.


# ---------------------------------------------------------------------------
# shifted-neighbour helpers (value-level, roll + mask — no scratch, no stores)
# ---------------------------------------------------------------------------
def _shift_const(x, t, axis, fill):
    """out[..., i, ...] = x[..., i + t, ...] (static t), `fill` outside the array."""
    if t == 0:
        return x
    size = x.shape[axis]
    if abs(t) >= size:
        return jnp.full_like(x, fill)
    rolled = pltpu.roll(x, shift=(-t) % size, axis=axis)     # rolled[i] = x[(i+t) % size]
    idx = lax.broadcasted_iota(jnp.int32, x.shape, axis)
    mask = (idx < size - t) if t > 0 else (idx >= -t)
    return jnp.where(mask, rolled, fill)


def _shift_rep(x, t, axis):
    """Shift by |t| == 1 with replicate (clamp-to-edge) padding."""
    if t == 0:
        return x
    size = x.shape[axis]
    if abs(t) >= size:
        return x
    rolled = pltpu.roll(x, shift=(-t) % size, axis=axis)
    idx = lax.broadcasted_iota(jnp.int32, x.shape, axis)
    mask = (idx < size - t) if t > 0 else (idx >= -t)
    return jnp.where(mask, rolled, x)      # out-of-range -> own (edge) value; exact for |t|==1


# ---------------------------------------------------------------------------
# kernel 1: ground-truth boundary + Chebyshev distance transform (per image)
# ---------------------------------------------------------------------------
def _dist_kernel(t_ref, dist_ref, *, ignore_index, steps, n_clamp, bound_val):
    """gtruth2boundary + get_dist_matrix.

    The reference runs n_clamp = min(H, W) iterations of
        dist = min(dist, minpool3x3(dist, +inf pad) + 1).
    We reproduce it exactly with a log-doubling min-plus schedule: for each
    radius s in (1, 2, 4, ...) take the separable square-window min of radius s
    (built from rolls with +inf edge fill) and do d = min(d, winmin + s);
    a final clamp maps every value > n_clamp back to bound_val, which is what
    the truncated reference iteration leaves there.
    """
    _, _, H, W = t_ref.shape       # block is (1, 1, H, W)
    t = t_ref[...]
    tf = t.astype(jnp.float32)

    # boundary = label changes downwards / rightwards, or label == ignore_index
    t_dn = _shift_const(tf, 1, 2, 0.0)     # t[i+1, j]
    t_rt = _shift_const(tf, 1, 3, 0.0)     # t[i, j+1]
    row = lax.broadcasted_iota(jnp.int32, tf.shape, 2)
    col = lax.broadcasted_iota(jnp.int32, tf.shape, 3)
    boundary = (((t_dn != tf) & (row < H - 1))
                | ((t_rt != tf) & (col < W - 1))
                | (t == ignore_index))

    d = jnp.where(boundary, 0.0, bound_val).astype(jnp.float32)

    for s in steps:                        # static python ints: 1, 2, 4, ...
        # separable square-window min of radius s of the step-start d
        w = d
        cur, inc = 0, 1
        while cur < s:
            take = min(inc, s - cur)       # take <= cur + 1  (keeps edge coverage exact)
            w = jnp.minimum(w, _shift_const(w, take, 3, _BIG))
            w = jnp.minimum(w, _shift_const(w, -take, 3, _BIG))
            w = jnp.minimum(w, _shift_const(w, take, 2, _BIG))
            w = jnp.minimum(w, _shift_const(w, -take, 2, _BIG))
            cur += take
            inc *= 2
        d = jnp.minimum(d, w + float(s))

    dist_ref[...] = jnp.where(d <= float(n_clamp), d, jnp.float32(bound_val))


# ---------------------------------------------------------------------------
# kernel 2: per-pixel channel KL towards bottom / right neighbour (per image)
# ---------------------------------------------------------------------------
def _klsum_kernel(x_ref, ks_ref):
    """logits2boundary, pre-threshold: kl_sum = kl_tb + kl_lr where
    kl_tb(i,j) = sum_c softmax(i,j) * (log_softmax(i,j) - log_softmax(i+1,j)),
    zero on the last row (resp. column).  Softmax computed once."""
    _, C, H, W = x_ref.shape
    x = x_ref[...]
    m = jnp.max(x, axis=1, keepdims=True)
    ex = jnp.exp(x - m)
    se = jnp.sum(ex, axis=1, keepdims=True)
    ls = x - m - jnp.log(se)                    # log_softmax over channels
    sm = ex / se                                # softmax over channels
    negent = jnp.sum(sm * ls, axis=1, keepdims=True)

    row = lax.broadcasted_iota(jnp.int32, negent.shape, 2)
    col = lax.broadcasted_iota(jnp.int32, negent.shape, 3)

    ls_dn = _shift_const(ls, 1, 2, 0.0)         # ls[i+1, j]  (value masked at last row)
    kl_tb = negent - jnp.sum(sm * ls_dn, axis=1, keepdims=True)
    kl_tb = jnp.where(row < H - 1, kl_tb, 0.0)

    ls_rt = _shift_const(ls, 1, 3, 0.0)         # ls[i, j+1]
    kl_lr = negent - jnp.sum(sm * ls_rt, axis=1, keepdims=True)
    kl_lr = jnp.where(col < W - 1, kl_lr, 0.0)

    ks_ref[...] = kl_tb + kl_lr


# ---------------------------------------------------------------------------
# kernel 3: dilation, orientation, border CE + radius weight, target CE
# ---------------------------------------------------------------------------
def _loss_kernel(x_ref, t_ref, dist_ref, kb_ref, out_ref, *, ignore_index, upperbound):
    """Per image: 3x3 dilation of the predicted boundary, get_orientation in
    masked full-grid form (exact under reduction='sum'), border cross-entropy,
    radius weight and target cross-entropy.  Partial sums are written to a
    lane-dense (1, 8, 128) tile at [0, 0, 0:3]."""
    _, C, H, W = x_ref.shape
    x = x_ref[...]
    t = t_ref[...]
    dist = dist_ref[...]

    # ---- separable 3x3 dilation (zero pad) of the predicted-boundary mask ----
    kl_bin = kb_ref[...]
    r = kl_bin + _shift_const(kl_bin, 1, 3, 0.0) + _shift_const(kl_bin, -1, 3, 0.0)
    dil = r + _shift_const(r, 1, 2, 0.0) + _shift_const(r, -1, 2, 0.0)
    edge = dil > 0.0

    # ---- channel softmax / log-softmax, computed exactly once ----
    mx = jnp.max(x, axis=1, keepdims=True)
    ex = jnp.exp(x - mx)
    se = jnp.sum(ex, axis=1, keepdims=True)
    ls = x - mx - jnp.log(se)
    sm = ex / se
    negent = jnp.sum(sm * ls, axis=1, keepdims=True)   # sum_c softmax*log_softmax

    # ---- streaming argmin over neighbour distances + online logsumexp over the
    #      8 neighbour-KL "logits" (small live set, no 8-slab materialisation) ----
    best_val = jnp.full((1, 1, H, W), _BIG, jnp.float32)
    best_idx = jnp.zeros((1, 1, H, W), jnp.int32)
    best_kl = jnp.zeros((1, 1, H, W), jnp.float32)
    kmax = jnp.full((1, 1, H, W), -_BIG, jnp.float32)
    ksum = jnp.zeros((1, 1, H, W), jnp.float32)

    for k, (nx, ny) in enumerate(zip(_NEIGHBOR_ROW, _NEIGHBOR_COL)):
        radius_k = _shift_const(_shift_const(dist, nx, 2, _MAX_DIS), ny, 3, _MAX_DIS)
        upd = radius_k < best_val            # strict < == first-occurrence argmin
        best_val = jnp.where(upd, radius_k, best_val)
        best_idx = jnp.where(upd, k, best_idx)
        if nx != 0 or ny != 0:
            # KL(center || nearby) = sum_c softmax(nearby)*(ls(nearby) - ls(center))
            #                      = negent(nearby) - sum_c softmax(nearby)*ls(center)
            sm_nb = _shift_rep(_shift_rep(sm, nx, 2), ny, 3)       # replicate pad
            ne_nb = _shift_rep(_shift_rep(negent, nx, 2), ny, 3)
            kl_k = ne_nb - jnp.sum(sm_nb * ls, axis=1, keepdims=True)
            best_kl = jnp.where(upd, kl_k, best_kl)
            new_max = jnp.maximum(kmax, kl_k)
            ksum = ksum * jnp.exp(kmax - new_max) + jnp.exp(kl_k - new_max)
            kmax = new_max

    ce_px = (kmax + jnp.log(ksum)) - best_kl       # -log_softmax(kl)[argmin direction]

    valid = edge & (best_idx != 8)
    border_ce = jnp.sum(jnp.where(valid, ce_px, 0.0))
    radius_w = jnp.sum(jnp.where(valid,
                                 jnp.minimum(dist, upperbound) / upperbound, 0.0))

    # ---- target cross-entropy (reduction='sum', ignore_index) ----
    cidx = lax.broadcasted_iota(jnp.int32, (1, C, H, W), 1)
    sel_ls = jnp.sum(jnp.where(cidx == t, ls, 0.0), axis=1, keepdims=True)
    target_ce = jnp.sum(jnp.where(t != ignore_index, -sel_ls, 0.0))

    # lane-dense output tile; sums live at [0, 0, 0:3]
    sub = lax.broadcasted_iota(jnp.int32, (1, 8, 128), 1)
    lane = lax.broadcasted_iota(jnp.int32, (1, 8, 128), 2)
    row0 = sub == 0
    tile = jnp.where(row0 & (lane == 0), border_ce, 0.0)
    tile = tile + jnp.where(row0 & (lane == 1), radius_w, 0.0)
    tile = tile + jnp.where(row0 & (lane == 2), target_ce, 0.0)
    out_ref[...] = tile.astype(jnp.float32)


# ---------------------------------------------------------------------------
# wrapper
# ---------------------------------------------------------------------------
def _eps_ladder(eps0, n):
    """Threshold ladder eps0, eps0*1.2, ... (python-float repeated multiply,
    like the reference loop, cast to float32 at comparison time)."""
    vals = []
    e = float(eps0)
    for _ in range(n):
        vals.append(np.float32(e))
        e = e * 1.2
    return np.asarray(vals, dtype=np.float32)


def _vmem_limit(block_bytes):
    # ~2x for double-buffered pipeline blocks + generous headroom for in-kernel
    # temporaries; clamped so it stays valid on every TPU generation.
    return int(min(48 * 2 ** 20, max(16 * 2 ** 20, 8 * int(block_bytes))))


def active_boundary_loss(logits, targets, *, ignore_index=255, upperbound=20.0,
                         edge_ratio=0.05, eps0=1e-5):
    """logits: (B, C, H, W) float32 ; targets: (B, 1, H, W) int32.
    Returns scalar loss (reduction='sum'): target CE + border CE + radius weight,
    as in the PyTorch module."""
    B, C, H, W = logits.shape
    tb_, tc_, th_, tw_ = targets.shape
    assert tb_ == B and C > tc_ and th_ == H and tw_ == W

    bound_val = float(B + tc_ + H + W)     # torch.tensor(boundaries.shape).sum()
    n_clamp = min(H, W)
    n_steps = int(np.ceil(np.log2(n_clamp + 1)))
    steps = tuple(2 ** k for k in range(n_steps))

    img_bytes = H * W * 4
    chw_bytes = C * H * W * 4

    # --- ground-truth boundary + Chebyshev distance transform (per image) ---
    dist = pl.pallas_call(
        functools.partial(_dist_kernel, ignore_index=ignore_index, steps=steps,
                          n_clamp=n_clamp, bound_val=bound_val),
        out_shape=jax.ShapeDtypeStruct((B, 1, H, W), jnp.float32),
        grid_spec=pltpu.PrefetchScalarGridSpec(
            num_scalar_prefetch=0, grid=(B,),
            in_specs=[pl.BlockSpec((1, 1, H, W), lambda b: (b, 0, 0, 0))],
            out_specs=pl.BlockSpec((1, 1, H, W), lambda b: (b, 0, 0, 0))),
        compiler_params=pltpu.CompilerParams(
            dimension_semantics=("parallel",),
            vmem_limit_bytes=_vmem_limit(2 * img_bytes)),
    )(targets)

    # --- adjacent-pixel KL sums (per image) ---
    kl_sum = pl.pallas_call(
        _klsum_kernel,
        out_shape=jax.ShapeDtypeStruct((B, 1, H, W), jnp.float32),
        grid_spec=pltpu.PrefetchScalarGridSpec(
            num_scalar_prefetch=0, grid=(B,),
            in_specs=[pl.BlockSpec((1, C, H, W), lambda b: (b, 0, 0, 0))],
            out_specs=pl.BlockSpec((1, 1, H, W), lambda b: (b, 0, 0, 0))),
        compiler_params=pltpu.CompilerParams(
            dimension_semantics=("parallel",),
            vmem_limit_bytes=_vmem_limit(chw_bytes + img_bytes)),
    )(logits)

    # --- eps search of logits2boundary: one fused bucket count instead of a
    #     serialized while-loop of full-array reductions.  pixel_ratio follows
    #     the reference exactly (whole-batch count vs. per-image ratio). ---
    thr = jnp.asarray(_eps_ladder(eps0, _EPS_LADDER_LEN))
    pixel_ratio = H * W * edge_ratio
    counts = jnp.sum(kl_sum.reshape(-1, 1) > thr.reshape(1, -1), axis=0)   # (J,)
    n_over = jnp.sum((counts > pixel_ratio).astype(jnp.int32))
    # TODO(synk): the reference while-loop is unbounded; the ladder is capped at
    # _EPS_LADDER_LEN entries (~6e10), which only diverges for pathological kl.
    eps = thr[jnp.minimum(n_over, _EPS_LADDER_LEN - 1)]
    kl_bin = (kl_sum > eps).astype(jnp.float32)

    # --- dilation + orientation + all loss terms (per-image partial sums) ---
    parts = pl.pallas_call(
        functools.partial(_loss_kernel, ignore_index=ignore_index,
                          upperbound=upperbound),
        out_shape=jax.ShapeDtypeStruct((B, 8, 128), jnp.float32),
        grid_spec=pltpu.PrefetchScalarGridSpec(
            num_scalar_prefetch=0, grid=(B,),
            in_specs=[pl.BlockSpec((1, C, H, W), lambda b: (b, 0, 0, 0)),
                      pl.BlockSpec((1, 1, H, W), lambda b: (b, 0, 0, 0)),
                      pl.BlockSpec((1, 1, H, W), lambda b: (b, 0, 0, 0)),
                      pl.BlockSpec((1, 1, H, W), lambda b: (b, 0, 0, 0))],
            out_specs=pl.BlockSpec((1, 8, 128), lambda b: (b, 0, 0))),
        compiler_params=pltpu.CompilerParams(
            dimension_semantics=("parallel",),
            vmem_limit_bytes=_vmem_limit(chw_bytes + 3 * img_bytes + 8 * 128 * 4)),
    )(logits, targets, dist, kl_bin)

    comps = jnp.sum(parts[:, 0, 0:3], axis=0)     # [border_ce, radius_w, target_ce]
    border_loss = comps[0] + comps[1]
    target_loss = comps[2]
    return target_loss + border_loss


if __name__ == "__main__":
    key = jax.random.PRNGKey(0)
    k1, k2 = jax.random.split(key)
    B, C, H, W = 2, 8, 16, 16
    logits = jax.random.normal(k1, (B, C, H, W), dtype=jnp.float32)
    targets = jax.random.randint(k2, (B, 1, H, W), 0, 4, dtype=jnp.int32)
    targets = targets.at[:, :, 0:2, 0:3].set(255)   # some ignored pixels

    loss_fn = jax.jit(active_boundary_loss)
    loss = jax.block_until_ready(loss_fn(logits, targets))
    assert bool(jnp.isfinite(loss))
    print("KERNEL_OK")
</pallas_src>

<mosaic_0001>
module attributes {stable_mosaic.version = 11 : i64} {
  func.func @_klsum_kernel(%arg0: i32, %arg1: memref<1x8x16x16xf32, #tpu.memory_space<vmem>>, %arg2: memref<1x1x16x16xf32, #tpu.memory_space<vmem>>) attributes {dimension_semantics = [#tpu.dimension_semantics<parallel>], iteration_bounds = array<i64: 2>, scalar_prefetch = 0 : i64, scratch_operands = 0 : i64, tpu.core_type = #tpu.core_type<tc>, window_params = [{transform_indices = @transform_0, window_bounds = array<i64: 1, 8, 16, 16>}, {transform_indices = @transform_1, window_bounds = array<i64: 1, 1, 16, 16>}]} {
    %c0 = arith.constant 0 : index
    %c0_0 = arith.constant 0 : index
    %c0_1 = arith.constant 0 : index
    %c0_2 = arith.constant 0 : index
    %0 = vector.load %arg1[%c0, %c0_0, %c0_1, %c0_2] : memref<1x8x16x16xf32, #tpu.memory_space<vmem>>, vector<1x8x16x16xf32>
    %cst = arith.constant dense<0xFF800000> : vector<1x16x16xf32>
    %1 = vector.multi_reduction <maximumf>, %0, %cst [1] : vector<1x8x16x16xf32> to vector<1x16x16xf32>
    %2 = vector.shape_cast %1 : vector<1x16x16xf32> to vector<1x1x16x16xf32>
    %3 = vector.broadcast %2 : vector<1x1x16x16xf32> to vector<1x8x16x16xf32>
    %4 = arith.subf %0, %3 : vector<1x8x16x16xf32>
    %5 = math.exp %4 : vector<1x8x16x16xf32>
    %cst_3 = arith.constant dense<0.000000e+00> : vector<1x16x16xf32>
    %6 = vector.multi_reduction <add>, %5, %cst_3 [1] : vector<1x8x16x16xf32> to vector<1x16x16xf32>
    %7 = vector.shape_cast %6 : vector<1x16x16xf32> to vector<1x1x16x16xf32>
    %8 = vector.broadcast %2 : vector<1x1x16x16xf32> to vector<1x8x16x16xf32>
    %9 = arith.subf %0, %8 : vector<1x8x16x16xf32>
    %10 = math.log %7 : vector<1x1x16x16xf32>
    %11 = vector.broadcast %10 : vector<1x1x16x16xf32> to vector<1x8x16x16xf32>
    %12 = arith.subf %9, %11 : vector<1x8x16x16xf32>
    %13 = vector.broadcast %7 : vector<1x1x16x16xf32> to vector<1x8x16x16xf32>
    %14 = arith.divf %5, %13 : vector<1x8x16x16xf32>
    %15 = arith.mulf %14, %12 : vector<1x8x16x16xf32>
    %cst_4 = arith.constant dense<0.000000e+00> : vector<1x16x16xf32>
    %16 = vector.multi_reduction <add>, %15, %cst_4 [1] : vector<1x8x16x16xf32> to vector<1x16x16xf32>
    %17 = vector.shape_cast %16 : vector<1x16x16xf32> to vector<1x1x16x16xf32>
    %18 = tpu.iota {dimensions = array<i32: 2>} : vector<1x1x16x16xi32>
    %19 = tpu.iota {dimensions = array<i32: 3>} : vector<1x1x16x16xi32>
    %c15_i32 = arith.constant 15 : i32
    %20 = tpu.dynamic_rotate %12 by %c15_i32 dim 2 : vector<1x8x16x16xf32>, i32 -> vector<1x8x16x16xf32>
    %21 = tpu.iota {dimensions = array<i32: 2>} : vector<1x8x16x16xi32>
    %c15_i32_5 = arith.constant 15 : i32
    %22 = vector.broadcast %c15_i32_5 : i32 to vector<1x8x16x16xi32>
    %23 = arith.cmpi slt, %21, %22 : vector<1x8x16x16xi32>
    %cst_6 = arith.constant 0.000000e+00 : f32
    %24 = vector.broadcast %cst_6 : f32 to vector<1x8x16x16xf32>
    %25 = arith.select %23, %20, %24 : vector<1x8x16x16xi1>, vector<1x8x16x16xf32>
    %26 = arith.mulf %14, %25 : vector<1x8x16x16xf32>
    %cst_7 = arith.constant dense<0.000000e+00> : vector<1x16x16xf32>
    %27 = vector.multi_reduction <add>, %26, %cst_7 [1] : vector<1x8x16x16xf32> to vector<1x16x16xf32>
    %28 = vector.shape_cast %27 : vector<1x16x16xf32> to vector<1x1x16x16xf32>
    %29 = arith.subf %17, %28 : vector<1x1x16x16xf32>
    %c15_i32_8 = arith.constant 15 : i32
    %30 = vector.broadcast %c15_i32_8 : i32 to vector<1x1x16x16xi32>
    %31 = arith.cmpi slt, %18, %30 : vector<1x1x16x16xi32>
    %cst_9 = arith.constant 0.000000e+00 : f32
    %32 = vector.broadcast %cst_9 : f32 to vector<1x1x16x16xf32>
    %33 = arith.select %31, %29, %32 : vector<1x1x16x16xi1>, vector<1x1x16x16xf32>
    %c15_i32_10 = arith.constant 15 : i32
    %34 = tpu.dynamic_rotate %12 by %c15_i32_10 dim 3 : vector<1x8x16x16xf32>, i32 -> vector<1x8x16x16xf32>
    %35 = tpu.iota {dimensions = array<i32: 3>} : vector<1x8x16x16xi32>
    %c15_i32_11 = arith.constant 15 : i32
    %36 = vector.broadcast %c15_i32_11 : i32 to vector<1x8x16x16xi32>
    %37 = arith.cmpi slt, %35, %36 : vector<1x8x16x16xi32>
    %cst_12 = arith.constant 0.000000e+00 : f32
    %38 = vector.broadcast %cst_12 : f32 to vector<1x8x16x16xf32>
    %39 = arith.select %37, %34, %38 : vector<1x8x16x16xi1>, vector<1x8x16x16xf32>
    %40 = arith.mulf %14, %39 : vector<1x8x16x16xf32>
    %cst_13 = arith.constant dense<0.000000e+00> : vector<1x16x16xf32>
    %41 = vector.multi_reduction <add>, %40, %cst_13 [1] : vector<1x8x16x16xf32> to vector<1x16x16xf32>
    %42 = vector.shape_cast %41 : vector<1x16x16xf32> to vector<1x1x16x16xf32>
    %43 = arith.subf %17, %42 : vector<1x1x16x16xf32>
    %c15_i32_14 = arith.constant 15 : i32
    %44 = vector.broadcast %c15_i32_14 : i32 to vector<1x1x16x16xi32>
    %45 = arith.cmpi slt, %19, %44 : vector<1x1x16x16xi32>
    %cst_15 = arith.constant 0.000000e+00 : f32
    %46 = vector.broadcast %cst_15 : f32 to vector<1x1x16x16xf32>
    %47 = arith.select %45, %43, %46 : vector<1x1x16x16xi1>, vector<1x1x16x16xf32>
    %48 = arith.addf %33, %47 : vector<1x1x16x16xf32>
    %c0_16 = arith.constant 0 : index
    %c0_17 = arith.constant 0 : index
    %c0_18 = arith.constant 0 : index
    %c0_19 = arith.constant 0 : index
    %49 = vector.load %arg2[%c0_16, %c0_17, %c0_18, %c0_19] : memref<1x1x16x16xf32, #tpu.memory_space<vmem>>, vector<1x1x16x16xf32>
    tpu.vector_store %arg2[%c0_16, %c0_17, %c0_18, %c0_19], %48 {strides = array<i32>} : memref<1x1x16x16xf32, #tpu.memory_space<vmem>>, vector<1x1x16x16xf32>,
    return
  }
  func.func @transform_0(%arg0: i32) -> (i32, i32, i32, i32) {
    %c0_i32 = arith.constant 0 : i32
    %c0_i32_0 = arith.constant 0 : i32
    %c0_i32_1 = arith.constant 0 : i32
    %c0_i32_2 = arith.constant 0 : i32
    return %arg0, %c0_i32, %c0_i32_0, %c0_i32_1 : i32, i32, i32, i32
  }
  func.func @transform_1(%arg0: i32) -> (i32, i32, i32, i32) {
    %c0_i32 = arith.constant 0 : i32
    %c0_i32_0 = arith.constant 0 : i32
    %c0_i32_1 = arith.constant 0 : i32
    %c0_i32_2 = arith.constant 0 : i32
    return %arg0, %c0_i32, %c0_i32_0, %c0_i32_1 : i32, i32, i32, i32
  }
}

module attributes {stable_mosaic.version = 11 : i64} {
  func.func @_dist_kernel(%arg0: i32, %arg1: memref<1x1x16x16xi32, #tpu.memory_space<vmem>>, %arg2: memref<1x1x16x16xf32, #tpu.memory_space<vmem>>) attributes {dimension_semantics = [#tpu.dimension_semantics<parallel>], iteration_bounds = array<i64: 2>, scalar_prefetch = 0 : i64, scratch_operands = 0 : i64, tpu.core_type = #tpu.core_type<tc>, window_params = [{transform_indices = @transform_0, window_bounds = array<i64: 1, 1, 16, 16>}, {transform_indices = @transform_1, window_bounds = array<i64: 1, 1, 16, 16>}]} {
    %c0 = arith.constant 0 : index
    %c0_0 = arith.constant 0 : index
    %c0_1 = arith.constant 0 : index
    %c0_2 = arith.constant 0 : index
    %0 = vector.load %arg1[%c0, %c0_0, %c0_1, %c0_2] : memref<1x1x16x16xi32, #tpu.memory_space<vmem>>, vector<1x1x16x16xi32>
    %1 = arith.sitofp %0 : vector<1x1x16x16xi32> to vector<1x1x16x16xf32>
    %c15_i32 = arith.constant 15 : i32
    %2 = tpu.dynamic_rotate %1 by %c15_i32 dim 2 : vector<1x1x16x16xf32>, i32 -> vector<1x1x16x16xf32>
    %3 = tpu.iota {dimensions = array<i32: 2>} : vector<1x1x16x16xi32>
    %c15_i32_3 = arith.constant 15 : i32
    %4 = vector.broadcast %c15_i32_3 : i32 to vector<1x1x16x16xi32>
    %5 = arith.cmpi slt, %3, %4 : vector<1x1x16x16xi32>
    %cst = arith.constant 0.000000e+00 : f32
    %6 = vector.broadcast %cst : f32 to vector<1x1x16x16xf32>
    %7 = arith.select %5, %2, %6 : vector<1x1x16x16xi1>, vector<1x1x16x16xf32>
    %c15_i32_4 = arith.constant 15 : i32
    %8 = tpu.dynamic_rotate %1 by %c15_i32_4 dim 3 : vector<1x1x16x16xf32>, i32 -> vector<1x1x16x16xf32>
    %9 = tpu.iota {dimensions = array<i32: 3>} : vector<1x1x16x16xi32>
    %c15_i32_5 = arith.constant 15 : i32
    %10 = vector.broadcast %c15_i32_5 : i32 to vector<1x1x16x16xi32>
    %11 = arith.cmpi slt, %9, %10 : vector<1x1x16x16xi32>
    %cst_6 = arith.constant 0.000000e+00 : f32
    %12 = vector.broadcast %cst_6 : f32 to vector<1x1x16x16xf32>
    %13 = arith.select %11, %8, %12 : vector<1x1x16x16xi1>, vector<1x1x16x16xf32>
    %14 = tpu.iota {dimensions = array<i32: 2>} : vector<1x1x16x16xi32>
    %15 = tpu.iota {dimensions = array<i32: 3>} : vector<1x1x16x16xi32>
    %16 = arith.cmpf one, %7, %1 : vector<1x1x16x16xf32>
    %c15_i32_7 = arith.constant 15 : i32
    %17 = vector.broadcast %c15_i32_7 : i32 to vector<1x1x16x16xi32>
    %18 = arith.cmpi slt, %14, %17 : vector<1x1x16x16xi32>
    %19 = arith.andi %16, %18 : vector<1x1x16x16xi1>
    %20 = arith.cmpf one, %13, %1 : vector<1x1x16x16xf32>
    %c15_i32_8 = arith.constant 15 : i32
    %21 = vector.broadcast %c15_i32_8 : i32 to vector<1x1x16x16xi32>
    %22 = arith.cmpi slt, %15, %21 : vector<1x1x16x16xi32>
    %23 = arith.andi %20, %22 : vector<1x1x16x16xi1>
    %24 = arith.ori %19, %23 : vector<1x1x16x16xi1>
    %c255_i32 = arith.constant 255 : i32
    %25 = vector.broadcast %c255_i32 : i32 to vector<1x1x16x16xi32>
    %26 = arith.cmpi eq, %0, %25 : vector<1x1x16x16xi32>
    %27 = arith.ori %24, %26 : vector<1x1x16x16xi1>
    %cst_9 = arith.constant 0.000000e+00 : f32
    %cst_10 = arith.constant 3.500000e+01 : f32
    %28 = vector.broadcast %cst_9 : f32 to vector<1x1x16x16xf32>
    %29 = vector.broadcast %cst_10 : f32 to vector<1x1x16x16xf32>
    %30 = arith.select %27, %28, %29 : vector<1x1x16x16xi1>, vector<1x1x16x16xf32>
    %c15_i32_11 = arith.constant 15 : i32
    %31 = tpu.dynamic_rotate %30 by %c15_i32_11 dim 3 : vector<1x1x16x16xf32>, i32 -> vector<1x1x16x16xf32>
    %32 = tpu.iota {dimensions = array<i32: 3>} : vector<1x1x16x16xi32>
    %c15_i32_12 = arith.constant 15 : i32
    %33 = vector.broadcast %c15_i32_12 : i32 to vector<1x1x16x16xi32>
    %34 = arith.cmpi slt, %32, %33 : vector<1x1x16x16xi32>
    %cst_13 = arith.constant 1.000000e+09 : f32
    %35 = vector.broadcast %cst_13 : f32 to vector<1x1x16x16xf32>
    %36 = arith.select %34, %31, %35 : vector<1x1x16x16xi1>, vector<1x1x16x16xf32>
    %37 = arith.minimumf %30, %36 : vector<1x1x16x16xf32>
    %c1_i32 = arith.constant 1 : i32
    %38 = tpu.dynamic_rotate %37 by %c1_i32 dim 3 : vector<1x1x16x16xf32>, i32 -> vector<1x1x16x16xf32>
    %39 = tpu.iota {dimensions = array<i32: 3>} : vector<1x1x16x16xi32>
    %c1_i32_14 = arith.constant 1 : i32
    %40 = vector.broadcast %c1_i32_14 : i32 to vector<1x1x16x16xi32>
    %41 = arith.cmpi sge, %39, %40 : vector<1x1x16x16xi32>
    %cst_15 = arith.constant 1.000000e+09 : f32
    %42 = vector.broadcast %cst_15 : f32 to vector<1x1x16x16xf32>
    %43 = arith.select %41, %38, %42 : vector<1x1x16x16xi1>, vector<1x1x16x16xf32>
    %44 = arith.minimumf %37, %43 : vector<1x1x16x16xf32>
    %c15_i32_16 = arith.constant 15 : i32
    %45 = tpu.dynamic_rotate %44 by %c15_i32_16 dim 2 : vector<1x1x16x16xf32>, i32 -> vector<1x1x16x16xf32>
    %46 = tpu.iota {dimensions = array<i32: 2>} : vector<1x1x16x16xi32>
    %c15_i32_17 = arith.constant 15 : i32
    %47 = vector.broadcast %c15_i32_17 : i32 to vector<1x1x16x16xi32>
    %48 = arith.cmpi slt, %46, %47 : vector<1x1x16x16xi32>
    %cst_18 = arith.constant 1.000000e+09 : f32
    %49 = vector.broadcast %cst_18 : f32 to vector<1x1x16x16xf32>
    %50 = arith.select %48, %45, %49 : vector<1x1x16x16xi1>, vector<1x1x16x16xf32>
    %51 = arith.minimumf %44, %50 : vector<1x1x16x16xf32>
    %c1_i32_19 = arith.constant 1 : i32
    %52 = tpu.dynamic_rotate %51 by %c1_i32_19 dim 2 : vector<1x1x16x16xf32>, i32 -> vector<1x1x16x16xf32>
    %53 = tpu.iota {dimensions = array<i32: 2>} : vector<1x1x16x16xi32>
    %c1_i32_20 = arith.constant 1 : i32
    %54 = vector.broadcast %c1_i32_20 : i32 to vector<1x1x16x16xi32>
    %55 = arith.cmpi sge, %53, %54 : vector<1x1x16x16xi32>
    %cst_21 = arith.constant 1.000000e+09 : f32
    %56 = vector.broadcast %cst_21 : f32 to vector<1x1x16x16xf32>
    %57 = arith.select %55, %52, %56 : vector<1x1x16x16xi1>, vector<1x1x16x16xf32>
    %58 = arith.minimumf %51, %57 : vector<1x1x16x16xf32>
    %cst_22 = arith.constant 1.000000e+00 : f32
    %59 = vector.broadcast %cst_22 : f32 to vector<1x1x16x16xf32>
    %60 = arith.addf %58, %59 : vector<1x1x16x16xf32>
    %61 = arith.minimumf %30, %60 : vector<1x1x16x16xf32>
    %c15_i32_23 = arith.constant 15 : i32
    %62 = tpu.dynamic_rotate %61 by %c15_i32_23 dim 3 : vector<1x1x16x16xf32>, i32 -> vector<1x1x16x16xf32>
    %63 = tpu.iota {dimensions = array<i32: 3>} : vector<1x1x16x16xi32>
    %c15_i32_24 = arith.constant 15 : i32
    %64 = vector.broadcast %c15_i32_24 : i32 to vector<1x1x16x16xi32>
    %65 = arith.cmpi slt, %63, %64 : vector<1x1x16x16xi32>
    %cst_25 = arith.constant 1.000000e+09 : f32
    %66 = vector.broadcast %cst_25 : f32 to vector<1x1x16x16xf32>
    %67 = arith.select %65, %62, %66 : vector<1x1x16x16xi1>, vector<1x1x16x16xf32>
    %68 = arith.minimumf %61, %67 : vector<1x1x16x16xf32>
    %c1_i32_26 = arith.constant 1 : i32
    %69 = tpu.dynamic_rotate %68 by %c1_i32_26 dim 3 : vector<1x1x16x16xf32>, i32 -> vector<1x1x16x16xf32>
    %70 = tpu.iota {dimensions = array<i32: 3>} : vector<1x1x16x16xi32>
    %c1_i32_27 = arith.constant 1 : i32
    %71 = vector.broadcast %c1_i32_27 : i32 to vector<1x1x16x16xi32>
    %72 = arith.cmpi sge, %70, %71 : vector<1x1x16x16xi32>
    %cst_28 = arith.constant 1.000000e+09 : f32
    %73 = vector.broadcast %cst_28 : f32 to vector<1x1x16x16xf32>
    %74 = arith.select %72, %69, %73 : vector<1x1x16x16xi1>, vector<1x1x16x16xf32>
    %75 = arith.minimumf %68, %74 : vector<1x1x16x16xf32>
    %c15_i32_29 = arith.constant 15 : i32
    %76 = tpu.dynamic_rotate %75 by %c15_i32_29 dim 2 : vector<1x1x16x16xf32>, i32 -> vector<1x1x16x16xf32>
    %77 = tpu.iota {dimensions = array<i32: 2>} : vector<1x1x16x16xi32>
    %c15_i32_30 = arith.constant 15 : i32
    %78 = vector.broadcast %c15_i32_30 : i32 to vector<1x1x16x16xi32>
    %79 = arith.cmpi slt, %77, %78 : vector<1x1x16x16xi32>
    %cst_31 = arith.constant 1.000000e+09 : f32
    %80 = vector.broadcast %cst_31 : f32 to vector<1x1x16x16xf32>
    %81 = arith.select %79, %76, %80 : vector<1x1x16x16xi1>, vector<1x1x16x16xf32>
    %82 = arith.minimumf %75, %81 : vector<1x1x16x16xf32>
    %c1_i32_32 = arith.constant 1 : i32
    %83 = tpu.dynamic_rotate %82 by %c1_i32_32 dim 2 : vector<1x1x16x16xf32>, i32 -> vector<1x1x16x16xf32>
    %84 = tpu.iota {dimensions = array<i32: 2>} : vector<1x1x16x16xi32>
    %c1_i32_33 = arith.constant 1 : i32
    %85 = vector.broadcast %c1_i32_33 : i32 to vector<1x1x16x16xi32>
    %86 = arith.cmpi sge, %84, %85 : vector<1x1x16x16xi32>
    %cst_34 = arith.constant 1.000000e+09 : f32
    %87 = vector.broadcast %cst_34 : f32 to vector<1x1x16x16xf32>
    %88 = arith.select %86, %83, %87 : vector<1x1x16x16xi1>, vector<1x1x16x16xf32>
    %89 = arith.minimumf %82, %88 : vector<1x1x16x16xf32>
    %c15_i32_35 = arith.constant 15 : i32
    %90 = tpu.dynamic_rotate %89 by %c15_i32_35 dim 3 : vector<1x1x16x16xf32>, i32 -> vector<1x1x16x16xf32>
    %91 = tpu.iota {dimensions = array<i32: 3>} : vector<1x1x16x16xi32>
    %c15_i32_36 = arith.constant 15 : i32
    %92 = vector.broadcast %c15_i32_36 : i32 to vector<1x1x16x16xi32>
    %93 = arith.cmpi slt, %91, %92 : vector<1x1x16x16xi32>
    %cst_37 = arith.constant 1.000000e+09 : f32
    %94 = vector.broadcast %cst_37 : f32 to vector<1x1x16x16xf32>
    %95 = arith.select %93, %90, %94 : vector<1x1x16x16xi1>, vector<1x1x16x16xf32>
    %96 = arith.minimumf %89, %95 : vector<1x1x16x16xf32>
    %c1_i32_38 = arith.constant 1 : i32
    %97 = tpu.dynamic_rotate %96 by %c1_i32_38 dim 3 : vector<1x1x16x16xf32>, i32 -> vector<1x1x16x16xf32>
    %98 = tpu.iota {dimensions = array<i32: 3>} : vector<1x1x16x16xi32>
    %c1_i32_39 = arith.constant 1 : i32
    %99 = vector.broadcast %c1_i32_39 : i32 to vector<1x1x16x16xi32>
    %100 = arith.cmpi sge, %98, %99 : vector<1x1x16x16xi32>
    %cst_40 = arith.constant 1.000000e+09 : f32
    %101 = vector.broadcast %cst_40 : f32 to vector<1x1x16x16xf32>
    %102 = arith.select %100, %97, %101 : vector<1x1x16x16xi1>, vector<1x1x16x16xf32>
    %103 = arith.minimumf %96, %102 : vector<1x1x16x16xf32>
    %c15_i32_41 = arith.constant 15 : i32
    %104 = tpu.dynamic_rotate %103 by %c15_i32_41 dim 2 : vector<1x1x16x16xf32>, i32 -> vector<1x1x16x16xf32>
    %105 = tpu.iota {dimensions = array<i32: 2>} : vector<1x1x16x16xi32>
    %c15_i32_42 = arith.constant 15 : i32
    %106 = vector.broadcast %c15_i32_42 : i32 to vector<1x1x16x16xi32>
    %107 = arith.cmpi slt, %105, %106 : vector<1x1x16x16xi32>
    %cst_43 = arith.constant 1.000000e+09 : f32
    %108 = vector.broadcast %cst_43 : f32 to vector<1x1x16x16xf32>
    %109 = arith.select %107, %104, %108 : vector<1x1x16x16xi1>, vector<1x1x16x16xf32>
    %110 = arith.minimumf %103, %109 : vector<1x1x16x16xf32>
    %c1_i32_44 = arith.constant 1 : i32
    %111 = tpu.dynamic_rotate %110 by %c1_i32_44 dim 2 : vector<1x1x16x16xf32>, i32 -> vector<1x1x16x16xf32>
    %112 = tpu.iota {dimensions = array<i32: 2>} : vector<1x1x16x16xi32>
    %c1_i32_45 = arith.constant 1 : i32
    %113 = vector.broadcast %c1_i32_45 : i32 to vector<1x1x16x16xi32>
    %114 = arith.cmpi sge, %112, %113 : vector<1x1x16x16xi32>
    %cst_46 = arith.constant 1.000000e+09 : f32
    %115 = vector.broadcast %cst_46 : f32 to vector<1x1x16x16xf32>
    %116 = arith.select %114, %111, %115 : vector<1x1x16x16xi1>, vector<1x1x16x16xf32>
    %117 = arith.minimumf %110, %116 : vector<1x1x16x16xf32>
    %cst_47 = arith.constant 2.000000e+00 : f32
    %118 = vector.broadcast %cst_47 : f32 to vector<1x1x16x16xf32>
    %119 = arith.addf %117, %118 : vector<1x1x16x16xf32>
    %120 = arith.minimumf %61, %119 : vector<1x1x16x16xf32>
    %c15_i32_48 = arith.constant 15 : i32
    %121 = tpu.dynamic_rotate %120 by %c15_i32_48 dim 3 : vector<1x1x16x16xf32>, i32 -> vector<1x1x16x16xf32>
    %122 = tpu.iota {dimensions = array<i32: 3>} : vector<1x1x16x16xi32>
    %c15_i32_49 = arith.constant 15 : i32
    %123 = vector.broadcast %c15_i32_49 : i32 to vector<1x1x16x16xi32>
    %124 = arith.cmpi slt, %122, %123 : vector<1x1x16x16xi32>
    %cst_50 = arith.constant 1.000000e+09 : f32
    %125 = vector.broadcast %cst_50 : f32 to vector<1x1x16x16xf32>
    %126 = arith.select %124, %121, %125 : vector<1x1x16x16xi1>, vector<1x1x16x16xf32>
    %127 = arith.minimumf %120, %126 : vector<1x1x16x16xf32>
    %c1_i32_51 = arith.constant 1 : i32
    %128 = tpu.dynamic_rotate %127 by %c1_i32_51 dim 3 : vector<1x1x16x16xf32>, i32 -> vector<1x1x16x16xf32>
    %129 = tpu.iota {dimensions = array<i32: 3>} : vector<1x1x16x16xi32>
    %c1_i32_52 = arith.constant 1 : i32
    %130 = vector.broadcast %c1_i32_52 : i32 to vector<1x1x16x16xi32>
    %131 = arith.cmpi sge, %129, %130 : vector<1x1x16x16xi32>
    %cst_53 = arith.constant 1.000000e+09 : f32
    %132 = vector.broadcast %cst_53 : f32 to vector<1x1x16x16xf32>
    %133 = arith.select %131, %128, %132 : vector<1x1x16x16xi1>, vector<1x1x16x16xf32>
    %134 = arith.minimumf %127, %133 : vector<1x1x16x16xf32>
    %c15_i32_54 = arith.constant 15 : i32
    %135 = tpu.dynamic_rotate %134 by %c15_i32_54 dim 2 : vector<1x1x16x16xf32>, i32 -> vector<1x1x16x16xf32>
    %136 = tpu.iota {dimensions = array<i32: 2>} : vector<1x1x16x16xi32>
    %c15_i32_55 = arith.constant 15 : i32
    %137 = vector.broadcast %c15_i32_55 : i32 to vector<1x1x16x16xi32>
    %138 = arith.cmpi slt, %136, %137 : vector<1x1x16x16xi32>
    %cst_56 = arith.constant 1.000000e+09 : f32
    %139 = vector.broadcast %cst_56 : f32 to vector<1x1x16x16xf32>
    %140 = arith.select %138, %135, %139 : vector<1x1x16x16xi1>, vector<1x1x16x16xf32>
    %141 = arith.minimumf %134, %140 : vector<1x1x16x16xf32>
    %c1_i32_57 = arith.constant 1 : i32
    %142 = tpu.dynamic_rotate %141 by %c1_i32_57 dim 2 : vector<1x1x16x16xf32>, i32 -> vector<1x1x16x16xf32>
    %143 = tpu.iota {dimensions = array<i32: 2>} : vector<1x1x16x16xi32>
    %c1_i32_58 = arith.constant 1 : i32
    %144 = vector.broadcast %c1_i32_58 : i32 to vector<1x1x16x16xi32>
    %145 = arith.cmpi sge, %143, %144 : vector<1x1x16x16xi32>
    %cst_59 = arith.constant 1.000000e+09 : f32
    %146 = vector.broadcast %cst_59 : f32 to vector<1x1x16x16xf32>
    %147 = arith.select %145, %142, %146 : vector<1x1x16x16xi1>, vector<1x1x16x16xf32>
    %148 = arith.minimumf %141, %147 : vector<1x1x16x16xf32>
    %c14_i32 = arith.constant 14 : i32
    %149 = tpu.dynamic_rotate %148 by %c14_i32 dim 3 : vector<1x1x16x16xf32>, i32 -> vector<1x1x16x16xf32>
    %150 = tpu.iota {dimensions = array<i32: 3>} : vector<1x1x16x16xi32>
    %c14_i32_60 = arith.constant 14 : i32
    %151 = vector.broadcast %c14_i32_60 : i32 to vector<1x1x16x16xi32>
    %152 = arith.cmpi slt, %150, %151 : vector<1x1x16x16xi32>
    %cst_61 = arith.constant 1.000000e+09 : f32
    %153 = vector.broadcast %cst_61 : f32 to vector<1x1x16x16xf32>
    %154 = arith.select %152, %149, %153 : vector<1x1x16x16xi1>, vector<1x1x16x16xf32>
    %155 = arith.minimumf %148, %154 : vector<1x1x16x16xf32>
    %c2_i32 = arith.constant 2 : i32
    %156 = tpu.dynamic_rotate %155 by %c2_i32 dim 3 : vector<1x1x16x16xf32>, i32 -> vector<1x1x16x16xf32>
    %157 = tpu.iota {dimensions = array<i32: 3>} : vector<1x1x16x16xi32>
    %c2_i32_62 = arith.constant 2 : i32
    %158 = vector.broadcast %c2_i32_62 : i32 to vector<1x1x16x16xi32>
    %159 = arith.cmpi sge, %157, %158 : vector<1x1x16x16xi32>
    %cst_63 = arith.constant 1.000000e+09 : f32
    %160 = vector.broadcast %cst_63 : f32 to vector<1x1x16x16xf32>
    %161 = arith.select %159, %156, %160 : vector<1x1x16x16xi1>, vector<1x1x16x16xf32>
    %162 = arith.minimumf %155, %161 : vector<1x1x16x16xf32>
    %c14_i32_64 = arith.constant 14 : i32
    %163 = tpu.dynamic_rotate %162 by %c14_i32_64 dim 2 : vector<1x1x16x16xf32>, i32 -> vector<1x1x16x16xf32>
    %164 = tpu.iota {dimensions = array<i32: 2>} : vector<1x1x16x16xi32>
    %c14_i32_65 = arith.constant 14 : i32
    %165 = vector.broadcast %c14_i32_65 : i32 to vector<1x1x16x16xi32>
    %166 = arith.cmpi slt, %164, %165 : vector<1x1x16x16xi32>
    %cst_66 = arith.constant 1.000000e+09 : f32
    %167 = vector.broadcast %cst_66 : f32 to vector<1x1x16x16xf32>
    %168 = arith.select %166, %163, %167 : vector<1x1x16x16xi1>, vector<1x1x16x16xf32>
    %169 = arith.minimumf %162, %168 : vector<1x1x16x16xf32>
    %c2_i32_67 = arith.constant 2 : i32
    %170 = tpu.dynamic_rotate %169 by %c2_i32_67 dim 2 : vector<1x1x16x16xf32>, i32 -> vector<1x1x16x16xf32>
    %171 = tpu.iota {dimensions = array<i32: 2>} : vector<1x1x16x16xi32>
    %c2_i32_68 = arith.constant 2 : i32
    %172 = vector.broadcast %c2_i32_68 : i32 to vector<1x1x16x16xi32>
    %173 = arith.cmpi sge, %171, %172 : vector<1x1x16x16xi32>
    %cst_69 = arith.constant 1.000000e+09 : f32
    %174 = vector.broadcast %cst_69 : f32 to vector<1x1x16x16xf32>
    %175 = arith.select %173, %170, %174 : vector<1x1x16x16xi1>, vector<1x1x16x16xf32>
    %176 = arith.minimumf %169, %175 : vector<1x1x16x16xf32>
    %c15_i32_70 = arith.constant 15 : i32
    %177 = tpu.dynamic_rotate %176 by %c15_i32_70 dim 3 : vector<1x1x16x16xf32>, i32 -> vector<1x1x16x16xf32>
    %178 = tpu.iota {dimensions = array<i32: 3>} : vector<1x1x16x16xi32>
    %c15_i32_71 = arith.constant 15 : i32
    %179 = vector.broadcast %c15_i32_71 : i32 to vector<1x1x16x16xi32>
    %180 = arith.cmpi slt, %178, %179 : vector<1x1x16x16xi32>
    %cst_72 = arith.constant 1.000000e+09 : f32
    %181 = vector.broadcast %cst_72 : f32 to vector<1x1x16x16xf32>
    %182 = arith.select %180, %177, %181 : vector<1x1x16x16xi1>, vector<1x1x16x16xf32>
    %183 = arith.minimumf %176, %182 : vector<1x1x16x16xf32>
    %c1_i32_73 = arith.constant 1 : i32
    %184 = tpu.dynamic_rotate %183 by %c1_i32_73 dim 3 : vector<1x1x16x16xf32>, i32 -> vector<1x1x16x16xf32>
    %185 = tpu.iota {dimensions = array<i32: 3>} : vector<1x1x16x16xi32>
    %c1_i32_74 = arith.constant 1 : i32
    %186 = vector.broadcast %c1_i32_74 : i32 to vector<1x1x16x16xi32>
    %187 = arith.cmpi sge, %185, %186 : vector<1x1x16x16xi32>
    %cst_75 = arith.constant 1.000000e+09 : f32
    %188 = vector.broadcast %cst_75 : f32 to vector<1x1x16x16xf32>
    %189 = arith.select %187, %184, %188 : vector<1x1x16x16xi1>, vector<1x1x16x16xf32>
    %190 = arith.minimumf %183, %189 : vector<1x1x16x16xf32>
    %c15_i32_76 = arith.constant 15 : i32
    %191 = tpu.dynamic_rotate %190 by %c15_i32_76 dim 2 : vector<1x1x16x16xf32>, i32 -> vector<1x1x16x16xf32>
    %192 = tpu.iota {dimensions = array<i32: 2>} : vector<1x1x16x16xi32>
    %c15_i32_77 = arith.constant 15 : i32
    %193 = vector.broadcast %c15_i32_77 : i32 to vector<1x1x16x16xi32>
    %194 = arith.cmpi slt, %192, %193 : vector<1x1x16x16xi32>
    %cst_78 = arith.constant 1.000000e+09 : f32
    %195 = vector.broadcast %cst_78 : f32 to vector<1x1x16x16xf32>
    %196 = arith.select %194, %191, %195 : vector<1x1x16x16xi1>, vector<1x1x16x16xf32>
    %197 = arith.minimumf %190, %196 : vector<1x1x16x16xf32>
    %c1_i32_79 = arith.constant 1 : i32
    %198 = tpu.dynamic_rotate %197 by %c1_i32_79 dim 2 : vector<1x1x16x16xf32>, i32 -> vector<1x1x16x16xf32>
    %199 = tpu.iota {dimensions = array<i32: 2>} : vector<1x1x16x16xi32>
    %c1_i32_80 = arith.constant 1 : i32
    %200 = vector.broadcast %c1_i32_80 : i32 to vector<1x1x16x16xi32>
    %201 = arith.cmpi sge, %199, %200 : vector<1x1x16x16xi32>
    %cst_81 = arith.constant 1.000000e+09 : f32
    %202 = vector.broadcast %cst_81 : f32 to vector<1x1x16x16xf32>
    %203 = arith.select %201, %198, %202 : vector<1x1x16x16xi1>, vector<1x1x16x16xf32>
    %204 = arith.minimumf %197, %203 : vector<1x1x16x16xf32>
    %cst_82 = arith.constant 4.000000e+00 : f32
    %205 = vector.broadcast %cst_82 : f32 to vector<1x1x16x16xf32>
    %206 = arith.addf %204, %205 : vector<1x1x16x16xf32>
    %207 = arith.minimumf %120, %206 : vector<1x1x16x16xf32>
    %c15_i32_83 = arith.constant 15 : i32
    %208 = tpu.dynamic_rotate %207 by %c15_i32_83 dim 3 : vector<1x1x16x16xf32>, i32 -> vector<1x1x16x16xf32>
    %209 = tpu.iota {dimensions = array<i32: 3>} : vector<1x1x16x16xi32>
    %c15_i32_84 = arith.constant 15 : i32
    %210 = vector.broadcast %c15_i32_84 : i32 to vector<1x1x16x16xi32>
    %211 = arith.cmpi slt, %209, %210 : vector<1x1x16x16xi32>
    %cst_85 = arith.constant 1.000000e+09 : f32
    %212 = vector.broadcast %cst_85 : f32 to vector<1x1x16x16xf32>
    %213 = arith.select %211, %208, %212 : vector<1x1x16x16xi1>, vector<1x1x16x16xf32>
    %214 = arith.minimumf %207, %213 : vector<1x1x16x16xf32>
    %c1_i32_86 = arith.constant 1 : i32
    %215 = tpu.dynamic_rotate %214 by %c1_i32_86 dim 3 : vector<1x1x16x16xf32>, i32 -> vector<1x1x16x16xf32>
    %216 = tpu.iota {dimensions = array<i32: 3>} : vector<1x1x16x16xi32>
    %c1_i32_87 = arith.constant 1 : i32
    %217 = vector.broadcast %c1_i32_87 : i32 to vector<1x1x16x16xi32>
    %218 = arith.cmpi sge, %216, %217 : vector<1x1x16x16xi32>
    %cst_88 = arith.constant 1.000000e+09 : f32
    %219 = vector.broadcast %cst_88 : f32 to vector<1x1x16x16xf32>
    %220 = arith.select %218, %215, %219 : vector<1x1x16x16xi1>, vector<1x1x16x16xf32>
    %221 = arith.minimumf %214, %220 : vector<1x1x16x16xf32>
    %c15_i32_89 = arith.constant 15 : i32
    %222 = tpu.dynamic_rotate %221 by %c15_i32_89 dim 2 : vector<1x1x16x16xf32>, i32 -> vector<1x1x16x16xf32>
    %223 = tpu.iota {dimensions = array<i32: 2>} : vector<1x1x16x16xi32>
    %c15_i32_90 = arith.constant 15 : i32
    %224 = vector.broadcast %c15_i32_90 : i32 to vector<1x1x16x16xi32>
    %225 = arith.cmpi slt, %223, %224 : vector<1x1x16x16xi32>
    %cst_91 = arith.constant 1.000000e+09 : f32
    %226 = vector.broadcast %cst_91 : f32 to vector<1x1x16x16xf32>
    %227 = arith.select %225, %222, %226 : vector<1x1x16x16xi1>, vector<1x1x16x16xf32>
    %228 = arith.minimumf %221, %227 : vector<1x1x16x16xf32>
    %c1_i32_92 = arith.constant 1 : i32
    %229 = tpu.dynamic_rotate %228 by %c1_i32_92 dim 2 : vector<1x1x16x16xf32>, i32 -> vector<1x1x16x16xf32>
    %230 = tpu.iota {dimensions = array<i32: 2>} : vector<1x1x16x16xi32>
    %c1_i32_93 = arith.constant 1 : i32
    %231 = vector.broadcast %c1_i32_93 : i32 to vector<1x1x16x16xi32>
    %232 = arith.cmpi sge, %230, %231 : vector<1x1x16x16xi32>
    %cst_94 = arith.constant 1.000000e+09 : f32
    %233 = vector.broadcast %cst_94 : f32 to vector<1x1x16x16xf32>
    %234 = arith.select %232, %229, %233 : vector<1x1x16x16xi1>, vector<1x1x16x16xf32>
    %235 = arith.minimumf %228, %234 : vector<1x1x16x16xf32>
    %c14_i32_95 = arith.constant 14 : i32
    %236 = tpu.dynamic_rotate %235 by %c14_i32_95 dim 3 : vector<1x1x16x16xf32>, i32 -> vector<1x1x16x16xf32>
    %237 = tpu.iota {dimensions = array<i32: 3>} : vector<1x1x16x16xi32>
    %c14_i32_96 = arith.constant 14 : i32
    %238 = vector.broadcast %c14_i32_96 : i32 to vector<1x1x16x16xi32>
    %239 = arith.cmpi slt, %237, %238 : vector<1x1x16x16xi32>
    %cst_97 = arith.constant 1.000000e+09 : f32
    %240 = vector.broadcast %cst_97 : f32 to vector<1x1x16x16xf32>
    %241 = arith.select %239, %236, %240 : vector<1x1x16x16xi1>, vector<1x1x16x16xf32>
    %242 = arith.minimumf %235, %241 : vector<1x1x16x16xf32>
    %c2_i32_98 = arith.constant 2 : i32
    %243 = tpu.dynamic_rotate %242 by %c2_i32_98 dim 3 : vector<1x1x16x16xf32>, i32 -> vector<1x1x16x16xf32>
    %244 = tpu.iota {dimensions = array<i32: 3>} : vector<1x1x16x16xi32>
    %c2_i32_99 = arith.constant 2 : i32
    %245 = vector.broadcast %c2_i32_99 : i32 to vector<1x1x16x16xi32>
    %246 = arith.cmpi sge, %244, %245 : vector<1x1x16x16xi32>
    %cst_100 = arith.constant 1.000000e+09 : f32
    %247 = vector.broadcast %cst_100 : f32 to vector<1x1x16x16xf32>
    %248 = arith.select %246, %243, %247 : vector<1x1x16x16xi1>, vector<1x1x16x16xf32>
    %249 = arith.minimumf %242, %248 : vector<1x1x16x16xf32>
    %c14_i32_101 = arith.constant 14 : i32
    %250 = tpu.dynamic_rotate %249 by %c14_i32_101 dim 2 : vector<1x1x16x16xf32>, i32 -> vector<1x1x16x16xf32>
    %251 = tpu.iota {dimensions = array<i32: 2>} : vector<1x1x16x16xi32>
    %c14_i32_102 = arith.constant 14 : i32
    %252 = vector.broadcast %c14_i32_102 : i32 to vector<1x1x16x16xi32>
    %253 = arith.cmpi slt, %251, %252 : vector<1x1x16x16xi32>
    %cst_103 = arith.constant 1.000000e+09 : f32
    %254 = vector.broadcast %cst_103 : f32 to vector<1x1x16x16xf32>
    %255 = arith.select %253, %250, %254 : vector<1x1x16x16xi1>, vector<1x1x16x16xf32>
    %256 = arith.minimumf %249, %255 : vector<1x1x16x16xf32>
    %c2_i32_104 = arith.constant 2 : i32
    %257 = tpu.dynamic_rotate %256 by %c2_i32_104 dim 2 : vector<1x1x16x16xf32>, i32 -> vector<1x1x16x16xf32>
    %258 = tpu.iota {dimensions = array<i32: 2>} : vector<1x1x16x16xi32>
    %c2_i32_105 = arith.constant 2 : i32
    %259 = vector.broadcast %c2_i32_105 : i32 to vector<1x1x16x16xi32>
    %260 = arith.cmpi sge, %258, %259 : vector<1x1x16x16xi32>
    %cst_106 = arith.constant 1.000000e+09 : f32
    %261 = vector.broadcast %cst_106 : f32 to vector<1x1x16x16xf32>
    %262 = arith.select %260, %257, %261 : vector<1x1x16x16xi1>, vector<1x1x16x16xf32>
    %263 = arith.minimumf %256, %262 : vector<1x1x16x16xf32>
    %c12_i32 = arith.constant 12 : i32
    %264 = tpu.dynamic_rotate %263 by %c12_i32 dim 3 : vector<1x1x16x16xf32>, i32 -> vector<1x1x16x16xf32>
    %265 = tpu.iota {dimensions = array<i32: 3>} : vector<1x1x16x16xi32>
    %c12_i32_107 = arith.constant 12 : i32
    %266 = vector.broadcast %c12_i32_107 : i32 to vector<1x1x16x16xi32>
    %267 = arith.cmpi slt, %265, %266 : vector<1x1x16x16xi32>
    %cst_108 = arith.constant 1.000000e+09 : f32
    %268 = vector.broadcast %cst_108 : f32 to vector<1x1x16x16xf32>
    %269 = arith.select %267, %264, %268 : vector<1x1x16x16xi1>, vector<1x1x16x16xf32>
    %270 = arith.minimumf %263, %269 : vector<1x1x16x16xf32>
    %c4_i32 = arith.constant 4 : i32
    %271 = tpu.dynamic_rotate %270 by %c4_i32 dim 3 : vector<1x1x16x16xf32>, i32 -> vector<1x1x16x16xf32>
    %272 = tpu.iota {dimensions = array<i32: 3>} : vector<1x1x16x16xi32>
    %c4_i32_109 = arith.constant 4 : i32
    %273 = vector.broadcast %c4_i32_109 : i32 to vector<1x1x16x16xi32>
    %274 = arith.cmpi sge, %272, %273 : vector<1x1x16x16xi32>
    %cst_110 = arith.constant 1.000000e+09 : f32
    %275 = vector.broadcast %cst_110 : f32 to vector<1x1x16x16xf32>
    %276 = arith.select %274, %271, %275 : vector<1x1x16x16xi1>, vector<1x1x16x16xf32>
    %277 = arith.minimumf %270, %276 : vector<1x1x16x16xf32>
    %c12_i32_111 = arith.constant 12 : i32
    %278 = tpu.dynamic_rotate %277 by %c12_i32_111 dim 2 : vector<1x1x16x16xf32>, i32 -> vector<1x1x16x16xf32>
    %279 = tpu.iota {dimensions = array<i32: 2>} : vector<1x1x16x16xi32>
    %c12_i32_112 = arith.constant 12 : i32
    %280 = vector.broadcast %c12_i32_112 : i32 to vector<1x1x16x16xi32>
    %281 = arith.cmpi slt, %279, %280 : vector<1x1x16x16xi32>
    %cst_113 = arith.constant 1.000000e+09 : f32
    %282 = vector.broadcast %cst_113 : f32 to vector<1x1x16x16xf32>
    %283 = arith.select %281, %278, %282 : vector<1x1x16x16xi1>, vector<1x1x16x16xf32>
    %284 = arith.minimumf %277, %283 : vector<1x1x16x16xf32>
    %c4_i32_114 = arith.constant 4 : i32
    %285 = tpu.dynamic_rotate %284 by %c4_i32_114 dim 2 : vector<1x1x16x16xf32>, i32 -> vector<1x1x16x16xf32>
    %286 = tpu.iota {dimensions = array<i32: 2>} : vector<1x1x16x16xi32>
    %c4_i32_115 = arith.constant 4 : i32
    %287 = vector.broadcast %c4_i32_115 : i32 to vector<1x1x16x16xi32>
    %288 = arith.cmpi sge, %286, %287 : vector<1x1x16x16xi32>
    %cst_116 = arith.constant 1.000000e+09 : f32
    %289 = vector.broadcast %cst_116 : f32 to vector<1x1x16x16xf32>
    %290 = arith.select %288, %285, %289 : vector<1x1x16x16xi1>, vector<1x1x16x16xf32>
    %291 = arith.minimumf %284, %290 : vector<1x1x16x16xf32>
    %c15_i32_117 = arith.constant 15 : i32
    %292 = tpu.dynamic_rotate %291 by %c15_i32_117 dim 3 : vector<1x1x16x16xf32>, i32 -> vector<1x1x16x16xf32>
    %293 = tpu.iota {dimensions = array<i32: 3>} : vector<1x1x16x16xi32>
    %c15_i32_118 = arith.constant 15 : i32
    %294 = vector.broadcast %c15_i32_118 : i32 to vector<1x1x16x16xi32>
    %295 = arith.cmpi slt, %293, %294 : vector<1x1x16x16xi32>
    %cst_119 = arith.constant 1.000000e+09 : f32
    %296 = vector.broadcast %cst_119 : f32 to vector<1x1x16x16xf32>
    %297 = arith.select %295, %292, %296 : vector<1x1x16x16xi1>, vector<1x1x16x16xf32>
    %298 = arith.minimumf %291, %297 : vector<1x1x16x16xf32>
    %c1_i32_120 = arith.constant 1 : i32
    %299 = tpu.dynamic_rotate %298 by %c1_i32_120 dim 3 : vector<1x1x16x16xf32>, i32 -> vector<1x1x16x16xf32>
    %300 = tpu.iota {dimensions = array<i32: 3>} : vector<1x1x16x16xi32>
    %c1_i32_121 = arith.constant 1 : i32
    %301 = vector.broadcast %c1_i32_121 : i32 to vector<1x1x16x16xi32>
    %302 = arith.cmpi sge, %300, %301 : vector<1x1x16x16xi32>
    %cst_122 = arith.constant 1.000000e+09 : f32
    %303 = vector.broadcast %cst_122 : f32 to vector<1x1x16x16xf32>
    %304 = arith.select %302, %299, %303 : vector<1x1x16x16xi1>, vector<1x1x16x16xf32>
    %305 = arith.minimumf %298, %304 : vector<1x1x16x16xf32>
    %c15_i32_123 = arith.constant 15 : i32
    %306 = tpu.dynamic_rotate %305 by %c15_i32_123 dim 2 : vector<1x1x16x16xf32>, i32 -> vector<1x1x16x16xf32>
    %307 = tpu.iota {dimensions = array<i32: 2>} : vector<1x1x16x16xi32>
    %c15_i32_124 = arith.constant 15 : i32
    %308 = vector.broadcast %c15_i32_124 : i32 to vector<1x1x16x16xi32>
    %309 = arith.cmpi slt, %307, %308 : vector<1x1x16x16xi32>
    %cst_125 = arith.constant 1.000000e+09 : f32
    %310 = vector.broadcast %cst_125 : f32 to vector<1x1x16x16xf32>
    %311 = arith.select %309, %306, %310 : vector<1x1x16x16xi1>, vector<1x1x16x16xf32>
    %312 = arith.minimumf %305, %311 : vector<1x1x16x16xf32>
    %c1_i32_126 = arith.constant 1 : i32
    %313 = tpu.dynamic_rotate %312 by %c1_i32_126 dim 2 : vector<1x1x16x16xf32>, i32 -> vector<1x1x16x16xf32>
    %314 = tpu.iota {dimensions = array<i32: 2>} : vector<1x1x16x16xi32>
    %c1_i32_127 = arith.constant 1 : i32
    %315 = vector.broadcast %c1_i32_127 : i32 to vector<1x1x16x16xi32>
    %316 = arith.cmpi sge, %314, %315 : vector<1x1x16x16xi32>
    %cst_128 = arith.constant 1.000000e+09 : f32
    %317 = vector.broadcast %cst_128 : f32 to vector<1x1x16x16xf32>
    %318 = arith.select %316, %313, %317 : vector<1x1x16x16xi1>, vector<1x1x16x16xf32>
    %319 = arith.minimumf %312, %318 : vector<1x1x16x16xf32>
    %cst_129 = arith.constant 8.000000e+00 : f32
    %320 = vector.broadcast %cst_129 : f32 to vector<1x1x16x16xf32>
    %321 = arith.addf %319, %320 : vector<1x1x16x16xf32>
    %322 = arith.minimumf %207, %321 : vector<1x1x16x16xf32>
    %c15_i32_130 = arith.constant 15 : i32
    %323 = tpu.dynamic_rotate %322 by %c15_i32_130 dim 3 : vector<1x1x16x16xf32>, i32 -> vector<1x1x16x16xf32>
    %324 = tpu.iota {dimensions = array<i32: 3>} : vector<1x1x16x16xi32>
    %c15_i32_131 = arith.constant 15 : i32
    %325 = vector.broadcast %c15_i32_131 : i32 to vector<1x1x16x16xi32>
    %326 = arith.cmpi slt, %324, %325 : vector<1x1x16x16xi32>
    %cst_132 = arith.constant 1.000000e+09 : f32
    %327 = vector.broadcast %cst_132 : f32 to vector<1x1x16x16xf32>
    %328 = arith.select %326, %323, %327 : vector<1x1x16x16xi1>, vector<1x1x16x16xf32>
    %329 = arith.minimumf %322, %328 : vector<1x1x16x16xf32>
    %c1_i32_133 = arith.constant 1 : i32
    %330 = tpu.dynamic_rotate %329 by %c1_i32_133 dim 3 : vector<1x1x16x16xf32>, i32 -> vector<1x1x16x16xf32>
    %331 = tpu.iota {dimensions = array<i32: 3>} : vector<1x1x16x16xi32>
    %c1_i32_134 = arith.constant 1 : i32
    %332 = vector.broadcast %c1_i32_134 : i32 to vector<1x1x16x16xi32>
    %333 = arith.cmpi sge, %331, %332 : vector<1x1x16x16xi32>
    %cst_135 = arith.constant 1.000000e+09 : f32
    %334 = vector.broadcast %cst_135 : f32 to vector<1x1x16x16xf32>
    %335 = arith.select %333, %330, %334 : vector<1x1x16x16xi1>, vector<1x1x16x16xf32>
    %336 = arith.minimumf %329, %335 : vector<1x1x16x16xf32>
    %c15_i32_136 = arith.constant 15 : i32
    %337 = tpu.dynamic_rotate %336 by %c15_i32_136 dim 2 : vector<1x1x16x16xf32>, i32 -> vector<1x1x16x16xf32>
    %338 = tpu.iota {dimensions = array<i32: 2>} : vector<1x1x16x16xi32>
    %c15_i32_137 = arith.constant 15 : i32
    %339 = vector.broadcast %c15_i32_137 : i32 to vector<1x1x16x16xi32>
    %340 = arith.cmpi slt, %338, %339 : vector<1x1x16x16xi32>
    %cst_138 = arith.constant 1.000000e+09 : f32
    %341 = vector.broadcast %cst_138 : f32 to vector<1x1x16x16xf32>
    %342 = arith.select %340, %337, %341 : vector<1x1x16x16xi1>, vector<1x1x16x16xf32>
    %343 = arith.minimumf %336, %342 : vector<1x1x16x16xf32>
    %c1_i32_139 = arith.constant 1 : i32
    %344 = tpu.dynamic_rotate %343 by %c1_i32_139 dim 2 : vector<1x1x16x16xf32>, i32 -> vector<1x1x16x16xf32>
    %345 = tpu.iota {dimensions = array<i32: 2>} : vector<1x1x16x16xi32>
    %c1_i32_140 = arith.constant 1 : i32
    %346 = vector.broadcast %c1_i32_140 : i32 to vector<1x1x16x16xi32>
    %347 = arith.cmpi sge, %345, %346 : vector<1x1x16x16xi32>
    %cst_141 = arith.constant 1.000000e+09 : f32
    %348 = vector.broadcast %cst_141 : f32 to vector<1x1x16x16xf32>
    %349 = arith.select %347, %344, %348 : vector<1x1x16x16xi1>, vector<1x1x16x16xf32>
    %350 = arith.minimumf %343, %349 : vector<1x1x16x16xf32>
    %c14_i32_142 = arith.constant 14 : i32
    %351 = tpu.dynamic_rotate %350 by %c14_i32_142 dim 3 : vector<1x1x16x16xf32>, i32 -> vector<1x1x16x16xf32>
    %352 = tpu.iota {dimensions = array<i32: 3>} : vector<1x1x16x16xi32>
    %c14_i32_143 = arith.constant 14 : i32
    %353 = vector.broadcast %c14_i32_143 : i32 to vector<1x1x16x16xi32>
    %354 = arith.cmpi slt, %352, %353 : vector<1x1x16x16xi32>
    %cst_144 = arith.constant 1.000000e+09 : f32
    %355 = vector.broadcast %cst_144 : f32 to vector<1x1x16x16xf32>
    %356 = arith.select %354, %351, %355 : vector<1x1x16x16xi1>, vector<1x1x16x16xf32>
    %357 = arith.minimumf %350, %356 : vector<1x1x16x16xf32>
    %c2_i32_145 = arith.constant 2 : i32
    %358 = tpu.dynamic_rotate %357 by %c2_i32_145 dim 3 : vector<1x1x16x16xf32>, i32 -> vector<1x1x16x16xf32>
    %359 = tpu.iota {dimensions = array<i32: 3>} : vector<1x1x16x16xi32>
    %c2_i32_146 = arith.constant 2 : i32
    %360 = vector.broadcast %c2_i32_146 : i32 to vector<1x1x16x16xi32>
    %361 = arith.cmpi sge, %359, %360 : vector<1x1x16x16xi32>
    %cst_147 = arith.constant 1.000000e+09 : f32
    %362 = vector.broadcast %cst_147 : f32 to vector<1x1x16x16xf32>
    %363 = arith.select %361, %358, %362 : vector<1x1x16x16xi1>, vector<1x1x16x16xf32>
    %364 = arith.minimumf %357, %363 : vector<1x1x16x16xf32>
    %c14_i32_148 = arith.constant 14 : i32
    %365 = tpu.dynamic_rotate %364 by %c14_i32_148 dim 2 : vector<1x1x16x16xf32>, i32 -> vector<1x1x16x16xf32>
    %366 = tpu.iota {dimensions = array<i32: 2>} : vector<1x1x16x16xi32>
    %c14_i32_149 = arith.constant 14 : i32
    %367 = vector.broadcast %c14_i32_149 : i32 to vector<1x1x16x16xi32>
    %368 = arith.cmpi slt, %366, %367 : vector<1x1x16x16xi32>
    %cst_150 = arith.constant 1.000000e+09 : f32
    %369 = vector.broadcast %cst_150 : f32 to vector<1x1x16x16xf32>
    %370 = arith.select %368, %365, %369 : vector<1x1x16x16xi1>, vector<1x1x16x16xf32>
    %371 = arith.minimumf %364, %370 : vector<1x1x16x16xf32>
    %c2_i32_151 = arith.constant 2 : i32
    %372 = tpu.dynamic_rotate %371 by %c2_i32_151 dim 2 : vector<1x1x16x16xf32>, i32 -> vector<1x1x16x16xf32>
    %373 = tpu.iota {dimensions = array<i32: 2>} : vector<1x1x16x16xi32>
    %c2_i32_152 = arith.constant 2 : i32
    %374 = vector.broadcast %c2_i32_152 : i32 to vector<1x1x16x16xi32>
    %375 = arith.cmpi sge, %373, %374 : vector<1x1x16x16xi32>
    %cst_153 = arith.constant 1.000000e+09 : f32
    %376 = vector.broadcast %cst_153 : f32 to vector<1x1x16x16xf32>
    %377 = arith.select %375, %372, %376 : vector<1x1x16x16xi1>, vector<1x1x16x16xf32>
    %378 = arith.minimumf %371, %377 : vector<1x1x16x16xf32>
    %c12_i32_154 = arith.constant 12 : i32
    %379 = tpu.dynamic_rotate %378 by %c12_i32_154 dim 3 : vector<1x1x16x16xf32>, i32 -> vector<1x1x16x16xf32>
    %380 = tpu.iota {dimensions = array<i32: 3>} : vector<1x1x16x16xi32>
    %c12_i32_155 = arith.constant 12 : i32
    %381 = vector.broadcast %c12_i32_155 : i32 to vector<1x1x16x16xi32>
    %382 = arith.cmpi slt, %380, %381 : vector<1x1x16x16xi32>
    %cst_156 = arith.constant 1.000000e+09 : f32
    %383 = vector.broadcast %cst_156 : f32 to vector<1x1x16x16xf32>
    %384 = arith.select %382, %379, %383 : vector<1x1x16x16xi1>, vector<1x1x16x16xf32>
    %385 = arith.minimumf %378, %384 : vector<1x1x16x16xf32>
    %c4_i32_157 = arith.constant 4 : i32
    %386 = tpu.dynamic_rotate %385 by %c4_i32_157 dim 3 : vector<1x1x16x16xf32>, i32 -> vector<1x1x16x16xf32>
    %387 = tpu.iota {dimensions = array<i32: 3>} : vector<1x1x16x16xi32>
    %c4_i32_158 = arith.constant 4 : i32
    %388 = vector.broadcast %c4_i32_158 : i32 to vector<1x1x16x16xi32>
    %389 = arith.cmpi sge, %387, %388 : vector<1x1x16x16xi32>
    %cst_159 = arith.constant 1.000000e+09 : f32
    %390 = vector.broadcast %cst_159 : f32 to vector<1x1x16x16xf32>
    %391 = arith.select %389, %386, %390 : vector<1x1x16x16xi1>, vector<1x1x16x16xf32>
    %392 = arith.minimumf %385, %391 : vector<1x1x16x16xf32>
    %c12_i32_160 = arith.constant 12 : i32
    %393 = tpu.dynamic_rotate %392 by %c12_i32_160 dim 2 : vector<1x1x16x16xf32>, i32 -> vector<1x1x16x16xf32>
    %394 = tpu.iota {dimensions = array<i32: 2>} : vector<1x1x16x16xi32>
    %c12_i32_161 = arith.constant 12 : i32
    %395 = vector.broadcast %c12_i32_161 : i32 to vector<1x1x16x16xi32>
    %396 = arith.cmpi slt, %394, %395 : vector<1x1x16x16xi32>
    %cst_162 = arith.constant 1.000000e+09 : f32
    %397 = vector.broadcast %cst_162 : f32 to vector<1x1x16x16xf32>
    %398 = arith.select %396, %393, %397 : vector<1x1x16x16xi1>, vector<1x1x16x16xf32>
    %399 = arith.minimumf %392, %398 : vector<1x1x16x16xf32>
    %c4_i32_163 = arith.constant 4 : i32
    %400 = tpu.dynamic_rotate %399 by %c4_i32_163 dim 2 : vector<1x1x16x16xf32>, i32 -> vector<1x1x16x16xf32>
    %401 = tpu.iota {dimensions = array<i32: 2>} : vector<1x1x16x16xi32>
    %c4_i32_164 = arith.constant 4 : i32
    %402 = vector.broadcast %c4_i32_164 : i32 to vector<1x1x16x16xi32>
    %403 = arith.cmpi sge, %401, %402 : vector<1x1x16x16xi32>
    %cst_165 = arith.constant 1.000000e+09 : f32
    %404 = vector.broadcast %cst_165 : f32 to vector<1x1x16x16xf32>
    %405 = arith.select %403, %400, %404 : vector<1x1x16x16xi1>, vector<1x1x16x16xf32>
    %406 = arith.minimumf %399, %405 : vector<1x1x16x16xf32>
    %c8_i32 = arith.constant 8 : i32
    %407 = tpu.dynamic_rotate %406 by %c8_i32 dim 3 : vector<1x1x16x16xf32>, i32 -> vector<1x1x16x16xf32>
    %408 = tpu.iota {dimensions = array<i32: 3>} : vector<1x1x16x16xi32>
    %c8_i32_166 = arith.constant 8 : i32
    %409 = vector.broadcast %c8_i32_166 : i32 to vector<1x1x16x16xi32>
    %410 = arith.cmpi slt, %408, %409 : vector<1x1x16x16xi32>
    %cst_167 = arith.constant 1.000000e+09 : f32
    %411 = vector.broadcast %cst_167 : f32 to vector<1x1x16x16xf32>
    %412 = arith.select %410, %407, %411 : vector<1x1x16x16xi1>, vector<1x1x16x16xf32>
    %413 = arith.minimumf %406, %412 : vector<1x1x16x16xf32>
    %c8_i32_168 = arith.constant 8 : i32
    %414 = tpu.dynamic_rotate %413 by %c8_i32_168 dim 3 : vector<1x1x16x16xf32>, i32 -> vector<1x1x16x16xf32>
    %415 = tpu.iota {dimensions = array<i32: 3>} : vector<1x1x16x16xi32>
    %c8_i32_169 = arith.constant 8 : i32
    %416 = vector.broadcast %c8_i32_169 : i32 to vector<1x1x16x16xi32>
    %417 = arith.cmpi sge, %415, %416 : vector<1x1x16x16xi32>
    %cst_170 = arith.constant 1.000000e+09 : f32
    %418 = vector.broadcast %cst_170 : f32 to vector<1x1x16x16xf32>
    %419 = arith.select %417, %414, %418 : vector<1x1x16x16xi1>, vector<1x1x16x16xf32>
    %420 = arith.minimumf %413, %419 : vector<1x1x16x16xf32>
    %c8_i32_171 = arith.constant 8 : i32
    %421 = tpu.dynamic_rotate %420 by %c8_i32_171 dim 2 : vector<1x1x16x16xf32>, i32 -> vector<1x1x16x16xf32>
    %422 = tpu.iota {dimensions = array<i32: 2>} : vector<1x1x16x16xi32>
    %c8_i32_172 = arith.constant 8 : i32
    %423 = vector.broadcast %c8_i32_172 : i32 to vector<1x1x16x16xi32>
    %424 = arith.cmpi slt, %422, %423 : vector<1x1x16x16xi32>
    %cst_173 = arith.constant 1.000000e+09 : f32
    %425 = vector.broadcast %cst_173 : f32 to vector<1x1x16x16xf32>
    %426 = arith.select %424, %421, %425 : vector<1x1x16x16xi1>, vector<1x1x16x16xf32>
    %427 = arith.minimumf %420, %426 : vector<1x1x16x16xf32>
    %c8_i32_174 = arith.constant 8 : i32
    %428 = tpu.dynamic_rotate %427 by %c8_i32_174 dim 2 : vector<1x1x16x16xf32>, i32 -> vector<1x1x16x16xf32>
    %429 = tpu.iota {dimensions = array<i32: 2>} : vector<1x1x16x16xi32>
    %c8_i32_175 = arith.constant 8 : i32
    %430 = vector.broadcast %c8_i32_175 : i32 to vector<1x1x16x16xi32>
    %431 = arith.cmpi sge, %429, %430 : vector<1x1x16x16xi32>
    %cst_176 = arith.constant 1.000000e+09 : f32
    %432 = vector.broadcast %cst_176 : f32 to vector<1x1x16x16xf32>
    %433 = arith.select %431, %428, %432 : vector<1x1x16x16xi1>, vector<1x1x16x16xf32>
    %434 = arith.minimumf %427, %433 : vector<1x1x16x16xf32>
    %c15_i32_177 = arith.constant 15 : i32
    %435 = tpu.dynamic_rotate %434 by %c15_i32_177 dim 3 : vector<1x1x16x16xf32>, i32 -> vector<1x1x16x16xf32>
    %436 = tpu.iota {dimensions = array<i32: 3>} : vector<1x1x16x16xi32>
    %c15_i32_178 = arith.constant 15 : i32
    %437 = vector.broadcast %c15_i32_178 : i32 to vector<1x1x16x16xi32>
    %438 = arith.cmpi slt, %436, %437 : vector<1x1x16x16xi32>
    %cst_179 = arith.constant 1.000000e+09 : f32
    %439 = vector.broadcast %cst_179 : f32 to vector<1x1x16x16xf32>
    %440 = arith.select %438, %435, %439 : vector<1x1x16x16xi1>, vector<1x1x16x16xf32>
    %441 = arith.minimumf %434, %440 : vector<1x1x16x16xf32>
    %c1_i32_180 = arith.constant 1 : i32
    %442 = tpu.dynamic_rotate %441 by %c1_i32_180 dim 3 : vector<1x1x16x16xf32>, i32 -> vector<1x1x16x16xf32>
    %443 = tpu.iota {dimensions = array<i32: 3>} : vector<1x1x16x16xi32>
    %c1_i32_181 = arith.constant 1 : i32
    %444 = vector.broadcast %c1_i32_181 : i32 to vector<1x1x16x16xi32>
    %445 = arith.cmpi sge, %443, %444 : vector<1x1x16x16xi32>
    %cst_182 = arith.constant 1.000000e+09 : f32
    %446 = vector.broadcast %cst_182 : f32 to vector<1x1x16x16xf32>
    %447 = arith.select %445, %442, %446 : vector<1x1x16x16xi1>, vector<1x1x16x16xf32>
    %448 = arith.minimumf %441, %447 : vector<1x1x16x16xf32>
    %c15_i32_183 = arith.constant 15 : i32
    %449 = tpu.dynamic_rotate %448 by %c15_i32_183 dim 2 : vector<1x1x16x16xf32>, i32 -> vector<1x1x16x16xf32>
    %450 = tpu.iota {dimensions = array<i32: 2>} : vector<1x1x16x16xi32>
    %c15_i32_184 = arith.constant 15 : i32
    %451 = vector.broadcast %c15_i32_184 : i32 to vector<1x1x16x16xi32>
    %452 = arith.cmpi slt, %450, %451 : vector<1x1x16x16xi32>
    %cst_185 = arith.constant 1.000000e+09 : f32
    %453 = vector.broadcast %cst_185 : f32 to vector<1x1x16x16xf32>
    %454 = arith.select %452, %449, %453 : vector<1x1x16x16xi1>, vector<1x1x16x16xf32>
    %455 = arith.minimumf %448, %454 : vector<1x1x16x16xf32>
    %c1_i32_186 = arith.constant 1 : i32
    %456 = tpu.dynamic_rotate %455 by %c1_i32_186 dim 2 : vector<1x1x16x16xf32>, i32 -> vector<1x1x16x16xf32>
    %457 = tpu.iota {dimensions = array<i32: 2>} : vector<1x1x16x16xi32>
    %c1_i32_187 = arith.constant 1 : i32
    %458 = vector.broadcast %c1_i32_187 : i32 to vector<1x1x16x16xi32>
    %459 = arith.cmpi sge, %457, %458 : vector<1x1x16x16xi32>
    %cst_188 = arith.constant 1.000000e+09 : f32
    %460 = vector.broadcast %cst_188 : f32 to vector<1x1x16x16xf32>
    %461 = arith.select %459, %456, %460 : vector<1x1x16x16xi1>, vector<1x1x16x16xf32>
    %462 = arith.minimumf %455, %461 : vector<1x1x16x16xf32>
    %cst_189 = arith.constant 1.600000e+01 : f32
    %463 = vector.broadcast %cst_189 : f32 to vector<1x1x16x16xf32>
    %464 = arith.addf %462, %463 : vector<1x1x16x16xf32>
    %465 = arith.minimumf %322, %464 : vector<1x1x16x16xf32>
    %cst_190 = arith.constant 1.600000e+01 : f32
    %466 = vector.broadcast %cst_190 : f32 to vector<1x1x16x16xf32>
    %467 = arith.cmpf ole, %465, %466 : vector<1x1x16x16xf32>
    %cst_191 = arith.constant 3.500000e+01 : f32
    %468 = vector.broadcast %cst_191 : f32 to vector<1x1x16x16xf32>
    %469 = arith.select %467, %465, %468 : vector<1x1x16x16xi1>, vector<1x1x16x16xf32>
    %c0_192 = arith.constant 0 : index
    %c0_193 = arith.constant 0 : index
    %c0_194 = arith.constant 0 : index
    %c0_195 = arith.constant 0 : index
    %470 = vector.load %arg2[%c0_192, %c0_193, %c0_194, %c0_195] : memref<1x1x16x16xf32, #tpu.memory_space<vmem>>, vector<1x1x16x16xf32>
    tpu.vector_store %arg2[%c0_192, %c0_193, %c0_194, %c0_195], %469 {strides = array<i32>} : memref<1x1x16x16xf32, #tpu.memory_space<vmem>>, vector<1x1x16x16xf32>,
    return
  }
  func.func @transform_0(%arg0: i32) -> (i32, i32, i32, i32) {
    %c0_i32 = arith.constant 0 : i32
    %c0_i32_0 = arith.constant 0 : i32
    %c0_i32_1 = arith.constant 0 : i32
    %c0_i32_2 = arith.constant 0 : i32
    return %arg0, %c0_i32, %c0_i32_0, %c0_i32_1 : i32, i32, i32, i32
  }
  func.func @transform_1(%arg0: i32) -> (i32, i32, i32, i32) {
    %c0_i32 = arith.constant 0 : i32
    %c0_i32_0 = arith.constant 0 : i32
    %c0_i32_1 = arith.constant 0 : i32
    %c0_i32_2 = arith.constant 0 : i32
    return %arg0, %c0_i32, %c0_i32_0, %c0_i32_1 : i32, i32, i32, i32
  }
}

module attributes {stable_mosaic.version = 11 : i64} {
  func.func @_loss_kernel(%arg0: i32, %arg1: memref<1x8x16x16xf32, #tpu.memory_space<vmem>>, %arg2: memref<1x1x16x16xi32, #tpu.memory_space<vmem>>, %arg3: memref<1x1x16x16xf32, #tpu.memory_space<vmem>>, %arg4: memref<1x1x16x16xf32, #tpu.memory_space<vmem>>, %arg5: memref<1x8x128xf32, #tpu.memory_space<vmem>>) attributes {dimension_semantics = [#tpu.dimension_semantics<parallel>], iteration_bounds = array<i64: 2>, scalar_prefetch = 0 : i64, scratch_operands = 0 : i64, tpu.core_type = #tpu.core_type<tc>, window_params = [{transform_indices = @transform_0, window_bounds = array<i64: 1, 8, 16, 16>}, {transform_indices = @transform_1, window_bounds = array<i64: 1, 1, 16, 16>}, {transform_indices = @transform_2, window_bounds = array<i64: 1, 1, 16, 16>}, {transform_indices = @transform_3, window_bounds = array<i64: 1, 1, 16, 16>}, {transform_indices = @transform_4, window_bounds = array<i64: 1, 8, 128>}]} {
    %c0 = arith.constant 0 : index
    %c0_0 = arith.constant 0 : index
    %c0_1 = arith.constant 0 : index
    %c0_2 = arith.constant 0 : index
    %0 = vector.load %arg1[%c0, %c0_0, %c0_1, %c0_2] : memref<1x8x16x16xf32, #tpu.memory_space<vmem>>, vector<1x8x16x16xf32>
    %c0_3 = arith.constant 0 : index
    %c0_4 = arith.constant 0 : index
    %c0_5 = arith.constant 0 : index
    %c0_6 = arith.constant 0 : index
    %1 = vector.load %arg2[%c0_3, %c0_4, %c0_5, %c0_6] : memref<1x1x16x16xi32, #tpu.memory_space<vmem>>, vector<1x1x16x16xi32>
    %c0_7 = arith.constant 0 : index
    %c0_8 = arith.constant 0 : index
    %c0_9 = arith.constant 0 : index
    %c0_10 = arith.constant 0 : index
    %2 = vector.load %arg3[%c0_7, %c0_8, %c0_9, %c0_10] : memref<1x1x16x16xf32, #tpu.memory_space<vmem>>, vector<1x1x16x16xf32>
    %c0_11 = arith.constant 0 : index
    %c0_12 = arith.constant 0 : index
    %c0_13 = arith.constant 0 : index
    %c0_14 = arith.constant 0 : index
    %3 = vector.load %arg4[%c0_11, %c0_12, %c0_13, %c0_14] : memref<1x1x16x16xf32, #tpu.memory_space<vmem>>, vector<1x1x16x16xf32>
    %c15_i32 = arith.constant 15 : i32
    %4 = tpu.dynamic_rotate %3 by %c15_i32 dim 3 : vector<1x1x16x16xf32>, i32 -> vector<1x1x16x16xf32>
    %5 = tpu.iota {dimensions = array<i32: 3>} : vector<1x1x16x16xi32>
    %c15_i32_15 = arith.constant 15 : i32
    %6 = vector.broadcast %c15_i32_15 : i32 to vector<1x1x16x16xi32>
    %7 = arith.cmpi slt, %5, %6 : vector<1x1x16x16xi32>
    %cst = arith.constant 0.000000e+00 : f32
    %8 = vector.broadcast %cst : f32 to vector<1x1x16x16xf32>
    %9 = arith.select %7, %4, %8 : vector<1x1x16x16xi1>, vector<1x1x16x16xf32>
    %10 = arith.addf %3, %9 : vector<1x1x16x16xf32>
    %c1_i32 = arith.constant 1 : i32
    %11 = tpu.dynamic_rotate %3 by %c1_i32 dim 3 : vector<1x1x16x16xf32>, i32 -> vector<1x1x16x16xf32>
    %12 = tpu.iota {dimensions = array<i32: 3>} : vector<1x1x16x16xi32>
    %c1_i32_16 = arith.constant 1 : i32
    %13 = vector.broadcast %c1_i32_16 : i32 to vector<1x1x16x16xi32>
    %14 = arith.cmpi sge, %12, %13 : vector<1x1x16x16xi32>
    %cst_17 = arith.constant 0.000000e+00 : f32
    %15 = vector.broadcast %cst_17 : f32 to vector<1x1x16x16xf32>
    %16 = arith.select %14, %11, %15 : vector<1x1x16x16xi1>, vector<1x1x16x16xf32>
    %17 = arith.addf %10, %16 : vector<1x1x16x16xf32>
    %c15_i32_18 = arith.constant 15 : i32
    %18 = tpu.dynamic_rotate %17 by %c15_i32_18 dim 2 : vector<1x1x16x16xf32>, i32 -> vector<1x1x16x16xf32>
    %19 = tpu.iota {dimensions = array<i32: 2>} : vector<1x1x16x16xi32>
    %c15_i32_19 = arith.constant 15 : i32
    %20 = vector.broadcast %c15_i32_19 : i32 to vector<1x1x16x16xi32>
    %21 = arith.cmpi slt, %19, %20 : vector<1x1x16x16xi32>
    %cst_20 = arith.constant 0.000000e+00 : f32
    %22 = vector.broadcast %cst_20 : f32 to vector<1x1x16x16xf32>
    %23 = arith.select %21, %18, %22 : vector<1x1x16x16xi1>, vector<1x1x16x16xf32>
    %24 = arith.addf %17, %23 : vector<1x1x16x16xf32>
    %c1_i32_21 = arith.constant 1 : i32
    %25 = tpu.dynamic_rotate %17 by %c1_i32_21 dim 2 : vector<1x1x16x16xf32>, i32 -> vector<1x1x16x16xf32>
    %26 = tpu.iota {dimensions = array<i32: 2>} : vector<1x1x16x16xi32>
    %c1_i32_22 = arith.constant 1 : i32
    %27 = vector.broadcast %c1_i32_22 : i32 to vector<1x1x16x16xi32>
    %28 = arith.cmpi sge, %26, %27 : vector<1x1x16x16xi32>
    %cst_23 = arith.constant 0.000000e+00 : f32
    %29 = vector.broadcast %cst_23 : f32 to vector<1x1x16x16xf32>
    %30 = arith.select %28, %25, %29 : vector<1x1x16x16xi1>, vector<1x1x16x16xf32>
    %31 = arith.addf %24, %30 : vector<1x1x16x16xf32>
    %cst_24 = arith.constant 0.000000e+00 : f32
    %32 = vector.broadcast %cst_24 : f32 to vector<1x1x16x16xf32>
    %33 = arith.cmpf ogt, %31, %32 : vector<1x1x16x16xf32>
    %cst_25 = arith.constant dense<0xFF800000> : vector<1x16x16xf32>
    %34 = vector.multi_reduction <maximumf>, %0, %cst_25 [1] : vector<1x8x16x16xf32> to vector<1x16x16xf32>
    %35 = vector.shape_cast %34 : vector<1x16x16xf32> to vector<1x1x16x16xf32>
    %36 = vector.broadcast %35 : vector<1x1x16x16xf32> to vector<1x8x16x16xf32>
    %37 = arith.subf %0, %36 : vector<1x8x16x16xf32>
    %38 = math.exp %37 : vector<1x8x16x16xf32>
    %cst_26 = arith.constant dense<0.000000e+00> : vector<1x16x16xf32>
    %39 = vector.multi_reduction <add>, %38, %cst_26 [1] : vector<1x8x16x16xf32> to vector<1x16x16xf32>
    %40 = vector.shape_cast %39 : vector<1x16x16xf32> to vector<1x1x16x16xf32>
    %41 = vector.broadcast %35 : vector<1x1x16x16xf32> to vector<1x8x16x16xf32>
    %42 = arith.subf %0, %41 : vector<1x8x16x16xf32>
    %43 = math.log %40 : vector<1x1x16x16xf32>
    %44 = vector.broadcast %43 : vector<1x1x16x16xf32> to vector<1x8x16x16xf32>
    %45 = arith.subf %42, %44 : vector<1x8x16x16xf32>
    %46 = vector.broadcast %40 : vector<1x1x16x16xf32> to vector<1x8x16x16xf32>
    %47 = arith.divf %38, %46 : vector<1x8x16x16xf32>
    %48 = arith.mulf %47, %45 : vector<1x8x16x16xf32>
    %cst_27 = arith.constant dense<0.000000e+00> : vector<1x16x16xf32>
    %49 = vector.multi_reduction <add>, %48, %cst_27 [1] : vector<1x8x16x16xf32> to vector<1x16x16xf32>
    %50 = vector.shape_cast %49 : vector<1x16x16xf32> to vector<1x1x16x16xf32>
    %cst_28 = arith.constant 1.000000e+09 : f32
    %51 = vector.broadcast %cst_28 : f32 to vector<1x1x16x16xf32>
    %c0_i32 = arith.constant 0 : i32
    %52 = vector.broadcast %c0_i32 : i32 to vector<1x1x16x16xi32>
    %cst_29 = arith.constant 0.000000e+00 : f32
    %53 = vector.broadcast %cst_29 : f32 to vector<1x1x16x16xf32>
    %cst_30 = arith.constant -1.000000e+09 : f32
    %54 = vector.broadcast %cst_30 : f32 to vector<1x1x16x16xf32>
    %cst_31 = arith.constant 0.000000e+00 : f32
    %55 = vector.broadcast %cst_31 : f32 to vector<1x1x16x16xf32>
    %c15_i32_32 = arith.constant 15 : i32
    %56 = tpu.dynamic_rotate %2 by %c15_i32_32 dim 2 : vector<1x1x16x16xf32>, i32 -> vector<1x1x16x16xf32>
    %57 = tpu.iota {dimensions = array<i32: 2>} : vector<1x1x16x16xi32>
    %c15_i32_33 = arith.constant 15 : i32
    %58 = vector.broadcast %c15_i32_33 : i32 to vector<1x1x16x16xi32>
    %59 = arith.cmpi slt, %57, %58 : vector<1x1x16x16xi32>
    %cst_34 = arith.constant 1.000000e+05 : f32
    %60 = vector.broadcast %cst_34 : f32 to vector<1x1x16x16xf32>
    %61 = arith.select %59, %56, %60 : vector<1x1x16x16xi1>, vector<1x1x16x16xf32>
    %62 = arith.cmpf olt, %61, %51 : vector<1x1x16x16xf32>
    %63 = arith.select %62, %61, %51 : vector<1x1x16x16xi1>, vector<1x1x16x16xf32>
    %c0_i32_35 = arith.constant 0 : i32
    %64 = vector.broadcast %c0_i32_35 : i32 to vector<1x1x16x16xi32>
    %65 = arith.select %62, %64, %52 : vector<1x1x16x16xi1>, vector<1x1x16x16xi32>
    %c15_i32_36 = arith.constant 15 : i32
    %66 = tpu.dynamic_rotate %47 by %c15_i32_36 dim 2 : vector<1x8x16x16xf32>, i32 -> vector<1x8x16x16xf32>
    %67 = tpu.iota {dimensions = array<i32: 2>} : vector<1x8x16x16xi32>
    %c15_i32_37 = arith.constant 15 : i32
    %68 = vector.broadcast %c15_i32_37 : i32 to vector<1x8x16x16xi32>
    %69 = arith.cmpi slt, %67, %68 : vector<1x8x16x16xi32>
    %70 = arith.select %69, %66, %47 : vector<1x8x16x16xi1>, vector<1x8x16x16xf32>
    %c15_i32_38 = arith.constant 15 : i32
    %71 = tpu.dynamic_rotate %50 by %c15_i32_38 dim 2 : vector<1x1x16x16xf32>, i32 -> vector<1x1x16x16xf32>
    %72 = tpu.iota {dimensions = array<i32: 2>} : vector<1x1x16x16xi32>
    %c15_i32_39 = arith.constant 15 : i32
    %73 = vector.broadcast %c15_i32_39 : i32 to vector<1x1x16x16xi32>
    %74 = arith.cmpi slt, %72, %73 : vector<1x1x16x16xi32>
    %75 = arith.select %74, %71, %50 : vector<1x1x16x16xi1>, vector<1x1x16x16xf32>
    %76 = arith.mulf %70, %45 : vector<1x8x16x16xf32>
    %cst_40 = arith.constant dense<0.000000e+00> : vector<1x16x16xf32>
    %77 = vector.multi_reduction <add>, %76, %cst_40 [1] : vector<1x8x16x16xf32> to vector<1x16x16xf32>
    %78 = vector.shape_cast %77 : vector<1x16x16xf32> to vector<1x1x16x16xf32>
    %79 = arith.subf %75, %78 : vector<1x1x16x16xf32>
    %80 = arith.select %62, %79, %53 : vector<1x1x16x16xi1>, vector<1x1x16x16xf32>
    %81 = arith.maximumf %54, %79 : vector<1x1x16x16xf32>
    %82 = arith.subf %54, %81 : vector<1x1x16x16xf32>
    %83 = math.exp %82 : vector<1x1x16x16xf32>
    %84 = arith.mulf %55, %83 : vector<1x1x16x16xf32>
    %85 = arith.subf %79, %81 : vector<1x1x16x16xf32>
    %86 = math.exp %85 : vector<1x1x16x16xf32>
    %87 = arith.addf %84, %86 : vector<1x1x16x16xf32>
    %c1_i32_41 = arith.constant 1 : i32
    %88 = tpu.dynamic_rotate %2 by %c1_i32_41 dim 2 : vector<1x1x16x16xf32>, i32 -> vector<1x1x16x16xf32>
    %89 = tpu.iota {dimensions = array<i32: 2>} : vector<1x1x16x16xi32>
    %c1_i32_42 = arith.constant 1 : i32
    %90 = vector.broadcast %c1_i32_42 : i32 to vector<1x1x16x16xi32>
    %91 = arith.cmpi sge, %89, %90 : vector<1x1x16x16xi32>
    %cst_43 = arith.constant 1.000000e+05 : f32
    %92 = vector.broadcast %cst_43 : f32 to vector<1x1x16x16xf32>
    %93 = arith.select %91, %88, %92 : vector<1x1x16x16xi1>, vector<1x1x16x16xf32>
    %94 = arith.cmpf olt, %93, %63 : vector<1x1x16x16xf32>
    %95 = arith.select %94, %93, %63 : vector<1x1x16x16xi1>, vector<1x1x16x16xf32>
    %c1_i32_44 = arith.constant 1 : i32
    %96 = vector.broadcast %c1_i32_44 : i32 to vector<1x1x16x16xi32>
    %97 = arith.select %94, %96, %65 : vector<1x1x16x16xi1>, vector<1x1x16x16xi32>
    %c1_i32_45 = arith.constant 1 : i32
    %98 = tpu.dynamic_rotate %47 by %c1_i32_45 dim 2 : vector<1x8x16x16xf32>, i32 -> vector<1x8x16x16xf32>
    %99 = tpu.iota {dimensions = array<i32: 2>} : vector<1x8x16x16xi32>
    %c1_i32_46 = arith.constant 1 : i32
    %100 = vector.broadcast %c1_i32_46 : i32 to vector<1x8x16x16xi32>
    %101 = arith.cmpi sge, %99, %100 : vector<1x8x16x16xi32>
    %102 = arith.select %101, %98, %47 : vector<1x8x16x16xi1>, vector<1x8x16x16xf32>
    %c1_i32_47 = arith.constant 1 : i32
    %103 = tpu.dynamic_rotate %50 by %c1_i32_47 dim 2 : vector<1x1x16x16xf32>, i32 -> vector<1x1x16x16xf32>
    %104 = tpu.iota {dimensions = array<i32: 2>} : vector<1x1x16x16xi32>
    %c1_i32_48 = arith.constant 1 : i32
    %105 = vector.broadcast %c1_i32_48 : i32 to vector<1x1x16x16xi32>
    %106 = arith.cmpi sge, %104, %105 : vector<1x1x16x16xi32>
    %107 = arith.select %106, %103, %50 : vector<1x1x16x16xi1>, vector<1x1x16x16xf32>
    %108 = arith.mulf %102, %45 : vector<1x8x16x16xf32>
    %cst_49 = arith.constant dense<0.000000e+00> : vector<1x16x16xf32>
    %109 = vector.multi_reduction <add>, %108, %cst_49 [1] : vector<1x8x16x16xf32> to vector<1x16x16xf32>
    %110 = vector.shape_cast %109 : vector<1x16x16xf32> to vector<1x1x16x16xf32>
    %111 = arith.subf %107, %110 : vector<1x1x16x16xf32>
    %112 = arith.select %94, %111, %80 : vector<1x1x16x16xi1>, vector<1x1x16x16xf32>
    %113 = arith.maximumf %81, %111 : vector<1x1x16x16xf32>
    %114 = arith.subf %81, %113 : vector<1x1x16x16xf32>
    %115 = math.exp %114 : vector<1x1x16x16xf32>
    %116 = arith.mulf %87, %115 : vector<1x1x16x16xf32>
    %117 = arith.subf %111, %113 : vector<1x1x16x16xf32>
    %118 = math.exp %117 : vector<1x1x16x16xf32>
    %119 = arith.addf %116, %118 : vector<1x1x16x16xf32>
    %c1_i32_50 = arith.constant 1 : i32
    %120 = tpu.dynamic_rotate %2 by %c1_i32_50 dim 3 : vector<1x1x16x16xf32>, i32 -> vector<1x1x16x16xf32>
    %121 = tpu.iota {dimensions = array<i32: 3>} : vector<1x1x16x16xi32>
    %c1_i32_51 = arith.constant 1 : i32
    %122 = vector.broadcast %c1_i32_51 : i32 to vector<1x1x16x16xi32>
    %123 = arith.cmpi sge, %121, %122 : vector<1x1x16x16xi32>
    %cst_52 = arith.constant 1.000000e+05 : f32
    %124 = vector.broadcast %cst_52 : f32 to vector<1x1x16x16xf32>
    %125 = arith.select %123, %120, %124 : vector<1x1x16x16xi1>, vector<1x1x16x16xf32>
    %126 = arith.cmpf olt, %125, %95 : vector<1x1x16x16xf32>
    %127 = arith.select %126, %125, %95 : vector<1x1x16x16xi1>, vector<1x1x16x16xf32>
    %c2_i32 = arith.constant 2 : i32
    %128 = vector.broadcast %c2_i32 : i32 to vector<1x1x16x16xi32>
    %129 = arith.select %126, %128, %97 : vector<1x1x16x16xi1>, vector<1x1x16x16xi32>
    %c1_i32_53 = arith.constant 1 : i32
    %130 = tpu.dynamic_rotate %47 by %c1_i32_53 dim 3 : vector<1x8x16x16xf32>, i32 -> vector<1x8x16x16xf32>
    %131 = tpu.iota {dimensions = array<i32: 3>} : vector<1x8x16x16xi32>
    %c1_i32_54 = arith.constant 1 : i32
    %132 = vector.broadcast %c1_i32_54 : i32 to vector<1x8x16x16xi32>
    %133 = arith.cmpi sge, %131, %132 : vector<1x8x16x16xi32>
    %134 = arith.select %133, %130, %47 : vector<1x8x16x16xi1>, vector<1x8x16x16xf32>
    %c1_i32_55 = arith.constant 1 : i32
    %135 = tpu.dynamic_rotate %50 by %c1_i32_55 dim 3 : vector<1x1x16x16xf32>, i32 -> vector<1x1x16x16xf32>
    %136 = tpu.iota {dimensions = array<i32: 3>} : vector<1x1x16x16xi32>
    %c1_i32_56 = arith.constant 1 : i32
    %137 = vector.broadcast %c1_i32_56 : i32 to vector<1x1x16x16xi32>
    %138 = arith.cmpi sge, %136, %137 : vector<1x1x16x16xi32>
    %139 = arith.select %138, %135, %50 : vector<1x1x16x16xi1>, vector<1x1x16x16xf32>
    %140 = arith.mulf %134, %45 : vector<1x8x16x16xf32>
    %cst_57 = arith.constant dense<0.000000e+00> : vector<1x16x16xf32>
    %141 = vector.multi_reduction <add>, %140, %cst_57 [1] : vector<1x8x16x16xf32> to vector<1x16x16xf32>
    %142 = vector.shape_cast %141 : vector<1x16x16xf32> to vector<1x1x16x16xf32>
    %143 = arith.subf %139, %142 : vector<1x1x16x16xf32>
    %144 = arith.select %126, %143, %112 : vector<1x1x16x16xi1>, vector<1x1x16x16xf32>
    %145 = arith.maximumf %113, %143 : vector<1x1x16x16xf32>
    %146 = arith.subf %113, %145 : vector<1x1x16x16xf32>
    %147 = math.exp %146 : vector<1x1x16x16xf32>
    %148 = arith.mulf %119, %147 : vector<1x1x16x16xf32>
    %149 = arith.subf %143, %145 : vector<1x1x16x16xf32>
    %150 = math.exp %149 : vector<1x1x16x16xf32>
    %151 = arith.addf %148, %150 : vector<1x1x16x16xf32>
    %c15_i32_58 = arith.constant 15 : i32
    %152 = tpu.dynamic_rotate %2 by %c15_i32_58 dim 3 : vector<1x1x16x16xf32>, i32 -> vector<1x1x16x16xf32>
    %153 = tpu.iota {dimensions = array<i32: 3>} : vector<1x1x16x16xi32>
    %c15_i32_59 = arith.constant 15 : i32
    %154 = vector.broadcast %c15_i32_59 : i32 to vector<1x1x16x16xi32>
    %155 = arith.cmpi slt, %153, %154 : vector<1x1x16x16xi32>
    %cst_60 = arith.constant 1.000000e+05 : f32
    %156 = vector.broadcast %cst_60 : f32 to vector<1x1x16x16xf32>
    %157 = arith.select %155, %152, %156 : vector<1x1x16x16xi1>, vector<1x1x16x16xf32>
    %158 = arith.cmpf olt, %157, %127 : vector<1x1x16x16xf32>
    %159 = arith.select %158, %157, %127 : vector<1x1x16x16xi1>, vector<1x1x16x16xf32>
    %c3_i32 = arith.constant 3 : i32
    %160 = vector.broadcast %c3_i32 : i32 to vector<1x1x16x16xi32>
    %161 = arith.select %158, %160, %129 : vector<1x1x16x16xi1>, vector<1x1x16x16xi32>
    %c15_i32_61 = arith.constant 15 : i32
    %162 = tpu.dynamic_rotate %47 by %c15_i32_61 dim 3 : vector<1x8x16x16xf32>, i32 -> vector<1x8x16x16xf32>
    %163 = tpu.iota {dimensions = array<i32: 3>} : vector<1x8x16x16xi32>
    %c15_i32_62 = arith.constant 15 : i32
    %164 = vector.broadcast %c15_i32_62 : i32 to vector<1x8x16x16xi32>
    %165 = arith.cmpi slt, %163, %164 : vector<1x8x16x16xi32>
    %166 = arith.select %165, %162, %47 : vector<1x8x16x16xi1>, vector<1x8x16x16xf32>
    %c15_i32_63 = arith.constant 15 : i32
    %167 = tpu.dynamic_rotate %50 by %c15_i32_63 dim 3 : vector<1x1x16x16xf32>, i32 -> vector<1x1x16x16xf32>
    %168 = tpu.iota {dimensions = array<i32: 3>} : vector<1x1x16x16xi32>
    %c15_i32_64 = arith.constant 15 : i32
    %169 = vector.broadcast %c15_i32_64 : i32 to vector<1x1x16x16xi32>
    %170 = arith.cmpi slt, %168, %169 : vector<1x1x16x16xi32>
    %171 = arith.select %170, %167, %50 : vector<1x1x16x16xi1>, vector<1x1x16x16xf32>
    %172 = arith.mulf %166, %45 : vector<1x8x16x16xf32>
    %cst_65 = arith.constant dense<0.000000e+00> : vector<1x16x16xf32>
    %173 = vector.multi_reduction <add>, %172, %cst_65 [1] : vector<1x8x16x16xf32> to vector<1x16x16xf32>
    %174 = vector.shape_cast %173 : vector<1x16x16xf32> to vector<1x1x16x16xf32>
    %175 = arith.subf %171, %174 : vector<1x1x16x16xf32>
    %176 = arith.select %158, %175, %144 : vector<1x1x16x16xi1>, vector<1x1x16x16xf32>
    %177 = arith.maximumf %145, %175 : vector<1x1x16x16xf32>
    %178 = arith.subf %145, %177 : vector<1x1x16x16xf32>
    %179 = math.exp %178 : vector<1x1x16x16xf32>
    %180 = arith.mulf %151, %179 : vector<1x1x16x16xf32>
    %181 = arith.subf %175, %177 : vector<1x1x16x16xf32>
    %182 = math.exp %181 : vector<1x1x16x16xf32>
    %183 = arith.addf %180, %182 : vector<1x1x16x16xf32>
    %c1_i32_66 = arith.constant 1 : i32
    %184 = tpu.dynamic_rotate %2 by %c1_i32_66 dim 2 : vector<1x1x16x16xf32>, i32 -> vector<1x1x16x16xf32>
    %185 = tpu.iota {dimensions = array<i32: 2>} : vector<1x1x16x16xi32>
    %c1_i32_67 = arith.constant 1 : i32
    %186 = vector.broadcast %c1_i32_67 : i32 to vector<1x1x16x16xi32>
    %187 = arith.cmpi sge, %185, %186 : vector<1x1x16x16xi32>
    %cst_68 = arith.constant 1.000000e+05 : f32
    %188 = vector.broadcast %cst_68 : f32 to vector<1x1x16x16xf32>
    %189 = arith.select %187, %184, %188 : vector<1x1x16x16xi1>, vector<1x1x16x16xf32>
    %c15_i32_69 = arith.constant 15 : i32
    %190 = tpu.dynamic_rotate %189 by %c15_i32_69 dim 3 : vector<1x1x16x16xf32>, i32 -> vector<1x1x16x16xf32>
    %191 = tpu.iota {dimensions = array<i32: 3>} : vector<1x1x16x16xi32>
    %c15_i32_70 = arith.constant 15 : i32
    %192 = vector.broadcast %c15_i32_70 : i32 to vector<1x1x16x16xi32>
    %193 = arith.cmpi slt, %191, %192 : vector<1x1x16x16xi32>
    %cst_71 = arith.constant 1.000000e+05 : f32
    %194 = vector.broadcast %cst_71 : f32 to vector<1x1x16x16xf32>
    %195 = arith.select %193, %190, %194 : vector<1x1x16x16xi1>, vector<1x1x16x16xf32>
    %196 = arith.cmpf olt, %195, %159 : vector<1x1x16x16xf32>
    %197 = arith.select %196, %195, %159 : vector<1x1x16x16xi1>, vector<1x1x16x16xf32>
    %c4_i32 = arith.constant 4 : i32
    %198 = vector.broadcast %c4_i32 : i32 to vector<1x1x16x16xi32>
    %199 = arith.select %196, %198, %161 : vector<1x1x16x16xi1>, vector<1x1x16x16xi32>
    %c1_i32_72 = arith.constant 1 : i32
    %200 = tpu.dynamic_rotate %47 by %c1_i32_72 dim 2 : vector<1x8x16x16xf32>, i32 -> vector<1x8x16x16xf32>
    %201 = tpu.iota {dimensions = array<i32: 2>} : vector<1x8x16x16xi32>
    %c1_i32_73 = arith.constant 1 : i32
    %202 = vector.broadcast %c1_i32_73 : i32 to vector<1x8x16x16xi32>
    %203 = arith.cmpi sge, %201, %202 : vector<1x8x16x16xi32>
    %204 = arith.select %203, %200, %47 : vector<1x8x16x16xi1>, vector<1x8x16x16xf32>
    %c15_i32_74 = arith.constant 15 : i32
    %205 = tpu.dynamic_rotate %204 by %c15_i32_74 dim 3 : vector<1x8x16x16xf32>, i32 -> vector<1x8x16x16xf32>
    %206 = tpu.iota {dimensions = array<i32: 3>} : vector<1x8x16x16xi32>
    %c15_i32_75 = arith.constant 15 : i32
    %207 = vector.broadcast %c15_i32_75 : i32 to vector<1x8x16x16xi32>
    %208 = arith.cmpi slt, %206, %207 : vector<1x8x16x16xi32>
    %209 = arith.select %208, %205, %204 : vector<1x8x16x16xi1>, vector<1x8x16x16xf32>
    %c1_i32_76 = arith.constant 1 : i32
    %210 = tpu.dynamic_rotate %50 by %c1_i32_76 dim 2 : vector<1x1x16x16xf32>, i32 -> vector<1x1x16x16xf32>
    %211 = tpu.iota {dimensions = array<i32: 2>} : vector<1x1x16x16xi32>
    %c1_i32_77 = arith.constant 1 : i32
    %212 = vector.broadcast %c1_i32_77 : i32 to vector<1x1x16x16xi32>
    %213 = arith.cmpi sge, %211, %212 : vector<1x1x16x16xi32>
    %214 = arith.select %213, %210, %50 : vector<1x1x16x16xi1>, vector<1x1x16x16xf32>
    %c15_i32_78 = arith.constant 15 : i32
    %215 = tpu.dynamic_rotate %214 by %c15_i32_78 dim 3 : vector<1x1x16x16xf32>, i32 -> vector<1x1x16x16xf32>
    %216 = tpu.iota {dimensions = array<i32: 3>} : vector<1x1x16x16xi32>
    %c15_i32_79 = arith.constant 15 : i32
    %217 = vector.broadcast %c15_i32_79 : i32 to vector<1x1x16x16xi32>
    %218 = arith.cmpi slt, %216, %217 : vector<1x1x16x16xi32>
    %219 = arith.select %218, %215, %214 : vector<1x1x16x16xi1>, vector<1x1x16x16xf32>
    %220 = arith.mulf %209, %45 : vector<1x8x16x16xf32>
    %cst_80 = arith.constant dense<0.000000e+00> : vector<1x16x16xf32>
    %221 = vector.multi_reduction <add>, %220, %cst_80 [1] : vector<1x8x16x16xf32> to vector<1x16x16xf32>
    %222 = vector.shape_cast %221 : vector<1x16x16xf32> to vector<1x1x16x16xf32>
    %223 = arith.subf %219, %222 : vector<1x1x16x16xf32>
    %224 = arith.select %196, %223, %176 : vector<1x1x16x16xi1>, vector<1x1x16x16xf32>
    %225 = arith.maximumf %177, %223 : vector<1x1x16x16xf32>
    %226 = arith.subf %177, %225 : vector<1x1x16x16xf32>
    %227 = math.exp %226 : vector<1x1x16x16xf32>
    %228 = arith.mulf %183, %227 : vector<1x1x16x16xf32>
    %229 = arith.subf %223, %225 : vector<1x1x16x16xf32>
    %230 = math.exp %229 : vector<1x1x16x16xf32>
    %231 = arith.addf %228, %230 : vector<1x1x16x16xf32>
    %c15_i32_81 = arith.constant 15 : i32
    %232 = tpu.dynamic_rotate %2 by %c15_i32_81 dim 2 : vector<1x1x16x16xf32>, i32 -> vector<1x1x16x16xf32>
    %233 = tpu.iota {dimensions = array<i32: 2>} : vector<1x1x16x16xi32>
    %c15_i32_82 = arith.constant 15 : i32
    %234 = vector.broadcast %c15_i32_82 : i32 to vector<1x1x16x16xi32>
    %235 = arith.cmpi slt, %233, %234 : vector<1x1x16x16xi32>
    %cst_83 = arith.constant 1.000000e+05 : f32
    %236 = vector.broadcast %cst_83 : f32 to vector<1x1x16x16xf32>
    %237 = arith.select %235, %232, %236 : vector<1x1x16x16xi1>, vector<1x1x16x16xf32>
    %c15_i32_84 = arith.constant 15 : i32
    %238 = tpu.dynamic_rotate %237 by %c15_i32_84 dim 3 : vector<1x1x16x16xf32>, i32 -> vector<1x1x16x16xf32>
    %239 = tpu.iota {dimensions = array<i32: 3>} : vector<1x1x16x16xi32>
    %c15_i32_85 = arith.constant 15 : i32
    %240 = vector.broadcast %c15_i32_85 : i32 to vector<1x1x16x16xi32>
    %241 = arith.cmpi slt, %239, %240 : vector<1x1x16x16xi32>
    %cst_86 = arith.constant 1.000000e+05 : f32
    %242 = vector.broadcast %cst_86 : f32 to vector<1x1x16x16xf32>
    %243 = arith.select %241, %238, %242 : vector<1x1x16x16xi1>, vector<1x1x16x16xf32>
    %244 = arith.cmpf olt, %243, %197 : vector<1x1x16x16xf32>
    %245 = arith.select %244, %243, %197 : vector<1x1x16x16xi1>, vector<1x1x16x16xf32>
    %c5_i32 = arith.constant 5 : i32
    %246 = vector.broadcast %c5_i32 : i32 to vector<1x1x16x16xi32>
    %247 = arith.select %244, %246, %199 : vector<1x1x16x16xi1>, vector<1x1x16x16xi32>
    %c15_i32_87 = arith.constant 15 : i32
    %248 = tpu.dynamic_rotate %47 by %c15_i32_87 dim 2 : vector<1x8x16x16xf32>, i32 -> vector<1x8x16x16xf32>
    %249 = tpu.iota {dimensions = array<i32: 2>} : vector<1x8x16x16xi32>
    %c15_i32_88 = arith.constant 15 : i32
    %250 = vector.broadcast %c15_i32_88 : i32 to vector<1x8x16x16xi32>
    %251 = arith.cmpi slt, %249, %250 : vector<1x8x16x16xi32>
    %252 = arith.select %251, %248, %47 : vector<1x8x16x16xi1>, vector<1x8x16x16xf32>
    %c15_i32_89 = arith.constant 15 : i32
    %253 = tpu.dynamic_rotate %252 by %c15_i32_89 dim 3 : vector<1x8x16x16xf32>, i32 -> vector<1x8x16x16xf32>
    %254 = tpu.iota {dimensions = array<i32: 3>} : vector<1x8x16x16xi32>
    %c15_i32_90 = arith.constant 15 : i32
    %255 = vector.broadcast %c15_i32_90 : i32 to vector<1x8x16x16xi32>
    %256 = arith.cmpi slt, %254, %255 : vector<1x8x16x16xi32>
    %257 = arith.select %256, %253, %252 : vector<1x8x16x16xi1>, vector<1x8x16x16xf32>
    %c15_i32_91 = arith.constant 15 : i32
    %258 = tpu.dynamic_rotate %50 by %c15_i32_91 dim 2 : vector<1x1x16x16xf32>, i32 -> vector<1x1x16x16xf32>
    %259 = tpu.iota {dimensions = array<i32: 2>} : vector<1x1x16x16xi32>
    %c15_i32_92 = arith.constant 15 : i32
    %260 = vector.broadcast %c15_i32_92 : i32 to vector<1x1x16x16xi32>
    %261 = arith.cmpi slt, %259, %260 : vector<1x1x16x16xi32>
    %262 = arith.select %261, %258, %50 : vector<1x1x16x16xi1>, vector<1x1x16x16xf32>
    %c15_i32_93 = arith.constant 15 : i32
    %263 = tpu.dynamic_rotate %262 by %c15_i32_93 dim 3 : vector<1x1x16x16xf32>, i32 -> vector<1x1x16x16xf32>
    %264 = tpu.iota {dimensions = array<i32: 3>} : vector<1x1x16x16xi32>
    %c15_i32_94 = arith.constant 15 : i32
    %265 = vector.broadcast %c15_i32_94 : i32 to vector<1x1x16x16xi32>
    %266 = arith.cmpi slt, %264, %265 : vector<1x1x16x16xi32>
    %267 = arith.select %266, %263, %262 : vector<1x1x16x16xi1>, vector<1x1x16x16xf32>
    %268 = arith.mulf %257, %45 : vector<1x8x16x16xf32>
    %cst_95 = arith.constant dense<0.000000e+00> : vector<1x16x16xf32>
    %269 = vector.multi_reduction <add>, %268, %cst_95 [1] : vector<1x8x16x16xf32> to vector<1x16x16xf32>
    %270 = vector.shape_cast %269 : vector<1x16x16xf32> to vector<1x1x16x16xf32>
    %271 = arith.subf %267, %270 : vector<1x1x16x16xf32>
    %272 = arith.select %244, %271, %224 : vector<1x1x16x16xi1>, vector<1x1x16x16xf32>
    %273 = arith.maximumf %225, %271 : vector<1x1x16x16xf32>
    %274 = arith.subf %225, %273 : vector<1x1x16x16xf32>
    %275 = math.exp %274 : vector<1x1x16x16xf32>
    %276 = arith.mulf %231, %275 : vector<1x1x16x16xf32>
    %277 = arith.subf %271, %273 : vector<1x1x16x16xf32>
    %278 = math.exp %277 : vector<1x1x16x16xf32>
    %279 = arith.addf %276, %278 : vector<1x1x16x16xf32>
    %c1_i32_96 = arith.constant 1 : i32
    %280 = tpu.dynamic_rotate %2 by %c1_i32_96 dim 2 : vector<1x1x16x16xf32>, i32 -> vector<1x1x16x16xf32>
    %281 = tpu.iota {dimensions = array<i32: 2>} : vector<1x1x16x16xi32>
    %c1_i32_97 = arith.constant 1 : i32
    %282 = vector.broadcast %c1_i32_97 : i32 to vector<1x1x16x16xi32>
    %283 = arith.cmpi sge, %281, %282 : vector<1x1x16x16xi32>
    %cst_98 = arith.constant 1.000000e+05 : f32
    %284 = vector.broadcast %cst_98 : f32 to vector<1x1x16x16xf32>
    %285 = arith.select %283, %280, %284 : vector<1x1x16x16xi1>, vector<1x1x16x16xf32>
    %c1_i32_99 = arith.constant 1 : i32
    %286 = tpu.dynamic_rotate %285 by %c1_i32_99 dim 3 : vector<1x1x16x16xf32>, i32 -> vector<1x1x16x16xf32>
    %287 = tpu.iota {dimensions = array<i32: 3>} : vector<1x1x16x16xi32>
    %c1_i32_100 = arith.constant 1 : i32
    %288 = vector.broadcast %c1_i32_100 : i32 to vector<1x1x16x16xi32>
    %289 = arith.cmpi sge, %287, %288 : vector<1x1x16x16xi32>
    %cst_101 = arith.constant 1.000000e+05 : f32
    %290 = vector.broadcast %cst_101 : f32 to vector<1x1x16x16xf32>
    %291 = arith.select %289, %286, %290 : vector<1x1x16x16xi1>, vector<1x1x16x16xf32>
    %292 = arith.cmpf olt, %291, %245 : vector<1x1x16x16xf32>
    %293 = arith.select %292, %291, %245 : vector<1x1x16x16xi1>, vector<1x1x16x16xf32>
    %c6_i32 = arith.constant 6 : i32
    %294 = vector.broadcast %c6_i32 : i32 to vector<1x1x16x16xi32>
    %295 = arith.select %292, %294, %247 : vector<1x1x16x16xi1>, vector<1x1x16x16xi32>
    %c1_i32_102 = arith.constant 1 : i32
    %296 = tpu.dynamic_rotate %47 by %c1_i32_102 dim 2 : vector<1x8x16x16xf32>, i32 -> vector<1x8x16x16xf32>
    %297 = tpu.iota {dimensions = array<i32: 2>} : vector<1x8x16x16xi32>
    %c1_i32_103 = arith.constant 1 : i32
    %298 = vector.broadcast %c1_i32_103 : i32 to vector<1x8x16x16xi32>
    %299 = arith.cmpi sge, %297, %298 : vector<1x8x16x16xi32>
    %300 = arith.select %299, %296, %47 : vector<1x8x16x16xi1>, vector<1x8x16x16xf32>
    %c1_i32_104 = arith.constant 1 : i32
    %301 = tpu.dynamic_rotate %300 by %c1_i32_104 dim 3 : vector<1x8x16x16xf32>, i32 -> vector<1x8x16x16xf32>
    %302 = tpu.iota {dimensions = array<i32: 3>} : vector<1x8x16x16xi32>
    %c1_i32_105 = arith.constant 1 : i32
    %303 = vector.broadcast %c1_i32_105 : i32 to vector<1x8x16x16xi32>
    %304 = arith.cmpi sge, %302, %303 : vector<1x8x16x16xi32>
    %305 = arith.select %304, %301, %300 : vector<1x8x16x16xi1>, vector<1x8x16x16xf32>
    %c1_i32_106 = arith.constant 1 : i32
    %306 = tpu.dynamic_rotate %50 by %c1_i32_106 dim 2 : vector<1x1x16x16xf32>, i32 -> vector<1x1x16x16xf32>
    %307 = tpu.iota {dimensions = array<i32: 2>} : vector<1x1x16x16xi32>
    %c1_i32_107 = arith.constant 1 : i32
    %308 = vector.broadcast %c1_i32_107 : i32 to vector<1x1x16x16xi32>
    %309 = arith.cmpi sge, %307, %308 : vector<1x1x16x16xi32>
    %310 = arith.select %309, %306, %50 : vector<1x1x16x16xi1>, vector<1x1x16x16xf32>
    %c1_i32_108 = arith.constant 1 : i32
    %311 = tpu.dynamic_rotate %310 by %c1_i32_108 dim 3 : vector<1x1x16x16xf32>, i32 -> vector<1x1x16x16xf32>
    %312 = tpu.iota {dimensions = array<i32: 3>} : vector<1x1x16x16xi32>
    %c1_i32_109 = arith.constant 1 : i32
    %313 = vector.broadcast %c1_i32_109 : i32 to vector<1x1x16x16xi32>
    %314 = arith.cmpi sge, %312, %313 : vector<1x1x16x16xi32>
    %315 = arith.select %314, %311, %310 : vector<1x1x16x16xi1>, vector<1x1x16x16xf32>
    %316 = arith.mulf %305, %45 : vector<1x8x16x16xf32>
    %cst_110 = arith.constant dense<0.000000e+00> : vector<1x16x16xf32>
    %317 = vector.multi_reduction <add>, %316, %cst_110 [1] : vector<1x8x16x16xf32> to vector<1x16x16xf32>
    %318 = vector.shape_cast %317 : vector<1x16x16xf32> to vector<1x1x16x16xf32>
    %319 = arith.subf %315, %318 : vector<1x1x16x16xf32>
    %320 = arith.select %292, %319, %272 : vector<1x1x16x16xi1>, vector<1x1x16x16xf32>
    %321 = arith.maximumf %273, %319 : vector<1x1x16x16xf32>
    %322 = arith.subf %273, %321 : vector<1x1x16x16xf32>
    %323 = math.exp %322 : vector<1x1x16x16xf32>
    %324 = arith.mulf %279, %323 : vector<1x1x16x16xf32>
    %325 = arith.subf %319, %321 : vector<1x1x16x16xf32>
    %326 = math.exp %325 : vector<1x1x16x16xf32>
    %327 = arith.addf %324, %326 : vector<1x1x16x16xf32>
    %c15_i32_111 = arith.constant 15 : i32
    %328 = tpu.dynamic_rotate %2 by %c15_i32_111 dim 2 : vector<1x1x16x16xf32>, i32 -> vector<1x1x16x16xf32>
    %329 = tpu.iota {dimensions = array<i32: 2>} : vector<1x1x16x16xi32>
    %c15_i32_112 = arith.constant 15 : i32
    %330 = vector.broadcast %c15_i32_112 : i32 to vector<1x1x16x16xi32>
    %331 = arith.cmpi slt, %329, %330 : vector<1x1x16x16xi32>
    %cst_113 = arith.constant 1.000000e+05 : f32
    %332 = vector.broadcast %cst_113 : f32 to vector<1x1x16x16xf32>
    %333 = arith.select %331, %328, %332 : vector<1x1x16x16xi1>, vector<1x1x16x16xf32>
    %c1_i32_114 = arith.constant 1 : i32
    %334 = tpu.dynamic_rotate %333 by %c1_i32_114 dim 3 : vector<1x1x16x16xf32>, i32 -> vector<1x1x16x16xf32>
    %335 = tpu.iota {dimensions = array<i32: 3>} : vector<1x1x16x16xi32>
    %c1_i32_115 = arith.constant 1 : i32
    %336 = vector.broadcast %c1_i32_115 : i32 to vector<1x1x16x16xi32>
    %337 = arith.cmpi sge, %335, %336 : vector<1x1x16x16xi32>
    %cst_116 = arith.constant 1.000000e+05 : f32
    %338 = vector.broadcast %cst_116 : f32 to vector<1x1x16x16xf32>
    %339 = arith.select %337, %334, %338 : vector<1x1x16x16xi1>, vector<1x1x16x16xf32>
    %340 = arith.cmpf olt, %339, %293 : vector<1x1x16x16xf32>
    %341 = arith.select %340, %339, %293 : vector<1x1x16x16xi1>, vector<1x1x16x16xf32>
    %c7_i32 = arith.constant 7 : i32
    %342 = vector.broadcast %c7_i32 : i32 to vector<1x1x16x16xi32>
    %343 = arith.select %340, %342, %295 : vector<1x1x16x16xi1>, vector<1x1x16x16xi32>
    %c15_i32_117 = arith.constant 15 : i32
    %344 = tpu.dynamic_rotate %47 by %c15_i32_117 dim 2 : vector<1x8x16x16xf32>, i32 -> vector<1x8x16x16xf32>
    %345 = tpu.iota {dimensions = array<i32: 2>} : vector<1x8x16x16xi32>
    %c15_i32_118 = arith.constant 15 : i32
    %346 = vector.broadcast %c15_i32_118 : i32 to vector<1x8x16x16xi32>
    %347 = arith.cmpi slt, %345, %346 : vector<1x8x16x16xi32>
    %348 = arith.select %347, %344, %47 : vector<1x8x16x16xi1>, vector<1x8x16x16xf32>
    %c1_i32_119 = arith.constant 1 : i32
    %349 = tpu.dynamic_rotate %348 by %c1_i32_119 dim 3 : vector<1x8x16x16xf32>, i32 -> vector<1x8x16x16xf32>
    %350 = tpu.iota {dimensions = array<i32: 3>} : vector<1x8x16x16xi32>
    %c1_i32_120 = arith.constant 1 : i32
    %351 = vector.broadcast %c1_i32_120 : i32 to vector<1x8x16x16xi32>
    %352 = arith.cmpi sge, %350, %351 : vector<1x8x16x16xi32>
    %353 = arith.select %352, %349, %348 : vector<1x8x16x16xi1>, vector<1x8x16x16xf32>
    %c15_i32_121 = arith.constant 15 : i32
    %354 = tpu.dynamic_rotate %50 by %c15_i32_121 dim 2 : vector<1x1x16x16xf32>, i32 -> vector<1x1x16x16xf32>
    %355 = tpu.iota {dimensions = array<i32: 2>} : vector<1x1x16x16xi32>
    %c15_i32_122 = arith.constant 15 : i32
    %356 = vector.broadcast %c15_i32_122 : i32 to vector<1x1x16x16xi32>
    %357 = arith.cmpi slt, %355, %356 : vector<1x1x16x16xi32>
    %358 = arith.select %357, %354, %50 : vector<1x1x16x16xi1>, vector<1x1x16x16xf32>
    %c1_i32_123 = arith.constant 1 : i32
    %359 = tpu.dynamic_rotate %358 by %c1_i32_123 dim 3 : vector<1x1x16x16xf32>, i32 -> vector<1x1x16x16xf32>
    %360 = tpu.iota {dimensions = array<i32: 3>} : vector<1x1x16x16xi32>
    %c1_i32_124 = arith.constant 1 : i32
    %361 = vector.broadcast %c1_i32_124 : i32 to vector<1x1x16x16xi32>
    %362 = arith.cmpi sge, %360, %361 : vector<1x1x16x16xi32>
    %363 = arith.select %362, %359, %358 : vector<1x1x16x16xi1>, vector<1x1x16x16xf32>
    %364 = arith.mulf %353, %45 : vector<1x8x16x16xf32>
    %cst_125 = arith.constant dense<0.000000e+00> : vector<1x16x16xf32>
    %365 = vector.multi_reduction <add>, %364, %cst_125 [1] : vector<1x8x16x16xf32> to vector<1x16x16xf32>
    %366 = vector.shape_cast %365 : vector<1x16x16xf32> to vector<1x1x16x16xf32>
    %367 = arith.subf %363, %366 : vector<1x1x16x16xf32>
    %368 = arith.select %340, %367, %320 : vector<1x1x16x16xi1>, vector<1x1x16x16xf32>
    %369 = arith.maximumf %321, %367 : vector<1x1x16x16xf32>
    %370 = arith.subf %321, %369 : vector<1x1x16x16xf32>
    %371 = math.exp %370 : vector<1x1x16x16xf32>
    %372 = arith.mulf %327, %371 : vector<1x1x16x16xf32>
    %373 = arith.subf %367, %369 : vector<1x1x16x16xf32>
    %374 = math.exp %373 : vector<1x1x16x16xf32>
    %375 = arith.addf %372, %374 : vector<1x1x16x16xf32>
    %376 = arith.cmpf olt, %2, %341 : vector<1x1x16x16xf32>
    %c8_i32 = arith.constant 8 : i32
    %377 = vector.broadcast %c8_i32 : i32 to vector<1x1x16x16xi32>
    %378 = arith.select %376, %377, %343 : vector<1x1x16x16xi1>, vector<1x1x16x16xi32>
    %379 = math.log %375 : vector<1x1x16x16xf32>
    %380 = arith.addf %369, %379 : vector<1x1x16x16xf32>
    %381 = arith.subf %380, %368 : vector<1x1x16x16xf32>
    %c8_i32_126 = arith.constant 8 : i32
    %382 = vector.broadcast %c8_i32_126 : i32 to vector<1x1x16x16xi32>
    %383 = arith.cmpi ne, %378, %382 : vector<1x1x16x16xi32>
    %384 = arith.andi %33, %383 : vector<1x1x16x16xi1>
    %cst_127 = arith.constant 0.000000e+00 : f32
    %385 = vector.broadcast %cst_127 : f32 to vector<1x1x16x16xf32>
    %386 = arith.select %384, %381, %385 : vector<1x1x16x16xi1>, vector<1x1x16x16xf32>
    %387 = vector.shape_cast %386 : vector<1x1x16x16xf32> to vector<1x1x1x16x16xf32>
    %cst_128 = arith.constant dense<0.000000e+00> : vector<1xf32>
    %388 = vector.multi_reduction <add>, %387, %cst_128 [1, 2, 3, 4] : vector<1x1x1x16x16xf32> to vector<1xf32>
    %389 = vector.shape_cast %388 : vector<1xf32> to vector<1x1x1x1x1xf32>
    %390 = vector.extract %389[0, 0, 0, 0, 0] : f32 from vector<1x1x1x1x1xf32>
    %cst_129 = arith.constant 2.000000e+01 : f32
    %391 = vector.broadcast %cst_129 : f32 to vector<1x1x16x16xf32>
    %392 = arith.minimumf %2, %391 : vector<1x1x16x16xf32>
    %cst_130 = arith.constant 2.000000e+01 : f32
    %393 = vector.broadcast %cst_130 : f32 to vector<1x1x16x16xf32>
    %394 = arith.divf %392, %393 : vector<1x1x16x16xf32>
    %cst_131 = arith.constant 0.000000e+00 : f32
    %395 = vector.broadcast %cst_131 : f32 to vector<1x1x16x16xf32>
    %396 = arith.select %384, %394, %395 : vector<1x1x16x16xi1>, vector<1x1x16x16xf32>
    %397 = vector.shape_cast %396 : vector<1x1x16x16xf32> to vector<1x1x1x16x16xf32>
    %cst_132 = arith.constant dense<0.000000e+00> : vector<1xf32>
    %398 = vector.multi_reduction <add>, %397, %cst_132 [1, 2, 3, 4] : vector<1x1x1x16x16xf32> to vector<1xf32>
    %399 = vector.shape_cast %398 : vector<1xf32> to vector<1x1x1x1x1xf32>
    %400 = vector.extract %399[0, 0, 0, 0, 0] : f32 from vector<1x1x1x1x1xf32>
    %401 = tpu.iota {dimensions = array<i32: 1>} : vector<1x8x16x16xi32>
    %402 = vector.broadcast %1 : vector<1x1x16x16xi32> to vector<1x8x16x16xi32>
    %403 = arith.cmpi eq, %401, %402 : vector<1x8x16x16xi32>
    %cst_133 = arith.constant 0.000000e+00 : f32
    %404 = vector.broadcast %cst_133 : f32 to vector<1x8x16x16xf32>
    %405 = arith.select %403, %45, %404 : vector<1x8x16x16xi1>, vector<1x8x16x16xf32>
    %cst_134 = arith.constant dense<0.000000e+00> : vector<1x16x16xf32>
    %406 = vector.multi_reduction <add>, %405, %cst_134 [1] : vector<1x8x16x16xf32> to vector<1x16x16xf32>
    %407 = vector.shape_cast %406 : vector<1x16x16xf32> to vector<1x1x16x16xf32>
    %c255_i32 = arith.constant 255 : i32
    %408 = vector.broadcast %c255_i32 : i32 to vector<1x1x16x16xi32>
    %409 = arith.cmpi ne, %1, %408 : vector<1x1x16x16xi32>
    %cst_135 = arith.constant 0.000000e+00 : f32
    %410 = vector.broadcast %cst_135 : f32 to vector<1x1x16x16xf32>
    %411 = arith.subf %410, %407 : vector<1x1x16x16xf32>
    %cst_136 = arith.constant 0.000000e+00 : f32
    %412 = vector.broadcast %cst_136 : f32 to vector<1x1x16x16xf32>
    %413 = arith.select %409, %411, %412 : vector<1x1x16x16xi1>, vector<1x1x16x16xf32>
    %414 = vector.shape_cast %413 : vector<1x1x16x16xf32> to vector<1x1x1x16x16xf32>
    %cst_137 = arith.constant dense<0.000000e+00> : vector<1xf32>
    %415 = vector.multi_reduction <add>, %414, %cst_137 [1, 2, 3, 4] : vector<1x1x1x16x16xf32> to vector<1xf32>
    %416 = vector.shape_cast %415 : vector<1xf32> to vector<1x1x1x1x1xf32>
    %417 = vector.extract %416[0, 0, 0, 0, 0] : f32 from vector<1x1x1x1x1xf32>
    %418 = tpu.iota {dimensions = array<i32: 1>} : vector<1x8x128xi32>
    %419 = tpu.iota {dimensions = array<i32: 2>} : vector<1x8x128xi32>
    %c0_i32_138 = arith.constant 0 : i32
    %420 = vector.broadcast %c0_i32_138 : i32 to vector<1x8x128xi32>
    %421 = arith.cmpi eq, %418, %420 : vector<1x8x128xi32>
    %c0_i32_139 = arith.constant 0 : i32
    %422 = vector.broadcast %c0_i32_139 : i32 to vector<1x8x128xi32>
    %423 = arith.cmpi eq, %419, %422 : vector<1x8x128xi32>
    %424 = arith.andi %421, %423 : vector<1x8x128xi1>
    %cst_140 = arith.constant 0.000000e+00 : f32
    %425 = vector.broadcast %390 : f32 to vector<1x8x128xf32>
    %426 = vector.broadcast %cst_140 : f32 to vector<1x8x128xf32>
    %427 = arith.select %424, %425, %426 : vector<1x8x128xi1>, vector<1x8x128xf32>
    %c1_i32_141 = arith.constant 1 : i32
    %428 = vector.broadcast %c1_i32_141 : i32 to vector<1x8x128xi32>
    %429 = arith.cmpi eq, %419, %428 : vector<1x8x128xi32>
    %430 = arith.andi %421, %429 : vector<1x8x128xi1>
    %cst_142 = arith.constant 0.000000e+00 : f32
    %431 = vector.broadcast %400 : f32 to vector<1x8x128xf32>
    %432 = vector.broadcast %cst_142 : f32 to vector<1x8x128xf32>
    %433 = arith.select %430, %431, %432 : vector<1x8x128xi1>, vector<1x8x128xf32>
    %434 = arith.addf %427, %433 : vector<1x8x128xf32>
    %c2_i32_143 = arith.constant 2 : i32
    %435 = vector.broadcast %c2_i32_143 : i32 to vector<1x8x128xi32>
    %436 = arith.cmpi eq, %419, %435 : vector<1x8x128xi32>
    %437 = arith.andi %421, %436 : vector<1x8x128xi1>
    %cst_144 = arith.constant 0.000000e+00 : f32
    %438 = vector.broadcast %417 : f32 to vector<1x8x128xf32>
    %439 = vector.broadcast %cst_144 : f32 to vector<1x8x128xf32>
    %440 = arith.select %437, %438, %439 : vector<1x8x128xi1>, vector<1x8x128xf32>
    %441 = arith.addf %434, %440 : vector<1x8x128xf32>
    %c0_145 = arith.constant 0 : index
    %c0_146 = arith.constant 0 : index
    %c0_147 = arith.constant 0 : index
    %442 = vector.load %arg5[%c0_145, %c0_146, %c0_147] : memref<1x8x128xf32, #tpu.memory_space<vmem>>, vector<1x8x128xf32>
    tpu.vector_store %arg5[%c0_145, %c0_146, %c0_147], %441 {strides = array<i32>} : memref<1x8x128xf32, #tpu.memory_space<vmem>>, vector<1x8x128xf32>,
    return
  }
  func.func @transform_0(%arg0: i32) -> (i32, i32, i32, i32) {
    %c0_i32 = arith.constant 0 : i32
    %c0_i32_0 = arith.constant 0 : i32
    %c0_i32_1 = arith.constant 0 : i32
    %c0_i32_2 = arith.constant 0 : i32
    return %arg0, %c0_i32, %c0_i32_0, %c0_i32_1 : i32, i32, i32, i32
  }
  func.func @transform_1(%arg0: i32) -> (i32, i32, i32, i32) {
    %c0_i32 = arith.constant 0 : i32
    %c0_i32_0 = arith.constant 0 : i32
    %c0_i32_1 = arith.constant 0 : i32
    %c0_i32_2 = arith.constant 0 : i32
    return %arg0, %c0_i32, %c0_i32_0, %c0_i32_1 : i32, i32, i32, i32
  }
  func.func @transform_2(%arg0: i32) -> (i32, i32, i32, i32) {
    %c0_i32 = arith.constant 0 : i32
    %c0_i32_0 = arith.constant 0 : i32
    %c0_i32_1 = arith.constant 0 : i32
    %c0_i32_2 = arith.constant 0 : i32
    return %arg0, %c0_i32, %c0_i32_0, %c0_i32_1 : i32, i32, i32, i32
  }
  func.func @transform_3(%arg0: i32) -> (i32, i32, i32, i32) {
    %c0_i32 = arith.constant 0 : i32
    %c0_i32_0 = arith.constant 0 : i32
    %c0_i32_1 = arith.constant 0 : i32
    %c0_i32_2 = arith.constant 0 : i32
    return %arg0, %c0_i32, %c0_i32_0, %c0_i32_1 : i32, i32, i32, i32
  }
  func.func @transform_4(%arg0: i32) -> (i32, i32, i32) {
    %c0_i32 = arith.constant 0 : i32
    %c0_i32_0 = arith.constant 0 : i32
    %c0_i32_1 = arith.constant 0 : i32
    return %arg0, %c0_i32, %c0_i32_0 : i32, i32, i32
  }
}

</mosaic_0001>

<llo_original>
// kernel: gt.13
$region0: #{gt.13}
  %s0 = inlined_call_operand.vmem [shape: f32[2,1,16,16], index: 0, kind: input, shape index: {}]
  %s1 = inlined_call_operand.vmem [shape: f32[512], index: 1, kind: output, shape index: {}]
  $region1: #{gt.13} parent=0
    #allocation0 [shape = 'u8[4096]{0}', space=vmem, size = 0x1000, scoped, tag = 'scoped mem for output reshape']
    %v2 = vld [vmem:[%s0] ss:$8 sm:$0xf]
    %vm3 = vcmask 130048
    %4 = vst.msk [vmem:[#allocation0] sm:$0xf] %vm3, %v2
    %s5 = scalar_lea.vmem %s0, 7
    %v6 = vld [vmem:[%s5] ss:$8 sm:$0xf]
    %7 = vrot.lane.b32.xlu0 %v6, 112
    %v8 = vpop.permute.xlu0 %7
    %vm9 = vcmask 1048448
    %10 = vst.msk [vmem:[#allocation0] sm:$0xf] %vm9, %v8
    %s11 = scalar_lea.vmem %s0, 6
    %v12 = vld [vmem:[%s11] ss:$8 sm:$0xf]
    %13 = vrot.lane.b32.xlu0 %v12, 96
    %v14 = vpop.permute.xlu0 %13
    %vm15 = vcmask 917248
    %16 = vst.msk [vmem:[#allocation0] sm:$0xf] %vm15, %v14
    %s17 = scalar_lea.vmem %s0, 5
    %v18 = vld [vmem:[%s17] ss:$8 sm:$0xf]
    %19 = vrot.lane.b32.xlu0 %v18, 80
    %v20 = vpop.permute.xlu0 %19
    %vm21 = vcmask 786048
    %22 = vst.msk [vmem:[#allocation0] sm:$0xf] %vm21, %v20
    %s23 = scalar_lea.vmem %s0, 4
    %v24 = vld [vmem:[%s23] ss:$8 sm:$0xf]
    %25 = vrot.lane.b32.xlu0 %v24, 64
    %v26 = vpop.permute.xlu0 %25
    %vm27 = vcmask 654848
    %28 = vst.msk [vmem:[#allocation0] sm:$0xf] %vm27, %v26
    %s29 = scalar_lea.vmem %s0, 3
    %v30 = vld [vmem:[%s29] ss:$8 sm:$0xf]
    %31 = vrot.lane.b32.xlu0 %v30, 48
    %v32 = vpop.permute.xlu0 %31
    %vm33 = vcmask 523648
    %34 = vst.msk [vmem:[#allocation0] sm:$0xf] %vm33, %v32
    %s35 = scalar_lea.vmem %s0, 2
    %v36 = vld [vmem:[%s35] ss:$8 sm:$0xf]
    %37 = vrot.lane.b32.xlu0 %v36, 32
    %v38 = vpop.permute.xlu0 %37
    %vm39 = vcmask 392448
    %40 = vst.msk [vmem:[#allocation0] sm:$0xf] %vm39, %v38
    %s41 = scalar_lea.vmem %s0, 1
    %v42 = vld [vmem:[%s41] ss:$8 sm:$0xf]
    %43 = vrot.lane.b32.xlu0 %v42, 16
    %v44 = vpop.permute.xlu0 %43
    %vm45 = vcmask 261248
    %46 = vst.msk [vmem:[#allocation0] sm:$0xf] %vm45, %v44
    %s48 = sshllo.u32 0, 4
    %v50 = vld [vmem:[#allocation0] sm:%s48]
    %s51 = sshllo.u32 0, 4
    %52 = vst [vmem:[%s1] sm:%s51] %v50

// kernel: active_boundary_loss.4
$region0: #{active_boundary_loss.4}
  #allocation0 [shape = 'u32[]', space=smem, size = 0x4, offset = 0x4, fixed_abs, tag = 'smem constant byte address 0x4 - core index']
  #allocation1 [shape = 'u32[144,128]{1,0:T(1,128)}', space=vmem, size = 0x12000, scoped, tag = 'internal scratch']
  %s0 = inlined_call_operand.hbm [shape: f32[2,8,16,16], index: 0, kind: input, shape index: {}]
  %s1 = inlined_call_operand.vmem [shape: f32[2,1,16,16], index: 1, kind: output, shape index: {}]
  %s2 = sld [smem:[#allocation0]]
  $region41: #{active_boundary_loss.4} parent=0
    _
  %s4 = ssub.s32 1, %s2
  %s5 = scalar_select 0, %s4, %s2
  $region1: #{active_boundary_loss.4} parent=0
    #allocation2 [shape = 'u8[131072]{0}', space=vmem, size = 0x20000, scoped, tag = 'input window, operand 0']
    #allocation3 [shape = 's32[2]{0}', space=sflag, size = 0x8, scoped, tag = 'scoped memory for active_boundary_loss.4']
    %6 = vsyncpa [#allocation3], 0
    %s7 = scalar_lea.sflag [#allocation3], 1
    %8 = vsyncpa %s7, 0
    loop: start=0, step=1, limit=4
    $region2: #{active_boundary_loss.4} parent=1 // loop_pre_header
      _
    $region3: #{active_boundary_loss.4} parent=1 // loop_header
      %s10 = sphi 0, %s14
      %p11 = scmp.ge.s32.totalorder %s10, 4
      %s20 = sphi 0, %s22
      %s23 = sphi 0, %s20
      %s24 = sphi 0, %s23
      %s40 = sphi 0, %s24
      %s46 = sphi 0, %s48
      %s49 = sphi 0, %s46
      %s50 = sphi 0, %s49
      %s66 = sphi 0, %s50
    $region4: #{active_boundary_loss.4} parent=1 // loop_header_branch
      %13 = sbr.rel (%p11) target = $region8
    $region5: #{active_boundary_loss.4} parent=1 // loop_body
      %s15 = ssub.s32 %s10, 1
      %s16 = ssub.s32 %s10, 2
      %s17 = sadd.s32 %s10, 1
      %s18 = ssub.s32 %s10, %s17
      %p19 = scmp.eq.s32.totalorder %s18, 0
      %s21 = sadd.s32 %s20, 1
      %s22 = scalar_select %p19, %s20, %s21
      %p25 = pneg %p19
      %p26 = scmp.eq.s32.totalorder %s10, 1
      %p27 = por %p25, %p26
      %p28 = scmp.ne.s32.totalorder %s20, %s23
      %p29 = scmp.eq.s32.totalorder %s10, 0
      %p30 = por %p28, %p29
      %p31 = scmp.ne.s32.totalorder %s20, %s23
      %p32 = scmp.eq.s32.totalorder %s15, 1
      %p33 = por %p31, %p32
      %p34 = scmp.ne.s32.totalorder %s23, %s24
      %p35 = scmp.eq.s32.totalorder %s15, 0
      %p36 = por %p34, %p35
      %p37 = scmp.ne.s32.totalorder %s23, %s24
      %p38 = scmp.eq.s32.totalorder %s16, 1
      %p39 = por %p37, %p38
      %p41 = scmp.ne.s32.totalorder %s24, %s40
      %p42 = scmp.eq.s32.totalorder %s16, 0
      %p43 = por %p41, %p42
      %s44 = ssub.s32 %s10, %s17
      %p45 = scmp.eq.s32.totalorder %s44, 0
      %s47 = sadd.s32 %s46, 1
      %s48 = scalar_select %p45, %s46, %s47
      %p51 = pneg %p45
      %p52 = scmp.eq.s32.totalorder %s10, 1
      %p53 = por %p51, %p52
      %p54 = scmp.ne.s32.totalorder %s46, %s49
      %p55 = scmp.eq.s32.totalorder %s10, 0
      %p56 = por %p54, %p55
      %p57 = scmp.ne.s32.totalorder %s46, %s49
      %p58 = scmp.eq.s32.totalorder %s15, 1
      %p59 = por %p57, %p58
      %p60 = scmp.ne.s32.totalorder %s49, %s50
      %p61 = scmp.eq.s32.totalorder %s15, 0
      %p62 = por %p60, %p61
      %p63 = scmp.ne.s32.totalorder %s49, %s50
      %p64 = scmp.eq.s32.totalorder %s16, 1
      %p65 = por %p63, %p64
      %p67 = scmp.ne.s32.totalorder %s50, %s66
      %p68 = scmp.eq.s32.totalorder %s16, 0
      %p69 = por %p67, %p68
      %p70 = scmp.le.s32.totalorder 1, %s10
      %p71 = scmp.lt.s32.totalorder %s10, 3
      %p72 = pnand %p70, %p71
      %p73 = pneg %p72
      // Predicated region
      $region9: #{active_boundary_loss.4} parent=5 // pred_check
        _
      $region10: #{active_boundary_loss.4} parent=5 // pred_check_branch
        %75 = sbr.rel (%p72) target = $region12
      $region11: #{active_boundary_loss.4} parent=5 // pred_region
        %s76 = ssub.s32 %s10, 1
      $region12: #{active_boundary_loss.4} parent=5 // pred_fallthru
        _
      %p77 = scmp.lt.s32.totalorder %s10, 2
      // Predicated region
      $region13: #{active_boundary_loss.4} parent=5 // pred_check
        %p78 = pneg %p77
      $region14: #{active_boundary_loss.4} parent=5 // pred_check_branch
        %80 = sbr.rel (%p78) target = $region16
      $region15: #{active_boundary_loss.4} parent=5 // pred_region
        // Predicated region
        $region17: #{active_boundary_loss.4} parent=15 // pred_check
          %p81 = pneg %p30
        $region18: #{active_boundary_loss.4} parent=15 // pred_check_branch
          %83 = sbr.rel (%p81) target = $region20
        $region19: #{active_boundary_loss.4} parent=15 // pred_region
          %s84 = sand.u32 %s20, 1
          %s85 = scalar_lea.sflag [#allocation3], %s84
          %s86 = sand.u32 %s20, 1
          %s87 = smul.addr %s86, 128
          %s88 = scalar_lea.vmem [#allocation2], %s87
          %s90 = ssub.s32 2048, 2048
          %91 = vsyncadd %s85, %s90
          %s92 = smul.addr %s10, 16
          %s93 = smul.addr %s92, 128
          %s94 = scalar_lea.hbm %s0, %s93
          %s95 = sshll.u32 %s88, 4
          %s96 = int_to_ptr.vmem [resolvable:$true] %s95
          %101 = dma.hbm_to_vmem [thread:$0]  %s94, 2048, %s96, %s85, 128, 128, 8
        $region20: #{active_boundary_loss.4} parent=15 // pred_fallthru
          _
      $region16: #{active_boundary_loss.4} parent=5 // pred_fallthru
        _
      %p102 = scmp.le.s32.totalorder 1, %s10
      %p103 = scmp.lt.s32.totalorder %s10, 3
      %p104 = pnand %p102, %p103
      %p105 = pneg %p104
      // Predicated region
      $region21: #{active_boundary_loss.4} parent=5 // pred_check
        _
      $region22: #{active_boundary_loss.4} parent=5 // pred_check_branch
        %107 = sbr.rel (%p104) target = $region24
      $region23: #{active_boundary_loss.4} parent=5 // pred_region
        %s108 = ssub.s32 %s10, 1
        %s109 = sand.u32 %s23, 1
        %s110 = scalar_lea.sflag [#allocation3], %s109
        %s111 = sand.u32 %s23, 1
        %s112 = smul.addr %s111, 128
        %s113 = scalar_lea.vmem [#allocation2], %s112
        // Predicated region
        $region25: #{active_boundary_loss.4} parent=23 // pred_check
          %p114 = pneg %p36
        $region26: #{active_boundary_loss.4} parent=23 // pred_check_branch
          %116 = sbr.rel (%p114) target = $region28
        $region27: #{active_boundary_loss.4} parent=23 // pred_region
          %117 = dma.done %s110, 2048
        $region28: #{active_boundary_loss.4} parent=23 // pred_fallthru
          _
        %s118 = sand.u32 %s23, 1
        %s119 = scalar_lea.sflag [#allocation3], %s118
        %s120 = sand.u32 %s23, 1
        %s121 = smul.addr %s120, 128
        %s122 = scalar_lea.vmem [#allocation2], %s121
        %p123 = pneg %p36
        %p124 = pneg %p33
        %p125 = pneg %p62
        %p126 = pneg %p59
        %p127 = scmp.lt.s32.totalorder %s15, 1
        %s128 = scalar_select %p127, %s15, 1
        %s129 = smul.addr %s128, 2
        %s130 = smul.addr %s129, 8
        %s131 = scalar_lea.vmem %s1, %s130
        %p132 = scmp.lt.s32.totalorder %s15, 1
        %s133 = scalar_select %p132, %s15, 1
        %s134 = smul.addr %s133, 2
        %s135 = smul.addr %s134, 8
        %s136 = scalar_lea.vmem %s1, %s135
        %v137 = vld [vmem:[%s113] sm:$0xff]
        %v138 = vld [vmem:[%s113 + $0x8] sm:$0xff]
        %v139 = vld [vmem:[%s113 + $0x10] sm:$0xff]
        %v140 = vld [vmem:[%s113 + $0x18] sm:$0xff]
        %v141 = vld [vmem:[%s113 + $0x20] sm:$0xff]
        %v142 = vld [vmem:[%s113 + $0x28] sm:$0xff]
        %v143 = vld [vmem:[%s113 + $0x30] sm:$0xff]
        %v144 = vld [vmem:[%s113 + $0x38] sm:$0xff]
        %v145 = vld [vmem:[%s113 + $0x40] sm:$0xff]
        %v146 = vld [vmem:[%s113 + $0x48] sm:$0xff]
        %v147 = vld [vmem:[%s113 + $0x50] sm:$0xff]
        %v148 = vld [vmem:[%s113 + $0x58] sm:$0xff]
        %v149 = vld [vmem:[%s113 + $0x60] sm:$0xff]
        %v150 = vld [vmem:[%s113 + $0x68] sm:$0xff]
        %v151 = vld [vmem:[%s113 + $0x70] sm:$0xff]
        %v152 = vld [vmem:[%s113 + $0x78] sm:$0xff]
        %vm153 = vcmask 130048
        %v154 = vsel %vm153, %v137, -inf
        %v155 = vsel %vm153, %v139, -inf
        %v156 = vsel %vm153, %v141, -inf
        %v157 = vmax.f32 %v154, %v156
        %v158 = vsel %vm153, %v143, -inf
        %v159 = vmax.f32 %v155, %v158
        %v160 = vsel %vm153, %v145, -inf
        %v161 = vmax.f32 %v157, %v160
        %v162 = vsel %vm153, %v147, -inf
        %v163 = vmax.f32 %v159, %v162
        %v164 = vsel %vm153, %v149, -inf
        %v165 = vmax.f32 %v161, %v164
        %v166 = vsel %vm153, %v151, -inf
        %v167 = vmax.f32 %v163, %v166
        %v168 = vmax.f32 %v165, %v167
        %v169 = vsel %vm153, %v138, -inf
        %v170 = vsel %vm153, %v140, -inf
        %v171 = vsel %vm153, %v142, -inf
        %v172 = vmax.f32 %v169, %v171
        %v173 = vsel %vm153, %v144, -inf
        %v174 = vmax.f32 %v170, %v173
        %v175 = vsel %vm153, %v146, -inf
        %v176 = vmax.f32 %v172, %v175
        %v177 = vsel %vm153, %v148, -inf
        %v178 = vmax.f32 %v174, %v177
        %v179 = vsel %vm153, %v150, -inf
        %v180 = vmax.f32 %v176, %v179
        %v181 = vsel %vm153, %v152, -inf
        %v182 = vmax.f32 %v178, %v181
        %v183 = vmax.f32 %v180, %v182
        %v184 = vsub.f32 %v137, %v168
        %v185 = vsub.f32 %v138, %v183
        %v186 = vsub.f32 %v139, %v168
        %v187 = vsub.f32 %v140, %v183
        %v188 = vsub.f32 %v141, %v168
        %v189 = vsub.f32 %v142, %v183
        %v190 = vsub.f32 %v143, %v168
        %v191 = vsub.f32 %v144, %v183
        %v192 = vsub.f32 %v145, %v168
        %v193 = vsub.f32 %v146, %v183
        %v194 = vsub.f32 %v147, %v168
        %v195 = vsub.f32 %v148, %v183
        %v196 = vsub.f32 %v149, %v168
        %v197 = vsub.f32 %v150, %v183
        %v198 = vsub.f32 %v151, %v168
        %v199 = vsub.f32 %v152, %v183
        %v200 = vmul.f32 %v184, 1.442695
        %v201 = vpow.pop %v200
        %v202 = vmul.f32 %v185, 1.442695
        %v203 = vpow.pop %v202
        %v204 = vmul.f32 %v186, 1.442695
        %v205 = vpow.pop %v204
        %v206 = vmul.f32 %v187, 1.442695
        %v207 = vpow.pop %v206
        %v208 = vmul.f32 %v188, 1.442695
        %v209 = vpow.pop %v208
        %v210 = vmul.f32 %v189, 1.442695
        %v211 = vpow.pop %v210
        %v212 = vmul.f32 %v190, 1.442695
        %v213 = vpow.pop %v212
        %v214 = vmul.f32 %v191, 1.442695
        %v215 = vpow.pop %v214
        %v216 = vmul.f32 %v192, 1.442695
        %v217 = vpow.pop %v216
        %v218 = vmul.f32 %v193, 1.442695
        %v219 = vpow.pop %v218
        %v220 = vmul.f32 %v194, 1.442695
        %v221 = vpow.pop %v220
        %v222 = vmul.f32 %v195, 1.442695
        %v223 = vpow.pop %v222
        %v224 = vmul.f32 %v196, 1.442695
        %v225 = vpow.pop %v224
        %v226 = vmul.f32 %v197, 1.442695
        %v227 = vpow.pop %v226
        %v228 = vmul.f32 %v198, 1.442695
        %v229 = vpow.pop %v228
        %v230 = vmul.f32 %v199, 1.442695
        %v231 = vpow.pop %v230
        %v232 = vsel %vm153, %v201, 0.0
        %v233 = vsel %vm153, %v205, 0.0
        %v234 = vadd.f32 %v232, %v233
        %v235 = vsel %vm153, %v209, 0.0
        %v236 = vadd.f32 %v234, %v235
        %v237 = vsel %vm153, %v213, 0.0
        %v238 = vadd.f32 %v236, %v237
        %v239 = vsel %vm153, %v217, 0.0
        %v240 = vadd.f32 %v238, %v239
        %v241 = vsel %vm153, %v221, 0.0
        %v242 = vadd.f32 %v240, %v241
        %v243 = vsel %vm153, %v225, 0.0
        %v244 = vadd.f32 %v242, %v243
        %v245 = vsel %vm153, %v229, 0.0
        %v246 = vadd.f32 %v244, %v245
        %v247 = vsel %vm153, %v203, 0.0
        %v248 = vsel %vm153, %v207, 0.0
        %v249 = vadd.f32 %v247, %v248
        %v250 = vsel %vm153, %v211, 0.0
        %v251 = vadd.f32 %v249, %v250
        %v252 = vsel %vm153, %v215, 0.0
        %v253 = vadd.f32 %v251, %v252
        %v254 = vsel %vm153, %v219, 0.0
        %v255 = vadd.f32 %v253, %v254
        %v256 = vsel %vm153, %v223, 0.0
        %v257 = vadd.f32 %v255, %v256
        %v258 = vsel %vm153, %v227, 0.0
        %v259 = vadd.f32 %v257, %v258
        %v260 = vsel %vm153, %v231, 0.0
        %v261 = vadd.f32 %v259, %v260
        %v262 = vlog2.pop %v246
        %v263 = vmul.f32 %v262, 0.6931472
        %v264 = vlog2.pop %v261
        %v265 = vmul.f32 %v264, 0.6931472
        %v266 = vsub.f32 %v184, %v263
        %v267 = vsub.f32 %v185, %v265
        %v268 = vsub.f32 %v186, %v263
        %v269 = vsub.f32 %v187, %v265
        %v270 = vsub.f32 %v188, %v263
        %v271 = vsub.f32 %v189, %v265
        %v272 = vsub.f32 %v190, %v263
        %v273 = vsub.f32 %v191, %v265
        %v274 = vsub.f32 %v192, %v263
        %v275 = vsub.f32 %v193, %v265
        %v276 = vsub.f32 %v194, %v263
        %v277 = vsub.f32 %v195, %v265
        %v278 = vsub.f32 %v196, %v263
        %v279 = vsub.f32 %v197, %v265
        %v280 = vsub.f32 %v198, %v263
        %v281 = vsub.f32 %v199, %v265
        %v282 = vrcp.pop %v246
        %v283 = vmul.f32 %v201, %v282
        %v284 = vrcp.pop %v261
        %v285 = vmul.f32 %v203, %v284
        %v286 = vmul.f32 %v205, %v282
        %v287 = vmul.f32 %v207, %v284
        %v288 = vmul.f32 %v209, %v282
        %v289 = vmul.f32 %v211, %v284
        %v290 = vmul.f32 %v213, %v282
        %v291 = vmul.f32 %v215, %v284
        %v292 = vmul.f32 %v217, %v282
        %v293 = vmul.f32 %v219, %v284
        %v294 = vmul.f32 %v221, %v282
        %v295 = vmul.f32 %v223, %v284
        %v296 = vmul.f32 %v225, %v282
        %v297 = vmul.f32 %v227, %v284
        %v298 = vmul.f32 %v229, %v282
        %v299 = vmul.f32 %v231, %v284
        %v300 = vmul.f32 %v283, %v266
        %v301 = vmul.f32 %v285, %v267
        %v302 = vmul.f32 %v286, %v268
        %v303 = vmul.f32 %v287, %v269
        %v304 = vmul.f32 %v288, %v270
        %v305 = vmul.f32 %v289, %v271
        %v306 = vmul.f32 %v290, %v272
        %v307 = vmul.f32 %v291, %v273
        %v308 = vmul.f32 %v292, %v274
        %v309 = vmul.f32 %v293, %v275
        %v310 = vmul.f32 %v294, %v276
        %v311 = vmul.f32 %v295, %v277
        %v312 = vmul.f32 %v296, %v278
        %v313 = vmul.f32 %v297, %v279
        %v314 = vmul.f32 %v298, %v280
        %v315 = vmul.f32 %v299, %v281
        %v316 = vsel %vm153, %v300, 0.0
        %v317 = vsel %vm153, %v302, 0.0
        %v318 = vadd.f32 %v316, %v317
        %v319 = vsel %vm153, %v304, 0.0
        %v320 = vadd.f32 %v318, %v319
        %v321 = vsel %vm153, %v306, 0.0
        %v322 = vadd.f32 %v320, %v321
        %v323 = vsel %vm153, %v308, 0.0
        %v324 = vadd.f32 %v322, %v323
        %v325 = vsel %vm153, %v310, 0.0
        %v326 = vadd.f32 %v324, %v325
        %v327 = vsel %vm153, %v312, 0.0
        %v328 = vadd.f32 %v326, %v327
        %v329 = vsel %vm153, %v314, 0.0
        %v330 = vadd.f32 %v328, %v329
        %v331 = vsel %vm153, %v301, 0.0
        %v332 = vsel %vm153, %v303, 0.0
        %v333 = vadd.f32 %v331, %v332
        %v334 = vsel %vm153, %v305, 0.0
        %v335 = vadd.f32 %v333, %v334
        %v336 = vsel %vm153, %v307, 0.0
        %v337 = vadd.f32 %v335, %v336
        %v338 = vsel %vm153, %v309, 0.0
        %v339 = vadd.f32 %v337, %v338
        %v340 = vsel %vm153, %v311, 0.0
        %v341 = vadd.f32 %v339, %v340
        %v342 = vsel %vm153, %v313, 0.0
        %v343 = vadd.f32 %v341, %v342
        %v344 = vsel %vm153, %v315, 0.0
        %v345 = vadd.f32 %v343, %v344
        %v346 = vlaneseq
        %v347 = vshrl.u32 %v346, 7
        %v348 = vadd.s32 %v347, 8
        %v349 = vlaneseq
        %v350 = vand.u32 %v349, 127
        %v351 = vrot.slane %v266, 1
        %v352 = vrot.slane %v268, 1
        %v353 = vrot.slane %v270, 1
        %v354 = vrot.slane %v272, 1
        %v355 = vrot.slane %v274, 1
        %v356 = vrot.slane %v276, 1
        %v357 = vrot.slane %v278, 1
        %v358 = vrot.slane %v280, 1
        %v359 = vrot.slane %v267, 1
        %v360 = vrot.slane %v269, 1
        %v361 = vrot.slane %v271, 1
        %v362 = vrot.slane %v273, 1
        %v363 = vrot.slane %v275, 1
        %v364 = vrot.slane %v277, 1
        %v365 = vrot.slane %v279, 1
        %v366 = vrot.slane %v281, 1
        %vm367 = vcmp.lt.s32.totalorder %v347, 7
        %v368 = vsel %vm367, %v351, %v359
        %v369 = vsel %vm367, %v352, %v360
        %v370 = vsel %vm367, %v353, %v361
        %v371 = vsel %vm367, %v354, %v362
        %v372 = vsel %vm367, %v355, %v363
        %v373 = vsel %vm367, %v356, %v364
        %v374 = vsel %vm367, %v357, %v365
        %v375 = vsel %vm367, %v358, %v366
        %v376 = vsel %vm367, %v359, %v351
        %v377 = vsel %vm367, %v360, %v352
        %v378 = vsel %vm367, %v361, %v353
        %v379 = vsel %vm367, %v362, %v354
        %v380 = vsel %vm367, %v363, %v355
        %v381 = vsel %vm367, %v364, %v356
        %v382 = vsel %vm367, %v365, %v357
        %v383 = vsel %vm367, %v366, %v358
        %vm384 = vcmp.lt.s32.totalorder %v347, 15
        %vm385 = vcmp.lt.s32.totalorder %v348, 15
        %v386 = vsel %vm384, %v368, 0.0
        %v387 = vsel %vm385, %v376, 0.0
        %v388 = vsel %vm384, %v369, 0.0
        %v389 = vsel %vm385, %v377, 0.0
        %v390 = vsel %vm384, %v370, 0.0
        %v391 = vsel %vm385, %v378, 0.0
        %v392 = vsel %vm384, %v371, 0.0
        %v393 = vsel %vm385, %v379, 0.0
        %v394 = vsel %vm384, %v372, 0.0
        %v395 = vsel %vm385, %v380, 0.0
        %v396 = vsel %vm384, %v373, 0.0
        %v397 = vsel %vm385, %v381, 0.0
        %v398 = vsel %vm384, %v374, 0.0
        %v399 = vsel %vm385, %v382, 0.0
        %v400 = vsel %vm384, %v375, 0.0
        %v401 = vsel %vm385, %v383, 0.0
        %v402 = vmul.f32 %v283, %v386
        %v403 = vmul.f32 %v285, %v387
        %v404 = vmul.f32 %v286, %v388
        %v405 = vmul.f32 %v287, %v389
        %v406 = vmul.f32 %v288, %v390
        %v407 = vmul.f32 %v289, %v391
        %v408 = vmul.f32 %v290, %v392
        %v409 = vmul.f32 %v291, %v393
        %v410 = vmul.f32 %v292, %v394
        %v411 = vmul.f32 %v293, %v395
        %v412 = vmul.f32 %v294, %v396
        %v413 = vmul.f32 %v295, %v397
        %v414 = vmul.f32 %v296, %v398
        %v415 = vmul.f32 %v297, %v399
        %v416 = vmul.f32 %v298, %v400
        %v417 = vmul.f32 %v299, %v401
        %v418 = vsel %vm153, %v402, 0.0
        %v419 = vsel %vm153, %v404, 0.0
        %v420 = vadd.f32 %v418, %v419
        %v421 = vsel %vm153, %v406, 0.0
        %v422 = vadd.f32 %v420, %v421
        %v423 = vsel %vm153, %v408, 0.0
        %v424 = vadd.f32 %v422, %v423
        %v425 = vsel %vm153, %v410, 0.0
        %v426 = vadd.f32 %v424, %v425
        %v427 = vsel %vm153, %v412, 0.0
        %v428 = vadd.f32 %v426, %v427
        %v429 = vsel %vm153, %v414, 0.0
        %v430 = vadd.f32 %v428, %v429
        %v431 = vsel %vm153, %v416, 0.0
        %v432 = vadd.f32 %v430, %v431
        %v433 = vsel %vm153, %v403, 0.0
        %v434 = vsel %vm153, %v405, 0.0
        %v435 = vadd.f32 %v433, %v434
        %v436 = vsel %vm153, %v407, 0.0
        %v437 = vadd.f32 %v435, %v436
        %v438 = vsel %vm153, %v409, 0.0
        %v439 = vadd.f32 %v437, %v438
        %v440 = vsel %vm153, %v411, 0.0
        %v441 = vadd.f32 %v439, %v440
        %v442 = vsel %vm153, %v413, 0.0
        %v443 = vadd.f32 %v441, %v442
        %v444 = vsel %vm153, %v415, 0.0
        %v445 = vadd.f32 %v443, %v444
        %v446 = vsel %vm153, %v417, 0.0
        %v447 = vadd.f32 %v445, %v446
        %v448 = vsub.f32 %v330, %v432
        %v449 = vsub.f32 %v345, %v447
        %v450 = vsel %vm384, %v448, 0.0
        %v451 = vsel %vm385, %v449, 0.0
        %vm452 = vcmask 1047680
        %453 = vrot.lane.b32.xlu0 %v266, 16
        %v454 = vpop.permute.xlu0 %453
        %v455 = vsel %vm452, %v454, %v266
        %456 = vrot.lane.b32.xlu0 %v267, 16
        %v457 = vpop.permute.xlu0 %456
        %v458 = vsel %vm452, %v457, %v267
        %459 = vrot.lane.b32.xlu0 %v268, 16
        %v460 = vpop.permute.xlu0 %459
        %v461 = vsel %vm452, %v460, %v268
        %462 = vrot.lane.b32.xlu0 %v269, 16
        %v463 = vpop.permute.xlu0 %462
        %v464 = vsel %vm452, %v463, %v269
        %465 = vrot.lane.b32.xlu0 %v270, 16
        %v466 = vpop.permute.xlu0 %465
        %v467 = vsel %vm452, %v466, %v270
        %468 = vrot.lane.b32.xlu0 %v271, 16
        %v469 = vpop.permute.xlu0 %468
        %v470 = vsel %vm452, %v469, %v271
        %471 = vrot.lane.b32.xlu0 %v272, 16
        %v472 = vpop.permute.xlu0 %471
        %v473 = vsel %vm452, %v472, %v272
        %474 = vrot.lane.b32.xlu0 %v273, 16
        %v475 = vpop.permute.xlu0 %474
        %v476 = vsel %vm452, %v475, %v273
        %477 = vrot.lane.b32.xlu0 %v274, 16
        %v478 = vpop.permute.xlu0 %477
        %v479 = vsel %vm452, %v478, %v274
        %480 = vrot.lane.b32.xlu0 %v275, 16
        %v481 = vpop.permute.xlu0 %480
        %v482 = vsel %vm452, %v481, %v275
        %483 = vrot.lane.b32.xlu0 %v276, 16
        %v484 = vpop.permute.xlu0 %483
        %v485 = vsel %vm452, %v484, %v276
        %486 = vrot.lane.b32.xlu0 %v277, 16
        %v487 = vpop.permute.xlu0 %486
        %v488 = vsel %vm452, %v487, %v277
        %489 = vrot.lane.b32.xlu0 %v278, 16
        %v490 = vpop.permute.xlu0 %489
        %v491 = vsel %vm452, %v490, %v278
        %492 = vrot.lane.b32.xlu0 %v279, 16
        %v493 = vpop.permute.xlu0 %492
        %v494 = vsel %vm452, %v493, %v279
        %495 = vrot.lane.b32.xlu0 %v280, 16
        %v496 = vpop.permute.xlu0 %495
        %v497 = vsel %vm452, %v496, %v280
        %498 = vrot.lane.b32.xlu0 %v281, 16
        %v499 = vpop.permute.xlu0 %498
        %v500 = vsel %vm452, %v499, %v281
        %501 = vrot.lane.b32.xlu0 %v455, 16
        %v502 = vpop.permute.xlu0 %501
        %503 = vrot.lane.b32.xlu0 %v458, 16
        %v504 = vpop.permute.xlu0 %503
        %505 = vrot.lane.b32.xlu0 %v461, 16
        %v506 = vpop.permute.xlu0 %505
        %507 = vrot.lane.b32.xlu0 %v464, 16
        %v508 = vpop.permute.xlu0 %507
        %509 = vrot.lane.b32.xlu0 %v467, 16
        %v510 = vpop.permute.xlu0 %509
        %511 = vrot.lane.b32.xlu0 %v470, 16
        %v512 = vpop.permute.xlu0 %511
        %513 = vrot.lane.b32.xlu0 %v473, 16
        %v514 = vpop.permute.xlu0 %513
        %515 = vrot.lane.b32.xlu0 %v476, 16
        %v516 = vpop.permute.xlu0 %515
        %517 = vrot.lane.b32.xlu0 %v479, 16
        %v518 = vpop.permute.xlu0 %517
        %519 = vrot.lane.b32.xlu0 %v482, 16
        %v520 = vpop.permute.xlu0 %519
        %521 = vrot.lane.b32.xlu0 %v485, 16
        %v522 = vpop.permute.xlu0 %521
        %523 = vrot.lane.b32.xlu0 %v488, 16
        %v524 = vpop.permute.xlu0 %523
        %525 = vrot.lane.b32.xlu0 %v491, 16
        %v526 = vpop.permute.xlu0 %525
        %527 = vrot.lane.b32.xlu0 %v494, 16
        %v528 = vpop.permute.xlu0 %527
        %529 = vrot.lane.b32.xlu0 %v497, 16
        %v530 = vpop.permute.xlu0 %529
        %531 = vrot.lane.b32.xlu0 %v500, 16
        %v532 = vpop.permute.xlu0 %531
        %v533 = vsel %vm452, %v502, %v266
        %v534 = vsel %vm452, %v504, %v267
        %v535 = vsel %vm452, %v506, %v268
        %v536 = vsel %vm452, %v508, %v269
        %v537 = vsel %vm452, %v510, %v270
        %v538 = vsel %vm452, %v512, %v271
        %v539 = vsel %vm452, %v514, %v272
        %v540 = vsel %vm452, %v516, %v273
        %v541 = vsel %vm452, %v518, %v274
        %v542 = vsel %vm452, %v520, %v275
        %v543 = vsel %vm452, %v522, %v276
        %v544 = vsel %vm452, %v524, %v277
        %v545 = vsel %vm452, %v526, %v278
        %v546 = vsel %vm452, %v528, %v279
        %v547 = vsel %vm452, %v530, %v280
        %v548 = vsel %vm452, %v532, %v281
        %vm549 = vcmp.lt.s32.totalorder %v350, 15
        %566 = vrot.lane.b32.xlu0 %v533, 127
        %v567 = vpop.permute.xlu0 %566
        %568 = vrot.lane.b32.xlu0 %v534, 127
        %v569 = vpop.permute.xlu0 %568
        %570 = vrot.lane.b32.xlu0 %v535, 127
        %v571 = vpop.permute.xlu0 %570
        %572 = vrot.lane.b32.xlu0 %v536, 127
        %v573 = vpop.permute.xlu0 %572
        %574 = vrot.lane.b32.xlu0 %v537, 127
        %v575 = vpop.permute.xlu0 %574
        %576 = vrot.lane.b32.xlu0 %v538, 127
        %v577 = vpop.permute.xlu0 %576
        %578 = vrot.lane.b32.xlu0 %v539, 127
        %v579 = vpop.permute.xlu0 %578
        %580 = vrot.lane.b32.xlu0 %v540, 127
        %v581 = vpop.permute.xlu0 %580
        %582 = vrot.lane.b32.xlu0 %v541, 127
        %v583 = vpop.permute.xlu0 %582
        %584 = vrot.lane.b32.xlu0 %v542, 127
        %v585 = vpop.permute.xlu0 %584
        %586 = vrot.lane.b32.xlu0 %v543, 127
        %v587 = vpop.permute.xlu0 %586
        %588 = vrot.lane.b32.xlu0 %v544, 127
        %v589 = vpop.permute.xlu0 %588
        %590 = vrot.lane.b32.xlu0 %v545, 127
        %v591 = vpop.permute.xlu0 %590
        %592 = vrot.lane.b32.xlu0 %v546, 127
        %v593 = vpop.permute.xlu0 %592
        %594 = vrot.lane.b32.xlu0 %v547, 127
        %v595 = vpop.permute.xlu0 %594
        %596 = vrot.lane.b32.xlu0 %v548, 127
        %v597 = vpop.permute.xlu0 %596
        %v614 = vsel %vm549, %v567, 0.0
        %v615 = vsel %vm549, %v569, 0.0
        %v616 = vsel %vm549, %v571, 0.0
        %v617 = vsel %vm549, %v573, 0.0
        %v618 = vsel %vm549, %v575, 0.0
        %v619 = vsel %vm549, %v577, 0.0
        %v620 = vsel %vm549, %v579, 0.0
        %v621 = vsel %vm549, %v581, 0.0
        %v622 = vsel %vm549, %v583, 0.0
        %v623 = vsel %vm549, %v585, 0.0
        %v624 = vsel %vm549, %v587, 0.0
        %v625 = vsel %vm549, %v589, 0.0
        %v626 = vsel %vm549, %v591, 0.0
        %v627 = vsel %vm549, %v593, 0.0
        %v628 = vsel %vm549, %v595, 0.0
        %v629 = vsel %vm549, %v597, 0.0
        %v630 = vmul.f32 %v283, %v614
        %v631 = vmul.f32 %v285, %v615
        %v632 = vmul.f32 %v286, %v616
        %v633 = vmul.f32 %v287, %v617
        %v634 = vmul.f32 %v288, %v618
        %v635 = vmul.f32 %v289, %v619
        %v636 = vmul.f32 %v290, %v620
        %v637 = vmul.f32 %v291, %v621
        %v638 = vmul.f32 %v292, %v622
        %v639 = vmul.f32 %v293, %v623
        %v640 = vmul.f32 %v294, %v624
        %v641 = vmul.f32 %v295, %v625
        %v642 = vmul.f32 %v296, %v626
        %v643 = vmul.f32 %v297, %v627
        %v644 = vmul.f32 %v298, %v628
        %v645 = vmul.f32 %v299, %v629
        %v646 = vsel %vm153, %v630, 0.0
        %v647 = vsel %vm153, %v632, 0.0
        %v648 = vadd.f32 %v646, %v647
        %v649 = vsel %vm153, %v634, 0.0
        %v650 = vadd.f32 %v648, %v649
        %v651 = vsel %vm153, %v636, 0.0
        %v652 = vadd.f32 %v650, %v651
        %v653 = vsel %vm153, %v638, 0.0
        %v654 = vadd.f32 %v652, %v653
        %v655 = vsel %vm153, %v640, 0.0
        %v656 = vadd.f32 %v654, %v655
        %v657 = vsel %vm153, %v642, 0.0
        %v658 = vadd.f32 %v656, %v657
        %v659 = vsel %vm153, %v644, 0.0
        %v660 = vadd.f32 %v658, %v659
        %v661 = vsel %vm153, %v631, 0.0
        %v662 = vsel %vm153, %v633, 0.0
        %v663 = vadd.f32 %v661, %v662
        %v664 = vsel %vm153, %v635, 0.0
        %v665 = vadd.f32 %v663, %v664
        %v666 = vsel %vm153, %v637, 0.0
        %v667 = vadd.f32 %v665, %v666
        %v668 = vsel %vm153, %v639, 0.0
        %v669 = vadd.f32 %v667, %v668
        %v670 = vsel %vm153, %v641, 0.0
        %v671 = vadd.f32 %v669, %v670
        %v672 = vsel %vm153, %v643, 0.0
        %v673 = vadd.f32 %v671, %v672
        %v674 = vsel %vm153, %v645, 0.0
        %v675 = vadd.f32 %v673, %v674
        %v676 = vsub.f32 %v330, %v660
        %v677 = vsub.f32 %v345, %v675
        %v678 = vsel %vm549, %v676, 0.0
        %v679 = vsel %vm549, %v677, 0.0
        %v680 = vadd.f32 %v450, %v678
        %v681 = vadd.f32 %v451, %v679
        %682 = vst.msk [vmem:[%s136] sm:$0xff] %vm153, %v680
        %683 = vst.msk [vmem:[%s136 + $0x8] sm:$0xff] %vm153, %v681
        %p684 = scmp.lt.s32.totalorder %s15, 1
        %s685 = scalar_select %p684, %s15, 1
        %s686 = smul.addr %s685, 2
        %s687 = smul.addr %s686, 8
        %s688 = scalar_lea.vmem %s1, %s687
        // Predicated region
        $region29: #{active_boundary_loss.4} parent=23 // pred_check
          %p689 = pneg %p59
        $region30: #{active_boundary_loss.4} parent=23 // pred_check_branch
          %691 = sbr.rel (%p689) target = $region32
        $region31: #{active_boundary_loss.4} parent=23 // pred_region
          _
        $region32: #{active_boundary_loss.4} parent=23 // pred_fallthru
          _
      $region24: #{active_boundary_loss.4} parent=5 // pred_fallthru
        _
      %p692 = scmp.le.s32.totalorder 2, %s10
      // Predicated region
      $region33: #{active_boundary_loss.4} parent=5 // pred_check
        %p693 = pneg %p692
      $region34: #{active_boundary_loss.4} parent=5 // pred_check_branch
        %695 = sbr.rel (%p693) target = $region36
      $region35: #{active_boundary_loss.4} parent=5 // pred_region
        %s696 = ssub.s32 %s10, 2
        // Predicated region
        $region37: #{active_boundary_loss.4} parent=35 // pred_check
          %p697 = pneg %p65
        $region38: #{active_boundary_loss.4} parent=35 // pred_check_branch
          %699 = sbr.rel (%p697) target = $region40
        $region39: #{active_boundary_loss.4} parent=35 // pred_region
          %p700 = scmp.lt.s32.totalorder %s16, 1
          %s701 = scalar_select %p700, %s16, 1
          %s702 = smul.addr %s701, 2
          %s703 = smul.addr %s702, 8
          %s704 = scalar_lea.vmem %s1, %s703
        $region40: #{active_boundary_loss.4} parent=35 // pred_fallthru
          _
      $region36: #{active_boundary_loss.4} parent=5 // pred_fallthru
        _
    $region6: #{active_boundary_loss.4} parent=1 // loop_footer
      %s14 = sadd.s32 1, %s10
    $region7: #{active_boundary_loss.4} parent=1 // loop_footer_branch
      %9 = sbr.rel target = $region3
    $region8: #{active_boundary_loss.4} parent=1 // loop_exit
      _
    %705 = vsyncpa [#allocation3], 1
    %s706 = scalar_lea.sflag [#allocation3], 1
    %707 = vsyncpa %s706, 1

// kernel: active_boundary_loss.3
$region0: #{active_boundary_loss.3}
  #allocation0 [shape = 'u32[]', space=smem, size = 0x4, offset = 0x4, fixed_abs, tag = 'smem constant byte address 0x4 - core index']
  #allocation1 [shape = 'u32[144,128]{1,0:T(1,128)}', space=vmem, size = 0x12000, scoped, tag = 'internal scratch']
  %s0 = inlined_call_operand.vmem [shape: s32[2,1,16,16], index: 0, kind: input, shape index: {}]
  %s1 = inlined_call_operand.vmem [shape: f32[2,1,16,16], index: 1, kind: output, shape index: {}]
  %s2 = sld [smem:[#allocation0]]
  $region37: #{active_boundary_loss.3} parent=0
    _
  %s4 = ssub.s32 1, %s2
  %s5 = scalar_select 0, %s4, %s2
  loop: start=0, step=1, limit=4
  $region2: #{active_boundary_loss.3} parent=0 // loop_pre_header
    _
  $region3: #{active_boundary_loss.3} parent=0 // loop_header
    %s7 = sphi 0, %s11
    %p8 = scmp.ge.s32.totalorder %s7, 4
    %s17 = sphi 0, %s19
    %s20 = sphi 0, %s17
    %s21 = sphi 0, %s20
    %s37 = sphi 0, %s21
    %s43 = sphi 0, %s45
    %s46 = sphi 0, %s43
    %s47 = sphi 0, %s46
    %s63 = sphi 0, %s47
  $region4: #{active_boundary_loss.3} parent=0 // loop_header_branch
    %10 = sbr.rel (%p8) target = $region8
  $region5: #{active_boundary_loss.3} parent=0 // loop_body
    %s12 = ssub.s32 %s7, 1
    %s13 = ssub.s32 %s7, 2
    %s14 = sadd.s32 %s7, 1
    %s15 = ssub.s32 %s7, %s14
    %p16 = scmp.eq.s32.totalorder %s15, 0
    %s18 = sadd.s32 %s17, 1
    %s19 = scalar_select %p16, %s17, %s18
    %p22 = pneg %p16
    %p23 = scmp.eq.s32.totalorder %s7, 1
    %p24 = por %p22, %p23
    %p25 = scmp.ne.s32.totalorder %s17, %s20
    %p26 = scmp.eq.s32.totalorder %s7, 0
    %p27 = por %p25, %p26
    %p28 = scmp.ne.s32.totalorder %s17, %s20
    %p29 = scmp.eq.s32.totalorder %s12, 1
    %p30 = por %p28, %p29
    %p31 = scmp.ne.s32.totalorder %s20, %s21
    %p32 = scmp.eq.s32.totalorder %s12, 0
    %p33 = por %p31, %p32
    %p34 = scmp.ne.s32.totalorder %s20, %s21
    %p35 = scmp.eq.s32.totalorder %s13, 1
    %p36 = por %p34, %p35
    %p38 = scmp.ne.s32.totalorder %s21, %s37
    %p39 = scmp.eq.s32.totalorder %s13, 0
    %p40 = por %p38, %p39
    %s41 = ssub.s32 %s7, %s14
    %p42 = scmp.eq.s32.totalorder %s41, 0
    %s44 = sadd.s32 %s43, 1
    %s45 = scalar_select %p42, %s43, %s44
    %p48 = pneg %p42
    %p49 = scmp.eq.s32.totalorder %s7, 1
    %p50 = por %p48, %p49
    %p51 = scmp.ne.s32.totalorder %s43, %s46
    %p52 = scmp.eq.s32.totalorder %s7, 0
    %p53 = por %p51, %p52
    %p54 = scmp.ne.s32.totalorder %s43, %s46
    %p55 = scmp.eq.s32.totalorder %s12, 1
    %p56 = por %p54, %p55
    %p57 = scmp.ne.s32.totalorder %s46, %s47
    %p58 = scmp.eq.s32.totalorder %s12, 0
    %p59 = por %p57, %p58
    %p60 = scmp.ne.s32.totalorder %s46, %s47
    %p61 = scmp.eq.s32.totalorder %s13, 1
    %p62 = por %p60, %p61
    %p64 = scmp.ne.s32.totalorder %s47, %s63
    %p65 = scmp.eq.s32.totalorder %s13, 0
    %p66 = por %p64, %p65
    %p67 = scmp.le.s32.totalorder 1, %s7
    %p68 = scmp.lt.s32.totalorder %s7, 3
    %p69 = pnand %p67, %p68
    %p70 = pneg %p69
    // Predicated region
    $region9: #{active_boundary_loss.3} parent=5 // pred_check
      _
    $region10: #{active_boundary_loss.3} parent=5 // pred_check_branch
      %72 = sbr.rel (%p69) target = $region12
    $region11: #{active_boundary_loss.3} parent=5 // pred_region
      %s73 = ssub.s32 %s7, 1
    $region12: #{active_boundary_loss.3} parent=5 // pred_fallthru
      _
    %p74 = scmp.lt.s32.totalorder %s7, 2
    // Predicated region
    $region13: #{active_boundary_loss.3} parent=5 // pred_check
      %p75 = pneg %p74
    $region14: #{active_boundary_loss.3} parent=5 // pred_check_branch
      %77 = sbr.rel (%p75) target = $region16
    $region15: #{active_boundary_loss.3} parent=5 // pred_region
      // Predicated region
      $region17: #{active_boundary_loss.3} parent=15 // pred_check
        %p78 = pneg %p27
      $region18: #{active_boundary_loss.3} parent=15 // pred_check_branch
        %80 = sbr.rel (%p78) target = $region20
      $region19: #{active_boundary_loss.3} parent=15 // pred_region
        %p81 = scmp.lt.s32.totalorder %s7, 1
        %s82 = scalar_select %p81, %s7, 1
        %s83 = smul.addr %s82, 2
        %s84 = smul.addr %s83, 8
        %s85 = scalar_lea.vmem %s0, %s84
      $region20: #{active_boundary_loss.3} parent=15 // pred_fallthru
        _
    $region16: #{active_boundary_loss.3} parent=5 // pred_fallthru
      _
    %p86 = scmp.le.s32.totalorder 1, %s7
    %p87 = scmp.lt.s32.totalorder %s7, 3
    %p88 = pnand %p86, %p87
    %p89 = pneg %p88
    // Predicated region
    $region21: #{active_boundary_loss.3} parent=5 // pred_check
      _
    $region22: #{active_boundary_loss.3} parent=5 // pred_check_branch
      %91 = sbr.rel (%p88) target = $region24
    $region23: #{active_boundary_loss.3} parent=5 // pred_region
      %s92 = ssub.s32 %s7, 1
      %p93 = scmp.lt.s32.totalorder %s12, 1
      %s94 = scalar_select %p93, %s12, 1
      %s95 = smul.addr %s94, 2
      %s96 = smul.addr %s95, 8
      %s97 = scalar_lea.vmem %s0, %s96
      %p98 = pneg %p33
      %p99 = pneg %p30
      %p100 = pneg %p59
      %p101 = pneg %p56
      %p102 = scmp.lt.s32.totalorder %s12, 1
      %s103 = scalar_select %p102, %s12, 1
      %s104 = smul.addr %s103, 2
      %s105 = smul.addr %s104, 8
      %s106 = scalar_lea.vmem %s1, %s105
      %p107 = scmp.lt.s32.totalorder %s12, 1
      %s108 = scalar_select %p107, %s12, 1
      %s109 = smul.addr %s108, 2
      %s110 = smul.addr %s109, 8
      %s111 = scalar_lea.vmem %s0, %s110
      %p112 = scmp.lt.s32.totalorder %s12, 1
      %s113 = scalar_select %p112, %s12, 1
      %s114 = smul.addr %s113, 2
      %s115 = smul.addr %s114, 8
      %s116 = scalar_lea.vmem %s1, %s115
      %v117 = vld [vmem:[%s111] sm:$0xff]
      %v118 = vld [vmem:[%s111 + $0x8] sm:$0xff]
      %v119 = vcvt.s32.f32 %v117
      %v120 = vcvt.s32.f32 %v118
      %v121 = vrot.slane %v119, 1
      %v122 = vrot.slane %v120, 1
      %v123 = vlaneseq
      %v124 = vshrl.u32 %v123, 7
      %vm125 = vcmp.lt.s32.totalorder %v124, 7
      %v126 = vsel %vm125, %v121, %v122
      %v127 = vsel %vm125, %v122, %v121
      %v128 = vadd.s32 %v124, 8
      %vm129 = vcmp.lt.s32.totalorder %v124, 15
      %vm130 = vcmp.lt.s32.totalorder %v128, 15
      %v131 = vsel %vm129, %v126, 0.0
      %v132 = vsel %vm130, %v127, 0.0
      %vm133 = vcmask 1047680
      %134 = vrot.lane.b32.xlu0 %v119, 16
      %v135 = vpop.permute.xlu0 %134
      %v136 = vsel %vm133, %v135, %v119
      %137 = vrot.lane.b32.xlu0 %v120, 16
      %v138 = vpop.permute.xlu0 %137
      %v139 = vsel %vm133, %v138, %v120
      %140 = vrot.lane.b32.xlu0 %v136, 16
      %v141 = vpop.permute.xlu0 %140
      %142 = vrot.lane.b32.xlu0 %v139, 16
      %v143 = vpop.permute.xlu0 %142
      %v144 = vsel %vm133, %v141, %v119
      %v145 = vsel %vm133, %v143, %v120
      %v146 = vlaneseq
      %v147 = vand.u32 %v146, 127
      %vm148 = vcmp.lt.s32.totalorder %v147, 15
      %151 = vrot.lane.b32.xlu0 %v144, 127
      %v152 = vpop.permute.xlu0 %151
      %153 = vrot.lane.b32.xlu0 %v145, 127
      %v154 = vpop.permute.xlu0 %153
      %v157 = vsel %vm148, %v152, 0.0
      %v158 = vsel %vm148, %v154, 0.0
      %vm159 = vcmp.ne.f32.partialorder %v131, %v119
      %vm160 = vcmp.ne.f32.partialorder %v132, %v120
      %vm161 = vmand %vm159, %vm129
      %vm162 = vmand %vm160, %vm130
      %vm163 = vcmp.ne.f32.partialorder %v157, %v119
      %vm164 = vcmp.ne.f32.partialorder %v158, %v120
      %vm165 = vmand %vm163, %vm148
      %vm166 = vmand %vm164, %vm148
      %vm167 = vmor %vm161, %vm165
      %vm168 = vmor %vm162, %vm166
      %vm169 = vcmp.eq.s32.totalorder %v117, 255
      %vm170 = vcmp.eq.s32.totalorder %v118, 255
      %vm171 = vmor %vm167, %vm169
      %vm172 = vmor %vm168, %vm170
      %v173 = vsel %vm171, 0.0, 35.0
      %v174 = vsel %vm172, 0.0, 35.0
      %175 = vrot.lane.b32.xlu0 %v173, 16
      %v176 = vpop.permute.xlu0 %175
      %v177 = vsel %vm133, %v176, %v173
      %178 = vrot.lane.b32.xlu0 %v174, 16
      %v179 = vpop.permute.xlu0 %178
      %v180 = vsel %vm133, %v179, %v174
      %181 = vrot.lane.b32.xlu0 %v177, 16
      %v182 = vpop.permute.xlu0 %181
      %183 = vrot.lane.b32.xlu0 %v180, 16
      %v184 = vpop.permute.xlu0 %183
      %v185 = vsel %vm133, %v182, %v173
      %v186 = vsel %vm133, %v184, %v174
      %189 = vrot.lane.b32.xlu0 %v185, 127
      %v190 = vpop.permute.xlu0 %189
      %191 = vrot.lane.b32.xlu0 %v186, 127
      %v192 = vpop.permute.xlu0 %191
      %v195 = vsel %vm148, %v190, 1e+09
      %v196 = vsel %vm148, %v192, 1e+09
      %v197 = vmin.f32 %v173, %v195
      %v198 = vmin.f32 %v174, %v196
      %199 = vrot.lane.b32.xlu0 %v197, 16
      %v200 = vpop.permute.xlu0 %199
      %v201 = vsel %vm133, %v200, %v197
      %202 = vrot.lane.b32.xlu0 %v198, 16
      %v203 = vpop.permute.xlu0 %202
      %v204 = vsel %vm133, %v203, %v198
      %205 = vrot.lane.b32.xlu0 %v201, 16
      %v206 = vpop.permute.xlu0 %205
      %207 = vrot.lane.b32.xlu0 %v204, 16
      %v208 = vpop.permute.xlu0 %207
      %v209 = vsel %vm133, %v206, %v197
      %v210 = vsel %vm133, %v208, %v198
      %vm211 = vcmp.ge.s32.totalorder %v147, 1
      %214 = vrot.lane.b32.xlu0 %v209, 113
      %v215 = vpop.permute.xlu0 %214
      %216 = vrot.lane.b32.xlu0 %v210, 113
      %v217 = vpop.permute.xlu0 %216
      %v220 = vsel %vm211, %v215, 1e+09
      %v221 = vsel %vm211, %v217, 1e+09
      %v222 = vmin.f32 %v197, %v220
      %v223 = vmin.f32 %v198, %v221
      %v224 = vrot.slane %v222, 1
      %v225 = vrot.slane %v223, 1
      %v226 = vsel %vm125, %v224, %v225
      %v227 = vsel %vm125, %v225, %v224
      %v228 = vsel %vm129, %v226, 1e+09
      %v229 = vsel %vm130, %v227, 1e+09
      %v230 = vmin.f32 %v222, %v228
      %v231 = vmin.f32 %v223, %v229
      %v232 = vrot.slane %v230, 7
      %v233 = vrot.slane %v231, 7
      %vm234 = vcmp.lt.s32.totalorder %v124, 1
      %v235 = vsel %vm234, %v232, %v233
      %v236 = vsel %vm234, %v233, %v232
      %vm237 = vcmp.ge.s32.totalorder %v124, 1
      %vm238 = vcmp.ge.s32.totalorder %v128, 1
      %v239 = vsel %vm237, %v236, 1e+09
      %v240 = vsel %vm238, %v235, 1e+09
      %v241 = vmin.f32 %v230, %v239
      %v242 = vmin.f32 %v231, %v240
      %v243 = vadd.f32 %v241, 1.0
      %v244 = vadd.f32 %v242, 1.0
      %v245 = vmin.f32 %v173, %v243
      %v246 = vmin.f32 %v174, %v244
      %247 = vrot.lane.b32.xlu0 %v245, 16
      %v248 = vpop.permute.xlu0 %247
      %v249 = vsel %vm133, %v248, %v245
      %250 = vrot.lane.b32.xlu0 %v246, 16
      %v251 = vpop.permute.xlu0 %250
      %v252 = vsel %vm133, %v251, %v246
      %253 = vrot.lane.b32.xlu0 %v249, 16
      %v254 = vpop.permute.xlu0 %253
      %255 = vrot.lane.b32.xlu0 %v252, 16
      %v256 = vpop.permute.xlu0 %255
      %v257 = vsel %vm133, %v254, %v245
      %v258 = vsel %vm133, %v256, %v246
      %261 = vrot.lane.b32.xlu0 %v257, 127
      %v262 = vpop.permute.xlu0 %261
      %263 = vrot.lane.b32.xlu0 %v258, 127
      %v264 = vpop.permute.xlu0 %263
      %v267 = vsel %vm148, %v262, 1e+09
      %v268 = vsel %vm148, %v264, 1e+09
      %v269 = vmin.f32 %v245, %v267
      %v270 = vmin.f32 %v246, %v268
      %271 = vrot.lane.b32.xlu0 %v269, 16
      %v272 = vpop.permute.xlu0 %271
      %v273 = vsel %vm133, %v272, %v269
      %274 = vrot.lane.b32.xlu0 %v270, 16
      %v275 = vpop.permute.xlu0 %274
      %v276 = vsel %vm133, %v275, %v270
      %277 = vrot.lane.b32.xlu0 %v273, 16
      %v278 = vpop.permute.xlu0 %277
      %279 = vrot.lane.b32.xlu0 %v276, 16
      %v280 = vpop.permute.xlu0 %279
      %v281 = vsel %vm133, %v278, %v269
      %v282 = vsel %vm133, %v280, %v270
      %285 = vrot.lane.b32.xlu0 %v281, 113
      %v286 = vpop.permute.xlu0 %285
      %287 = vrot.lane.b32.xlu0 %v282, 113
      %v288 = vpop.permute.xlu0 %287
      %v291 = vsel %vm211, %v286, 1e+09
      %v292 = vsel %vm211, %v288, 1e+09
      %v293 = vmin.f32 %v269, %v291
      %v294 = vmin.f32 %v270, %v292
      %v295 = vrot.slane %v293, 1
      %v296 = vrot.slane %v294, 1
      %v297 = vsel %vm125, %v295, %v296
      %v298 = vsel %vm125, %v296, %v295
      %v299 = vsel %vm129, %v297, 1e+09
      %v300 = vsel %vm130, %v298, 1e+09
      %v301 = vmin.f32 %v293, %v299
      %v302 = vmin.f32 %v294, %v300
      %v303 = vrot.slane %v301, 7
      %v304 = vrot.slane %v302, 7
      %v305 = vsel %vm234, %v303, %v304
      %v306 = vsel %vm234, %v304, %v303
      %v307 = vsel %vm237, %v306, 1e+09
      %v308 = vsel %vm238, %v305, 1e+09
      %v309 = vmin.f32 %v301, %v307
      %v310 = vmin.f32 %v302, %v308
      %311 = vrot.lane.b32.xlu0 %v309, 16
      %v312 = vpop.permute.xlu0 %311
      %v313 = vsel %vm133, %v312, %v309
      %314 = vrot.lane.b32.xlu0 %v310, 16
      %v315 = vpop.permute.xlu0 %314
      %v316 = vsel %vm133, %v315, %v310
      %317 = vrot.lane.b32.xlu0 %v313, 16
      %v318 = vpop.permute.xlu0 %317
      %319 = vrot.lane.b32.xlu0 %v316, 16
      %v320 = vpop.permute.xlu0 %319
      %v321 = vsel %vm133, %v318, %v309
      %v322 = vsel %vm133, %v320, %v310
      %325 = vrot.lane.b32.xlu0 %v321, 127
      %v326 = vpop.permute.xlu0 %325
      %327 = vrot.lane.b32.xlu0 %v322, 127
      %v328 = vpop.permute.xlu0 %327
      %v331 = vsel %vm148, %v326, 1e+09
      %v332 = vsel %vm148, %v328, 1e+09
      %v333 = vmin.f32 %v309, %v331
      %v334 = vmin.f32 %v310, %v332
      %335 = vrot.lane.b32.xlu0 %v333, 16
      %v336 = vpop.permute.xlu0 %335
      %v337 = vsel %vm133, %v336, %v333
      %338 = vrot.lane.b32.xlu0 %v334, 16
      %v339 = vpop.permute.xlu0 %338
      %v340 = vsel %vm133, %v339, %v334
      %341 = vrot.lane.b32.xlu0 %v337, 16
      %v342 = vpop.permute.xlu0 %341
      %343 = vrot.lane.b32.xlu0 %v340, 16
      %v344 = vpop.permute.xlu0 %343
      %v345 = vsel %vm133, %v342, %v333
      %v346 = vsel %vm133, %v344, %v334
      %349 = vrot.lane.b32.xlu0 %v345, 113
      %v350 = vpop.permute.xlu0 %349
      %351 = vrot.lane.b32.xlu0 %v346, 113
      %v352 = vpop.permute.xlu0 %351
      %v355 = vsel %vm211, %v350, 1e+09
      %v356 = vsel %vm211, %v352, 1e+09
      %v357 = vmin.f32 %v333, %v355
      %v358 = vmin.f32 %v334, %v356
      %v359 = vrot.slane %v357, 1
      %v360 = vrot.slane %v358, 1
      %v361 = vsel %vm125, %v359, %v360
      %v362 = vsel %vm125, %v360, %v359
      %v363 = vsel %vm129, %v361, 1e+09
      %v364 = vsel %vm130, %v362, 1e+09
      %v365 = vmin.f32 %v357, %v363
      %v366 = vmin.f32 %v358, %v364
      %v367 = vrot.slane %v365, 7
      %v368 = vrot.slane %v366, 7
      %v369 = vsel %vm234, %v367, %v368
      %v370 = vsel %vm234, %v368, %v367
      %v371 = vsel %vm237, %v370, 1e+09
      %v372 = vsel %vm238, %v369, 1e+09
      %v373 = vmin.f32 %v365, %v371
      %v374 = vmin.f32 %v366, %v372
      %v375 = vadd.f32 %v373, 2.0
      %v376 = vadd.f32 %v374, 2.0
      %v377 = vmin.f32 %v245, %v375
      %v378 = vmin.f32 %v246, %v376
      %379 = vrot.lane.b32.xlu0 %v377, 16
      %v380 = vpop.permute.xlu0 %379
      %v381 = vsel %vm133, %v380, %v377
      %382 = vrot.lane.b32.xlu0 %v378, 16
      %v383 = vpop.permute.xlu0 %382
      %v384 = vsel %vm133, %v383, %v378
      %385 = vrot.lane.b32.xlu0 %v381, 16
      %v386 = vpop.permute.xlu0 %385
      %387 = vrot.lane.b32.xlu0 %v384, 16
      %v388 = vpop.permute.xlu0 %387
      %v389 = vsel %vm133, %v386, %v377
      %v390 = vsel %vm133, %v388, %v378
      %393 = vrot.lane.b32.xlu0 %v389, 127
      %v394 = vpop.permute.xlu0 %393
      %395 = vrot.lane.b32.xlu0 %v390, 127
      %v396 = vpop.permute.xlu0 %395
      %v399 = vsel %vm148, %v394, 1e+09
      %v400 = vsel %vm148, %v396, 1e+09
      %v401 = vmin.f32 %v377, %v399
      %v402 = vmin.f32 %v378, %v400
      %403 = vrot.lane.b32.xlu0 %v401, 16
      %v404 = vpop.permute.xlu0 %403
      %v405 = vsel %vm133, %v404, %v401
      %406 = vrot.lane.b32.xlu0 %v402, 16
      %v407 = vpop.permute.xlu0 %406
      %v408 = vsel %vm133, %v407, %v402
      %409 = vrot.lane.b32.xlu0 %v405, 16
      %v410 = vpop.permute.xlu0 %409
      %411 = vrot.lane.b32.xlu0 %v408, 16
      %v412 = vpop.permute.xlu0 %411
      %v413 = vsel %vm133, %v410, %v401
      %v414 = vsel %vm133, %v412, %v402
      %417 = vrot.lane.b32.xlu0 %v413, 113
      %v418 = vpop.permute.xlu0 %417
      %419 = vrot.lane.b32.xlu0 %v414, 113
      %v420 = vpop.permute.xlu0 %419
      %v423 = vsel %vm211, %v418, 1e+09
      %v424 = vsel %vm211, %v420, 1e+09
      %v425 = vmin.f32 %v401, %v423
      %v426 = vmin.f32 %v402, %v424
      %v427 = vrot.slane %v425, 1
      %v428 = vrot.slane %v426, 1
      %v429 = vsel %vm125, %v427, %v428
      %v430 = vsel %vm125, %v428, %v427
      %v431 = vsel %vm129, %v429, 1e+09
      %v432 = vsel %vm130, %v430, 1e+09
      %v433 = vmin.f32 %v425, %v431
      %v434 = vmin.f32 %v426, %v432
      %v435 = vrot.slane %v433, 7
      %v436 = vrot.slane %v434, 7
      %v437 = vsel %vm234, %v435, %v436
      %v438 = vsel %vm234, %v436, %v435
      %v439 = vsel %vm237, %v438, 1e+09
      %v440 = vsel %vm238, %v437, 1e+09
      %v441 = vmin.f32 %v433, %v439
      %v442 = vmin.f32 %v434, %v440
      %443 = vrot.lane.b32.xlu0 %v441, 16
      %v444 = vpop.permute.xlu0 %443
      %v445 = vsel %vm133, %v444, %v441
      %446 = vrot.lane.b32.xlu0 %v442, 16
      %v447 = vpop.permute.xlu0 %446
      %v448 = vsel %vm133, %v447, %v442
      %449 = vrot.lane.b32.xlu0 %v445, 16
      %v450 = vpop.permute.xlu0 %449
      %451 = vrot.lane.b32.xlu0 %v448, 16
      %v452 = vpop.permute.xlu0 %451
      %v453 = vsel %vm133, %v450, %v441
      %v454 = vsel %vm133, %v452, %v442
      %vm455 = vcmp.lt.s32.totalorder %v147, 14
      %458 = vrot.lane.b32.xlu0 %v453, 126
      %v459 = vpop.permute.xlu0 %458
      %460 = vrot.lane.b32.xlu0 %v454, 126
      %v461 = vpop.permute.xlu0 %460
      %v464 = vsel %vm455, %v459, 1e+09
      %v465 = vsel %vm455, %v461, 1e+09
      %v466 = vmin.f32 %v441, %v464
      %v467 = vmin.f32 %v442, %v465
      %468 = vrot.lane.b32.xlu0 %v466, 16
      %v469 = vpop.permute.xlu0 %468
      %v470 = vsel %vm133, %v469, %v466
      %471 = vrot.lane.b32.xlu0 %v467, 16
      %v472 = vpop.permute.xlu0 %471
      %v473 = vsel %vm133, %v472, %v467
      %474 = vrot.lane.b32.xlu0 %v470, 16
      %v475 = vpop.permute.xlu0 %474
      %476 = vrot.lane.b32.xlu0 %v473, 16
      %v477 = vpop.permute.xlu0 %476
      %v478 = vsel %vm133, %v475, %v466
      %v479 = vsel %vm133, %v477, %v467
      %vm480 = vcmp.ge.s32.totalorder %v147, 2
      %483 = vrot.lane.b32.xlu0 %v478, 114
      %v484 = vpop.permute.xlu0 %483
      %485 = vrot.lane.b32.xlu0 %v479, 114
      %v486 = vpop.permute.xlu0 %485
      %v489 = vsel %vm480, %v484, 1e+09
      %v490 = vsel %vm480, %v486, 1e+09
      %v491 = vmin.f32 %v466, %v489
      %v492 = vmin.f32 %v467, %v490
      %v493 = vrot.slane %v491, 2
      %v494 = vrot.slane %v492, 2
      %vm495 = vcmp.lt.s32.totalorder %v124, 6
      %v496 = vsel %vm495, %v493, %v494
      %v497 = vsel %vm495, %v494, %v493
      %vm498 = vcmp.lt.s32.totalorder %v124, 14
      %vm499 = vcmp.lt.s32.totalorder %v128, 14
      %v500 = vsel %vm498, %v496, 1e+09
      %v501 = vsel %vm499, %v497, 1e+09
      %v502 = vmin.f32 %v491, %v500
      %v503 = vmin.f32 %v492, %v501
      %v504 = vrot.slane %v502, 6
      %v505 = vrot.slane %v503, 6
      %vm506 = vcmp.lt.s32.totalorder %v124, 2
      %v507 = vsel %vm506, %v504, %v505
      %v508 = vsel %vm506, %v505, %v504
      %vm509 = vcmp.ge.s32.totalorder %v124, 2
      %vm510 = vcmp.ge.s32.totalorder %v128, 2
      %v511 = vsel %vm509, %v508, 1e+09
      %v512 = vsel %vm510, %v507, 1e+09
      %v513 = vmin.f32 %v502, %v511
      %v514 = vmin.f32 %v503, %v512
      %515 = vrot.lane.b32.xlu0 %v513, 16
      %v516 = vpop.permute.xlu0 %515
      %v517 = vsel %vm133, %v516, %v513
      %518 = vrot.lane.b32.xlu0 %v514, 16
      %v519 = vpop.permute.xlu0 %518
      %v520 = vsel %vm133, %v519, %v514
      %521 = vrot.lane.b32.xlu0 %v517, 16
      %v522 = vpop.permute.xlu0 %521
      %523 = vrot.lane.b32.xlu0 %v520, 16
      %v524 = vpop.permute.xlu0 %523
      %v525 = vsel %vm133, %v522, %v513
      %v526 = vsel %vm133, %v524, %v514
      %529 = vrot.lane.b32.xlu0 %v525, 127
      %v530 = vpop.permute.xlu0 %529
      %531 = vrot.lane.b32.xlu0 %v526, 127
      %v532 = vpop.permute.xlu0 %531
      %v535 = vsel %vm148, %v530, 1e+09
      %v536 = vsel %vm148, %v532, 1e+09
      %v537 = vmin.f32 %v513, %v535
      %v538 = vmin.f32 %v514, %v536
      %539 = vrot.lane.b32.xlu0 %v537, 16
      %v540 = vpop.permute.xlu0 %539
      %v541 = vsel %vm133, %v540, %v537
      %542 = vrot.lane.b32.xlu0 %v538, 16
      %v543 = vpop.permute.xlu0 %542
      %v544 = vsel %vm133, %v543, %v538
      %545 = vrot.lane.b32.xlu0 %v541, 16
      %v546 = vpop.permute.xlu0 %545
      %547 = vrot.lane.b32.xlu0 %v544, 16
      %v548 = vpop.permute.xlu0 %547
      %v549 = vsel %vm133, %v546, %v537
      %v550 = vsel %vm133, %v548, %v538
      %553 = vrot.lane.b32.xlu0 %v549, 113
      %v554 = vpop.permute.xlu0 %553
      %555 = vrot.lane.b32.xlu0 %v550, 113
      %v556 = vpop.permute.xlu0 %555
      %v559 = vsel %vm211, %v554, 1e+09
      %v560 = vsel %vm211, %v556, 1e+09
      %v561 = vmin.f32 %v537, %v559
      %v562 = vmin.f32 %v538, %v560
      %v563 = vrot.slane %v561, 1
      %v564 = vrot.slane %v562, 1
      %v565 = vsel %vm125, %v563, %v564
      %v566 = vsel %vm125, %v564, %v563
      %v567 = vsel %vm129, %v565, 1e+09
      %v568 = vsel %vm130, %v566, 1e+09
      %v569 = vmin.f32 %v561, %v567
      %v570 = vmin.f32 %v562, %v568
      %v571 = vrot.slane %v569, 7
      %v572 = vrot.slane %v570, 7
      %v573 = vsel %vm234, %v571, %v572
      %v574 = vsel %vm234, %v572, %v571
      %v575 = vsel %vm237, %v574, 1e+09
      %v576 = vsel %vm238, %v573, 1e+09
      %v577 = vmin.f32 %v569, %v575
      %v578 = vmin.f32 %v570, %v576
      %v579 = vadd.f32 %v577, 4.0
      %v580 = vadd.f32 %v578, 4.0
      %v581 = vmin.f32 %v377, %v579
      %v582 = vmin.f32 %v378, %v580
      %583 = vrot.lane.b32.xlu0 %v581, 16
      %v584 = vpop.permute.xlu0 %583
      %v585 = vsel %vm133, %v584, %v581
      %586 = vrot.lane.b32.xlu0 %v582, 16
      %v587 = vpop.permute.xlu0 %586
      %v588 = vsel %vm133, %v587, %v582
      %589 = vrot.lane.b32.xlu0 %v585, 16
      %v590 = vpop.permute.xlu0 %589
      %591 = vrot.lane.b32.xlu0 %v588, 16
      %v592 = vpop.permute.xlu0 %591
      %v593 = vsel %vm133, %v590, %v581
      %v594 = vsel %vm133, %v592, %v582
      %597 = vrot.lane.b32.xlu0 %v593, 127
      %v598 = vpop.permute.xlu0 %597
      %599 = vrot.lane.b32.xlu0 %v594, 127
      %v600 = vpop.permute.xlu0 %599
      %v603 = vsel %vm148, %v598, 1e+09
      %v604 = vsel %vm148, %v600, 1e+09
      %v605 = vmin.f32 %v581, %v603
      %v606 = vmin.f32 %v582, %v604
      %607 = vrot.lane.b32.xlu0 %v605, 16
      %v608 = vpop.permute.xlu0 %607
      %v609 = vsel %vm133, %v608, %v605
      %610 = vrot.lane.b32.xlu0 %v606, 16
      %v611 = vpop.permute.xlu0 %610
      %v612 = vsel %vm133, %v611, %v606
      %613 = vrot.lane.b32.xlu0 %v609, 16
      %v614 = vpop.permute.xlu0 %613
      %615 = vrot.lane.b32.xlu0 %v612, 16
      %v616 = vpop.permute.xlu0 %615
      %v617 = vsel %vm133, %v614, %v605
      %v618 = vsel %vm133, %v616, %v606
      %621 = vrot.lane.b32.xlu0 %v617, 113
      %v622 = vpop.permute.xlu0 %621
      %623 = vrot.lane.b32.xlu0 %v618, 113
      %v624 = vpop.permute.xlu0 %623
      %v627 = vsel %vm211, %v622, 1e+09
      %v628 = vsel %vm211, %v624, 1e+09
      %v629 = vmin.f32 %v605, %v627
      %v630 = vmin.f32 %v606, %v628
      %v631 = vrot.slane %v629, 1
      %v632 = vrot.slane %v630, 1
      %v633 = vsel %vm125, %v631, %v632
      %v634 = vsel %vm125, %v632, %v631
      %v635 = vsel %vm129, %v633, 1e+09
      %v636 = vsel %vm130, %v634, 1e+09
      %v637 = vmin.f32 %v629, %v635
      %v638 = vmin.f32 %v630, %v636
      %v639 = vrot.slane %v637, 7
      %v640 = vrot.slane %v638, 7
      %v641 = vsel %vm234, %v639, %v640
      %v642 = vsel %vm234, %v640, %v639
      %v643 = vsel %vm237, %v642, 1e+09
      %v644 = vsel %vm238, %v641, 1e+09
      %v645 = vmin.f32 %v637, %v643
      %v646 = vmin.f32 %v638, %v644
      %647 = vrot.lane.b32.xlu0 %v645, 16
      %v648 = vpop.permute.xlu0 %647
      %v649 = vsel %vm133, %v648, %v645
      %650 = vrot.lane.b32.xlu0 %v646, 16
      %v651 = vpop.permute.xlu0 %650
      %v652 = vsel %vm133, %v651, %v646
      %653 = vrot.lane.b32.xlu0 %v649, 16
      %v654 = vpop.permute.xlu0 %653
      %655 = vrot.lane.b32.xlu0 %v652, 16
      %v656 = vpop.permute.xlu0 %655
      %v657 = vsel %vm133, %v654, %v645
      %v658 = vsel %vm133, %v656, %v646
      %661 = vrot.lane.b32.xlu0 %v657, 126
      %v662 = vpop.permute.xlu0 %661
      %663 = vrot.lane.b32.xlu0 %v658, 126
      %v664 = vpop.permute.xlu0 %663
      %v667 = vsel %vm455, %v662, 1e+09
      %v668 = vsel %vm455, %v664, 1e+09
      %v669 = vmin.f32 %v645, %v667
      %v670 = vmin.f32 %v646, %v668
      %671 = vrot.lane.b32.xlu0 %v669, 16
      %v672 = vpop.permute.xlu0 %671
      %v673 = vsel %vm133, %v672, %v669
      %674 = vrot.lane.b32.xlu0 %v670, 16
      %v675 = vpop.permute.xlu0 %674
      %v676 = vsel %vm133, %v675, %v670
      %677 = vrot.lane.b32.xlu0 %v673, 16
      %v678 = vpop.permute.xlu0 %677
      %679 = vrot.lane.b32.xlu0 %v676, 16
      %v680 = vpop.permute.xlu0 %679
      %v681 = vsel %vm133, %v678, %v669
      %v682 = vsel %vm133, %v680, %v670
      %685 = vrot.lane.b32.xlu0 %v681, 114
      %v686 = vpop.permute.xlu0 %685
      %687 = vrot.lane.b32.xlu0 %v682, 114
      %v688 = vpop.permute.xlu0 %687
      %v691 = vsel %vm480, %v686, 1e+09
      %v692 = vsel %vm480, %v688, 1e+09
      %v693 = vmin.f32 %v669, %v691
      %v694 = vmin.f32 %v670, %v692
      %v695 = vrot.slane %v693, 2
      %v696 = vrot.slane %v694, 2
      %v697 = vsel %vm495, %v695, %v696
      %v698 = vsel %vm495, %v696, %v695
      %v699 = vsel %vm498, %v697, 1e+09
      %v700 = vsel %vm499, %v698, 1e+09
      %v701 = vmin.f32 %v693, %v699
      %v702 = vmin.f32 %v694, %v700
      %v703 = vrot.slane %v701, 6
      %v704 = vrot.slane %v702, 6
      %v705 = vsel %vm506, %v703, %v704
      %v706 = vsel %vm506, %v704, %v703
      %v707 = vsel %vm509, %v706, 1e+09
      %v708 = vsel %vm510, %v705, 1e+09
      %v709 = vmin.f32 %v701, %v707
      %v710 = vmin.f32 %v702, %v708
      %711 = vrot.lane.b32.xlu0 %v709, 16
      %v712 = vpop.permute.xlu0 %711
      %v713 = vsel %vm133, %v712, %v709
      %714 = vrot.lane.b32.xlu0 %v710, 16
      %v715 = vpop.permute.xlu0 %714
      %v716 = vsel %vm133, %v715, %v710
      %717 = vrot.lane.b32.xlu0 %v713, 16
      %v718 = vpop.permute.xlu0 %717
      %719 = vrot.lane.b32.xlu0 %v716, 16
      %v720 = vpop.permute.xlu0 %719
      %v721 = vsel %vm133, %v718, %v709
      %v722 = vsel %vm133, %v720, %v710
      %vm723 = vcmp.lt.s32.totalorder %v147, 12
      %726 = vrot.lane.b32.xlu0 %v721, 124
      %v727 = vpop.permute.xlu0 %726
      %728 = vrot.lane.b32.xlu0 %v722, 124
      %v729 = vpop.permute.xlu0 %728
      %v732 = vsel %vm723, %v727, 1e+09
      %v733 = vsel %vm723, %v729, 1e+09
      %v734 = vmin.f32 %v709, %v732
      %v735 = vmin.f32 %v710, %v733
      %736 = vrot.lane.b32.xlu0 %v734, 16
      %v737 = vpop.permute.xlu0 %736
      %v738 = vsel %vm133, %v737, %v734
      %739 = vrot.lane.b32.xlu0 %v735, 16
      %v740 = vpop.permute.xlu0 %739
      %v741 = vsel %vm133, %v740, %v735
      %742 = vrot.lane.b32.xlu0 %v738, 16
      %v743 = vpop.permute.xlu0 %742
      %744 = vrot.lane.b32.xlu0 %v741, 16
      %v745 = vpop.permute.xlu0 %744
      %v746 = vsel %vm133, %v743, %v734
      %v747 = vsel %vm133, %v745, %v735
      %vm748 = vcmp.ge.s32.totalorder %v147, 4
      %751 = vrot.lane.b32.xlu0 %v746, 116
      %v752 = vpop.permute.xlu0 %751
      %753 = vrot.lane.b32.xlu0 %v747, 116
      %v754 = vpop.permute.xlu0 %753
      %v757 = vsel %vm748, %v752, 1e+09
      %v758 = vsel %vm748, %v754, 1e+09
      %v759 = vmin.f32 %v734, %v757
      %v760 = vmin.f32 %v735, %v758
      %v761 = vrot.slane %v759, 4
      %v762 = vrot.slane %v760, 4
      %vm763 = vcmp.lt.s32.totalorder %v124, 4
      %v764 = vsel %vm763, %v761, %v762
      %v765 = vsel %vm763, %v762, %v761
      %vm766 = vcmp.lt.s32.totalorder %v124, 12
      %vm767 = vcmp.lt.s32.totalorder %v128, 12
      %v768 = vsel %vm766, %v764, 1e+09
      %v769 = vsel %vm767, %v765, 1e+09
      %v770 = vmin.f32 %v759, %v768
      %v771 = vmin.f32 %v760, %v769
      %v772 = vrot.slane %v770, 4
      %v773 = vrot.slane %v771, 4
      %v774 = vsel %vm763, %v772, %v773
      %v775 = vsel %vm763, %v773, %v772
      %vm776 = vcmp.ge.s32.totalorder %v124, 4
      %vm777 = vcmp.ge.s32.totalorder %v128, 4
      %v778 = vsel %vm776, %v775, 1e+09
      %v779 = vsel %vm777, %v774, 1e+09
      %v780 = vmin.f32 %v770, %v778
      %v781 = vmin.f32 %v771, %v779
      %782 = vrot.lane.b32.xlu0 %v780, 16
      %v783 = vpop.permute.xlu0 %782
      %v784 = vsel %vm133, %v783, %v780
      %785 = vrot.lane.b32.xlu0 %v781, 16
      %v786 = vpop.permute.xlu0 %785
      %v787 = vsel %vm133, %v786, %v781
      %788 = vrot.lane.b32.xlu0 %v784, 16
      %v789 = vpop.permute.xlu0 %788
      %790 = vrot.lane.b32.xlu0 %v787, 16
      %v791 = vpop.permute.xlu0 %790
      %v792 = vsel %vm133, %v789, %v780
      %v793 = vsel %vm133, %v791, %v781
      %796 = vrot.lane.b32.xlu0 %v792, 127
      %v797 = vpop.permute.xlu0 %796
      %798 = vrot.lane.b32.xlu0 %v793, 127
      %v799 = vpop.permute.xlu0 %798
      %v802 = vsel %vm148, %v797, 1e+09
      %v803 = vsel %vm148, %v799, 1e+09
      %v804 = vmin.f32 %v780, %v802
      %v805 = vmin.f32 %v781, %v803
      %806 = vrot.lane.b32.xlu0 %v804, 16
      %v807 = vpop.permute.xlu0 %806
      %v808 = vsel %vm133, %v807, %v804
      %809 = vrot.lane.b32.xlu0 %v805, 16
      %v810 = vpop.permute.xlu0 %809
      %v811 = vsel %vm133, %v810, %v805
      %812 = vrot.lane.b32.xlu0 %v808, 16
      %v813 = vpop.permute.xlu0 %812
      %814 = vrot.lane.b32.xlu0 %v811, 16
      %v815 = vpop.permute.xlu0 %814
      %v816 = vsel %vm133, %v813, %v804
      %v817 = vsel %vm133, %v815, %v805
      %820 = vrot.lane.b32.xlu0 %v816, 113
      %v821 = vpop.permute.xlu0 %820
      %822 = vrot.lane.b32.xlu0 %v817, 113
      %v823 = vpop.permute.xlu0 %822
      %v826 = vsel %vm211, %v821, 1e+09
      %v827 = vsel %vm211, %v823, 1e+09
      %v828 = vmin.f32 %v804, %v826
      %v829 = vmin.f32 %v805, %v827
      %v830 = vrot.slane %v828, 1
      %v831 = vrot.slane %v829, 1
      %v832 = vsel %vm125, %v830, %v831
      %v833 = vsel %vm125, %v831, %v830
      %v834 = vsel %vm129, %v832, 1e+09
      %v835 = vsel %vm130, %v833, 1e+09
      %v836 = vmin.f32 %v828, %v834
      %v837 = vmin.f32 %v829, %v835
      %v838 = vrot.slane %v836, 7
      %v839 = vrot.slane %v837, 7
      %v840 = vsel %vm234, %v838, %v839
      %v841 = vsel %vm234, %v839, %v838
      %v842 = vsel %vm237, %v841, 1e+09
      %v843 = vsel %vm238, %v840, 1e+09
      %v844 = vmin.f32 %v836, %v842
      %v845 = vmin.f32 %v837, %v843
      %v846 = vadd.f32 %v844, 8.0
      %v847 = vadd.f32 %v845, 8.0
      %v848 = vmin.f32 %v581, %v846
      %v849 = vmin.f32 %v582, %v847
      %850 = vrot.lane.b32.xlu0 %v848, 16
      %v851 = vpop.permute.xlu0 %850
      %v852 = vsel %vm133, %v851, %v848
      %853 = vrot.lane.b32.xlu0 %v849, 16
      %v854 = vpop.permute.xlu0 %853
      %v855 = vsel %vm133, %v854, %v849
      %856 = vrot.lane.b32.xlu0 %v852, 16
      %v857 = vpop.permute.xlu0 %856
      %858 = vrot.lane.b32.xlu0 %v855, 16
      %v859 = vpop.permute.xlu0 %858
      %v860 = vsel %vm133, %v857, %v848
      %v861 = vsel %vm133, %v859, %v849
      %864 = vrot.lane.b32.xlu0 %v860, 127
      %v865 = vpop.permute.xlu0 %864
      %866 = vrot.lane.b32.xlu0 %v861, 127
      %v867 = vpop.permute.xlu0 %866
      %v870 = vsel %vm148, %v865, 1e+09
      %v871 = vsel %vm148, %v867, 1e+09
      %v872 = vmin.f32 %v848, %v870
      %v873 = vmin.f32 %v849, %v871
      %874 = vrot.lane.b32.xlu0 %v872, 16
      %v875 = vpop.permute.xlu0 %874
      %v876 = vsel %vm133, %v875, %v872
      %877 = vrot.lane.b32.xlu0 %v873, 16
      %v878 = vpop.permute.xlu0 %877
      %v879 = vsel %vm133, %v878, %v873
      %880 = vrot.lane.b32.xlu0 %v876, 16
      %v881 = vpop.permute.xlu0 %880
      %882 = vrot.lane.b32.xlu0 %v879, 16
      %v883 = vpop.permute.xlu0 %882
      %v884 = vsel %vm133, %v881, %v872
      %v885 = vsel %vm133, %v883, %v873
      %888 = vrot.lane.b32.xlu0 %v884, 113
      %v889 = vpop.permute.xlu0 %888
      %890 = vrot.lane.b32.xlu0 %v885, 113
      %v891 = vpop.permute.xlu0 %890
      %v894 = vsel %vm211, %v889, 1e+09
      %v895 = vsel %vm211, %v891, 1e+09
      %v896 = vmin.f32 %v872, %v894
      %v897 = vmin.f32 %v873, %v895
      %v898 = vrot.slane %v896, 1
      %v899 = vrot.slane %v897, 1
      %v900 = vsel %vm125, %v898, %v899
      %v901 = vsel %vm125, %v899, %v898
      %v902 = vsel %vm129, %v900, 1e+09
      %v903 = vsel %vm130, %v901, 1e+09
      %v904 = vmin.f32 %v896, %v902
      %v905 = vmin.f32 %v897, %v903
      %v906 = vrot.slane %v904, 7
      %v907 = vrot.slane %v905, 7
      %v908 = vsel %vm234, %v906, %v907
      %v909 = vsel %vm234, %v907, %v906
      %v910 = vsel %vm237, %v909, 1e+09
      %v911 = vsel %vm238, %v908, 1e+09
      %v912 = vmin.f32 %v904, %v910
      %v913 = vmin.f32 %v905, %v911
      %914 = vrot.lane.b32.xlu0 %v912, 16
      %v915 = vpop.permute.xlu0 %914
      %v916 = vsel %vm133, %v915, %v912
      %917 = vrot.lane.b32.xlu0 %v913, 16
      %v918 = vpop.permute.xlu0 %917
      %v919 = vsel %vm133, %v918, %v913
      %920 = vrot.lane.b32.xlu0 %v916, 16
      %v921 = vpop.permute.xlu0 %920
      %922 = vrot.lane.b32.xlu0 %v919, 16
      %v923 = vpop.permute.xlu0 %922
      %v924 = vsel %vm133, %v921, %v912
      %v925 = vsel %vm133, %v923, %v913
      %928 = vrot.lane.b32.xlu0 %v924, 126
      %v929 = vpop.permute.xlu0 %928
      %930 = vrot.lane.b32.xlu0 %v925, 126
      %v931 = vpop.permute.xlu0 %930
      %v934 = vsel %vm455, %v929, 1e+09
      %v935 = vsel %vm455, %v931, 1e+09
      %v936 = vmin.f32 %v912, %v934
      %v937 = vmin.f32 %v913, %v935
      %938 = vrot.lane.b32.xlu0 %v936, 16
      %v939 = vpop.permute.xlu0 %938
      %v940 = vsel %vm133, %v939, %v936
      %941 = vrot.lane.b32.xlu0 %v937, 16
      %v942 = vpop.permute.xlu0 %941
      %v943 = vsel %vm133, %v942, %v937
      %944 = vrot.lane.b32.xlu0 %v940, 16
      %v945 = vpop.permute.xlu0 %944
      %946 = vrot.lane.b32.xlu0 %v943, 16
      %v947 = vpop.permute.xlu0 %946
      %v948 = vsel %vm133, %v945, %v936
      %v949 = vsel %vm133, %v947, %v937
      %952 = vrot.lane.b32.xlu0 %v948, 114
      %v953 = vpop.permute.xlu0 %952
      %954 = vrot.lane.b32.xlu0 %v949, 114
      %v955 = vpop.permute.xlu0 %954
      %v958 = vsel %vm480, %v953, 1e+09
      %v959 = vsel %vm480, %v955, 1e+09
      %v960 = vmin.f32 %v936, %v958
      %v961 = vmin.f32 %v937, %v959
      %v962 = vrot.slane %v960, 2
      %v963 = vrot.slane %v961, 2
      %v964 = vsel %vm495, %v962, %v963
      %v965 = vsel %vm495, %v963, %v962
      %v966 = vsel %vm498, %v964, 1e+09
      %v967 = vsel %vm499, %v965, 1e+09
      %v968 = vmin.f32 %v960, %v966
      %v969 = vmin.f32 %v961, %v967
      %v970 = vrot.slane %v968, 6
      %v971 = vrot.slane %v969, 6
      %v972 = vsel %vm506, %v970, %v971
      %v973 = vsel %vm506, %v971, %v970
      %v974 = vsel %vm509, %v973, 1e+09
      %v975 = vsel %vm510, %v972, 1e+09
      %v976 = vmin.f32 %v968, %v974
      %v977 = vmin.f32 %v969, %v975
      %978 = vrot.lane.b32.xlu0 %v976, 16
      %v979 = vpop.permute.xlu0 %978
      %v980 = vsel %vm133, %v979, %v976
      %981 = vrot.lane.b32.xlu0 %v977, 16
      %v982 = vpop.permute.xlu0 %981
      %v983 = vsel %vm133, %v982, %v977
      %984 = vrot.lane.b32.xlu0 %v980, 16
      %v985 = vpop.permute.xlu0 %984
      %986 = vrot.lane.b32.xlu0 %v983, 16
      %v987 = vpop.permute.xlu0 %986
      %v988 = vsel %vm133, %v985, %v976
      %v989 = vsel %vm133, %v987, %v977
      %992 = vrot.lane.b32.xlu0 %v988, 124
      %v993 = vpop.permute.xlu0 %992
      %994 = vrot.lane.b32.xlu0 %v989, 124
      %v995 = vpop.permute.xlu0 %994
      %v998 = vsel %vm723, %v993, 1e+09
      %v999 = vsel %vm723, %v995, 1e+09
      %v1000 = vmin.f32 %v976, %v998
      %v1001 = vmin.f32 %v977, %v999
      %1002 = vrot.lane.b32.xlu0 %v1000, 16
      %v1003 = vpop.permute.xlu0 %1002
      %v1004 = vsel %vm133, %v1003, %v1000
      %1005 = vrot.lane.b32.xlu0 %v1001, 16
      %v1006 = vpop.permute.xlu0 %1005
      %v1007 = vsel %vm133, %v1006, %v1001
      %1008 = vrot.lane.b32.xlu0 %v1004, 16
      %v1009 = vpop.permute.xlu0 %1008
      %1010 = vrot.lane.b32.xlu0 %v1007, 16
      %v1011 = vpop.permute.xlu0 %1010
      %v1012 = vsel %vm133, %v1009, %v1000
      %v1013 = vsel %vm133, %v1011, %v1001
      %1016 = vrot.lane.b32.xlu0 %v1012, 116
      %v1017 = vpop.permute.xlu0 %1016
      %1018 = vrot.lane.b32.xlu0 %v1013, 116
      %v1019 = vpop.permute.xlu0 %1018
      %v1022 = vsel %vm748, %v1017, 1e+09
      %v1023 = vsel %vm748, %v1019, 1e+09
      %v1024 = vmin.f32 %v1000, %v1022
      %v1025 = vmin.f32 %v1001, %v1023
      %v1026 = vrot.slane %v1024, 4
      %v1027 = vrot.slane %v1025, 4
      %v1028 = vsel %vm763, %v1026, %v1027
      %v1029 = vsel %vm763, %v1027, %v1026
      %v1030 = vsel %vm766, %v1028, 1e+09
      %v1031 = vsel %vm767, %v1029, 1e+09
      %v1032 = vmin.f32 %v1024, %v1030
      %v1033 = vmin.f32 %v1025, %v1031
      %v1034 = vrot.slane %v1032, 4
      %v1035 = vrot.slane %v1033, 4
      %v1036 = vsel %vm763, %v1034, %v1035
      %v1037 = vsel %vm763, %v1035, %v1034
      %v1038 = vsel %vm776, %v1037, 1e+09
      %v1039 = vsel %vm777, %v1036, 1e+09
      %v1040 = vmin.f32 %v1032, %v1038
      %v1041 = vmin.f32 %v1033, %v1039
      %1042 = vrot.lane.b32.xlu0 %v1040, 16
      %v1043 = vpop.permute.xlu0 %1042
      %v1044 = vsel %vm133, %v1043, %v1040
      %1045 = vrot.lane.b32.xlu0 %v1041, 16
      %v1046 = vpop.permute.xlu0 %1045
      %v1047 = vsel %vm133, %v1046, %v1041
      %1048 = vrot.lane.b32.xlu0 %v1044, 16
      %v1049 = vpop.permute.xlu0 %1048
      %1050 = vrot.lane.b32.xlu0 %v1047, 16
      %v1051 = vpop.permute.xlu0 %1050
      %v1052 = vsel %vm133, %v1049, %v1040
      %v1053 = vsel %vm133, %v1051, %v1041
      %vm1054 = vcmp.lt.s32.totalorder %v147, 8
      %1057 = vrot.lane.b32.xlu0 %v1052, 120
      %v1058 = vpop.permute.xlu0 %1057
      %1059 = vrot.lane.b32.xlu0 %v1053, 120
      %v1060 = vpop.permute.xlu0 %1059
      %v1063 = vsel %vm1054, %v1058, 1e+09
      %v1064 = vsel %vm1054, %v1060, 1e+09
      %v1065 = vmin.f32 %v1040, %v1063
      %v1066 = vmin.f32 %v1041, %v1064
      %1067 = vrot.lane.b32.xlu0 %v1065, 16
      %v1068 = vpop.permute.xlu0 %1067
      %v1069 = vsel %vm133, %v1068, %v1065
      %1070 = vrot.lane.b32.xlu0 %v1066, 16
      %v1071 = vpop.permute.xlu0 %1070
      %v1072 = vsel %vm133, %v1071, %v1066
      %1073 = vrot.lane.b32.xlu0 %v1069, 16
      %v1074 = vpop.permute.xlu0 %1073
      %1075 = vrot.lane.b32.xlu0 %v1072, 16
      %v1076 = vpop.permute.xlu0 %1075
      %v1077 = vsel %vm133, %v1074, %v1065
      %v1078 = vsel %vm133, %v1076, %v1066
      %vm1079 = vcmp.ge.s32.totalorder %v147, 8
      %1082 = vrot.lane.b32.xlu0 %v1077, 120
      %v1083 = vpop.permute.xlu0 %1082
      %1084 = vrot.lane.b32.xlu0 %v1078, 120
      %v1085 = vpop.permute.xlu0 %1084
      %v1088 = vsel %vm1079, %v1083, 1e+09
      %v1089 = vsel %vm1079, %v1085, 1e+09
      %v1090 = vmin.f32 %v1065, %v1088
      %v1091 = vmin.f32 %v1066, %v1089
      %vm1092 = vcmp.lt.s32.totalorder %v124, 8
      %vm1093 = vcmp.lt.s32.totalorder %v128, 8
      %v1094 = vsel %vm1092, %v1091, 1e+09
      %v1095 = vsel %vm1093, %v1090, 1e+09
      %v1096 = vmin.f32 %v1090, %v1094
      %v1097 = vmin.f32 %v1091, %v1095
      %vm1098 = vcmp.ge.s32.totalorder %v124, 8
      %vm1099 = vcmp.ge.s32.totalorder %v128, 8
      %v1100 = vsel %vm1098, %v1097, 1e+09
      %v1101 = vsel %vm1099, %v1096, 1e+09
      %v1102 = vmin.f32 %v1096, %v1100
      %v1103 = vmin.f32 %v1097, %v1101
      %1104 = vrot.lane.b32.xlu0 %v1102, 16
      %v1105 = vpop.permute.xlu0 %1104
      %v1106 = vsel %vm133, %v1105, %v1102
      %1107 = vrot.lane.b32.xlu0 %v1103, 16
      %v1108 = vpop.permute.xlu0 %1107
      %v1109 = vsel %vm133, %v1108, %v1103
      %1110 = vrot.lane.b32.xlu0 %v1106, 16
      %v1111 = vpop.permute.xlu0 %1110
      %1112 = vrot.lane.b32.xlu0 %v1109, 16
      %v1113 = vpop.permute.xlu0 %1112
      %v1114 = vsel %vm133, %v1111, %v1102
      %v1115 = vsel %vm133, %v1113, %v1103
      %1118 = vrot.lane.b32.xlu0 %v1114, 127
      %v1119 = vpop.permute.xlu0 %1118
      %1120 = vrot.lane.b32.xlu0 %v1115, 127
      %v1121 = vpop.permute.xlu0 %1120
      %v1124 = vsel %vm148, %v1119, 1e+09
      %v1125 = vsel %vm148, %v1121, 1e+09
      %v1126 = vmin.f32 %v1102, %v1124
      %v1127 = vmin.f32 %v1103, %v1125
      %1128 = vrot.lane.b32.xlu0 %v1126, 16
      %v1129 = vpop.permute.xlu0 %1128
      %v1130 = vsel %vm133, %v1129, %v1126
      %1131 = vrot.lane.b32.xlu0 %v1127, 16
      %v1132 = vpop.permute.xlu0 %1131
      %v1133 = vsel %vm133, %v1132, %v1127
      %1134 = vrot.lane.b32.xlu0 %v1130, 16
      %v1135 = vpop.permute.xlu0 %1134
      %1136 = vrot.lane.b32.xlu0 %v1133, 16
      %v1137 = vpop.permute.xlu0 %1136
      %v1138 = vsel %vm133, %v1135, %v1126
      %v1139 = vsel %vm133, %v1137, %v1127
      %1142 = vrot.lane.b32.xlu0 %v1138, 113
      %v1143 = vpop.permute.xlu0 %1142
      %1144 = vrot.lane.b32.xlu0 %v1139, 113
      %v1145 = vpop.permute.xlu0 %1144
      %v1148 = vsel %vm211, %v1143, 1e+09
      %v1149 = vsel %vm211, %v1145, 1e+09
      %v1150 = vmin.f32 %v1126, %v1148
      %v1151 = vmin.f32 %v1127, %v1149
      %v1152 = vrot.slane %v1150, 1
      %v1153 = vrot.slane %v1151, 1
      %v1154 = vsel %vm125, %v1152, %v1153
      %v1155 = vsel %vm125, %v1153, %v1152
      %v1156 = vsel %vm129, %v1154, 1e+09
      %v1157 = vsel %vm130, %v1155, 1e+09
      %v1158 = vmin.f32 %v1150, %v1156
      %v1159 = vmin.f32 %v1151, %v1157
      %v1160 = vrot.slane %v1158, 7
      %v1161 = vrot.slane %v1159, 7
      %v1162 = vsel %vm234, %v1160, %v1161
      %v1163 = vsel %vm234, %v1161, %v1160
      %v1164 = vsel %vm237, %v1163, 1e+09
      %v1165 = vsel %vm238, %v1162, 1e+09
      %v1166 = vmin.f32 %v1158, %v1164
      %v1167 = vmin.f32 %v1159, %v1165
      %v1168 = vadd.f32 %v1166, 16.0
      %v1169 = vadd.f32 %v1167, 16.0
      %v1170 = vmin.f32 %v848, %v1168
      %v1171 = vmin.f32 %v849, %v1169
      %vm1172 = vcmp.le.f32.partialorder %v1170, 16.0
      %vm1173 = vcmp.le.f32.partialorder %v1171, 16.0
      %v1174 = vsel %vm1172, %v1170, 35.0
      %v1175 = vsel %vm1173, %v1171, 35.0
      %vm1176 = vcmask 130048
      %1177 = vst.msk [vmem:[%s116] sm:$0xff] %vm1176, %v1174
      %1178 = vst.msk [vmem:[%s116 + $0x8] sm:$0xff] %vm1176, %v1175
      %p1179 = scmp.lt.s32.totalorder %s12, 1
      %s1180 = scalar_select %p1179, %s12, 1
      %s1181 = smul.addr %s1180, 2
      %s1182 = smul.addr %s1181, 8
      %s1183 = scalar_lea.vmem %s1, %s1182
      // Predicated region
      $region25: #{active_boundary_loss.3} parent=23 // pred_check
        %p1184 = pneg %p56
      $region26: #{active_boundary_loss.3} parent=23 // pred_check_branch
        %1186 = sbr.rel (%p1184) target = $region28
      $region27: #{active_boundary_loss.3} parent=23 // pred_region
        _
      $region28: #{active_boundary_loss.3} parent=23 // pred_fallthru
        _
    $region24: #{active_boundary_loss.3} parent=5 // pred_fallthru
      _
    %p1187 = scmp.le.s32.totalorder 2, %s7
    // Predicated region
    $region29: #{active_boundary_loss.3} parent=5 // pred_check
      %p1188 = pneg %p1187
    $region30: #{active_boundary_loss.3} parent=5 // pred_check_branch
      %1190 = sbr.rel (%p1188) target = $region32
    $region31: #{active_boundary_loss.3} parent=5 // pred_region
      %s1191 = ssub.s32 %s7, 2
      // Predicated region
      $region33: #{active_boundary_loss.3} parent=31 // pred_check
        %p1192 = pneg %p62
      $region34: #{active_boundary_loss.3} parent=31 // pred_check_branch
        %1194 = sbr.rel (%p1192) target = $region36
      $region35: #{active_boundary_loss.3} parent=31 // pred_region
        %p1195 = scmp.lt.s32.totalorder %s13, 1
        %s1196 = scalar_select %p1195, %s13, 1
        %s1197 = smul.addr %s1196, 2
        %s1198 = smul.addr %s1197, 8
        %s1199 = scalar_lea.vmem %s1, %s1198
      $region36: #{active_boundary_loss.3} parent=31 // pred_fallthru
        _
    $region32: #{active_boundary_loss.3} parent=5 // pred_fallthru
      _
  $region6: #{active_boundary_loss.3} parent=0 // loop_footer
    %s11 = sadd.s32 1, %s7
  $region7: #{active_boundary_loss.3} parent=0 // loop_footer_branch
    %6 = sbr.rel target = $region3
  $region8: #{active_boundary_loss.3} parent=0 // loop_exit
    _

// kernel: active_boundary_loss.5
$region0: #{active_boundary_loss.5}
  #allocation0 [shape = 'u32[]', space=smem, size = 0x4, offset = 0x4, fixed_abs, tag = 'smem constant byte address 0x4 - core index']
  #allocation1 [shape = 'u32[144,128]{1,0:T(1,128)}', space=vmem, size = 0x12000, scoped, tag = 'internal scratch']
  %s0 = inlined_call_operand.vmem [shape: f32[2,8,16,16], index: 0, kind: input, shape index: {}]
  %s1 = inlined_call_operand.vmem [shape: s32[2,1,16,16], index: 1, kind: input, shape index: {}]
  %s2 = inlined_call_operand.vmem [shape: f32[2,1,16,16], index: 2, kind: input, shape index: {}]
  %s3 = inlined_call_operand.vmem [shape: f32[2,1,16,16], index: 3, kind: input, shape index: {}]
  %s4 = inlined_call_operand.vmem [shape: f32[2,8,128], index: 4, kind: output, shape index: {}]
  %s5 = sld [smem:[#allocation0]]
  $region49: #{active_boundary_loss.5} parent=0
    _
  %s7 = ssub.s32 1, %s5
  %s8 = scalar_select 0, %s7, %s5
  loop: start=0, step=1, limit=4
  $region2: #{active_boundary_loss.5} parent=0 // loop_pre_header
    _
  $region3: #{active_boundary_loss.5} parent=0 // loop_header
    %s10 = sphi 0, %s14
    %p11 = scmp.ge.s32.totalorder %s10, 4
    %s20 = sphi 0, %s22
    %s23 = sphi 0, %s20
    %s24 = sphi 0, %s23
    %s40 = sphi 0, %s24
    %s46 = sphi 0, %s48
    %s49 = sphi 0, %s46
    %s50 = sphi 0, %s49
    %s66 = sphi 0, %s50
    %s72 = sphi 0, %s74
    %s75 = sphi 0, %s72
    %s76 = sphi 0, %s75
    %s92 = sphi 0, %s76
    %s98 = sphi 0, %s100
    %s101 = sphi 0, %s98
    %s102 = sphi 0, %s101
    %s118 = sphi 0, %s102
    %s124 = sphi 0, %s126
    %s127 = sphi 0, %s124
    %s128 = sphi 0, %s127
    %s144 = sphi 0, %s128
  $region4: #{active_boundary_loss.5} parent=0 // loop_header_branch
    %13 = sbr.rel (%p11) target = $region8
  $region5: #{active_boundary_loss.5} parent=0 // loop_body
    %s15 = ssub.s32 %s10, 1
    %s16 = ssub.s32 %s10, 2
    %s17 = sadd.s32 %s10, 1
    %s18 = ssub.s32 %s10, %s17
    %p19 = scmp.eq.s32.totalorder %s18, 0
    %s21 = sadd.s32 %s20, 1
    %s22 = scalar_select %p19, %s20, %s21
    %p25 = pneg %p19
    %p26 = scmp.eq.s32.totalorder %s10, 1
    %p27 = por %p25, %p26
    %p28 = scmp.ne.s32.totalorder %s20, %s23
    %p29 = scmp.eq.s32.totalorder %s10, 0
    %p30 = por %p28, %p29
    %p31 = scmp.ne.s32.totalorder %s20, %s23
    %p32 = scmp.eq.s32.totalorder %s15, 1
    %p33 = por %p31, %p32
    %p34 = scmp.ne.s32.totalorder %s23, %s24
    %p35 = scmp.eq.s32.totalorder %s15, 0
    %p36 = por %p34, %p35
    %p37 = scmp.ne.s32.totalorder %s23, %s24
    %p38 = scmp.eq.s32.totalorder %s16, 1
    %p39 = por %p37, %p38
    %p41 = scmp.ne.s32.totalorder %s24, %s40
    %p42 = scmp.eq.s32.totalorder %s16, 0
    %p43 = por %p41, %p42
    %s44 = ssub.s32 %s10, %s17
    %p45 = scmp.eq.s32.totalorder %s44, 0
    %s47 = sadd.s32 %s46, 1
    %s48 = scalar_select %p45, %s46, %s47
    %p51 = pneg %p45
    %p52 = scmp.eq.s32.totalorder %s10, 1
    %p53 = por %p51, %p52
    %p54 = scmp.ne.s32.totalorder %s46, %s49
    %p55 = scmp.eq.s32.totalorder %s10, 0
    %p56 = por %p54, %p55
    %p57 = scmp.ne.s32.totalorder %s46, %s49
    %p58 = scmp.eq.s32.totalorder %s15, 1
    %p59 = por %p57, %p58
    %p60 = scmp.ne.s32.totalorder %s49, %s50
    %p61 = scmp.eq.s32.totalorder %s15, 0
    %p62 = por %p60, %p61
    %p63 = scmp.ne.s32.totalorder %s49, %s50
    %p64 = scmp.eq.s32.totalorder %s16, 1
    %p65 = por %p63, %p64
    %p67 = scmp.ne.s32.totalorder %s50, %s66
    %p68 = scmp.eq.s32.totalorder %s16, 0
    %p69 = por %p67, %p68
    %s70 = ssub.s32 %s10, %s17
    %p71 = scmp.eq.s32.totalorder %s70, 0
    %s73 = sadd.s32 %s72, 1
    %s74 = scalar_select %p71, %s72, %s73
    %p77 = pneg %p71
    %p78 = scmp.eq.s32.totalorder %s10, 1
    %p79 = por %p77, %p78
    %p80 = scmp.ne.s32.totalorder %s72, %s75
    %p81 = scmp.eq.s32.totalorder %s10, 0
    %p82 = por %p80, %p81
    %p83 = scmp.ne.s32.totalorder %s72, %s75
    %p84 = scmp.eq.s32.totalorder %s15, 1
    %p85 = por %p83, %p84
    %p86 = scmp.ne.s32.totalorder %s75, %s76
    %p87 = scmp.eq.s32.totalorder %s15, 0
    %p88 = por %p86, %p87
    %p89 = scmp.ne.s32.totalorder %s75, %s76
    %p90 = scmp.eq.s32.totalorder %s16, 1
    %p91 = por %p89, %p90
    %p93 = scmp.ne.s32.totalorder %s76, %s92
    %p94 = scmp.eq.s32.totalorder %s16, 0
    %p95 = por %p93, %p94
    %s96 = ssub.s32 %s10, %s17
    %p97 = scmp.eq.s32.totalorder %s96, 0
    %s99 = sadd.s32 %s98, 1
    %s100 = scalar_select %p97, %s98, %s99
    %p103 = pneg %p97
    %p104 = scmp.eq.s32.totalorder %s10, 1
    %p105 = por %p103, %p104
    %p106 = scmp.ne.s32.totalorder %s98, %s101
    %p107 = scmp.eq.s32.totalorder %s10, 0
    %p108 = por %p106, %p107
    %p109 = scmp.ne.s32.totalorder %s98, %s101
    %p110 = scmp.eq.s32.totalorder %s15, 1
    %p111 = por %p109, %p110
    %p112 = scmp.ne.s32.totalorder %s101, %s102
    %p113 = scmp.eq.s32.totalorder %s15, 0
    %p114 = por %p112, %p113
    %p115 = scmp.ne.s32.totalorder %s101, %s102
    %p116 = scmp.eq.s32.totalorder %s16, 1
    %p117 = por %p115, %p116
    %p119 = scmp.ne.s32.totalorder %s102, %s118
    %p120 = scmp.eq.s32.totalorder %s16, 0
    %p121 = por %p119, %p120
    %s122 = ssub.s32 %s10, %s17
    %p123 = scmp.eq.s32.totalorder %s122, 0
    %s125 = sadd.s32 %s124, 1
    %s126 = scalar_select %p123, %s124, %s125
    %p129 = pneg %p123
    %p130 = scmp.eq.s32.totalorder %s10, 1
    %p131 = por %p129, %p130
    %p132 = scmp.ne.s32.totalorder %s124, %s127
    %p133 = scmp.eq.s32.totalorder %s10, 0
    %p134 = por %p132, %p133
    %p135 = scmp.ne.s32.totalorder %s124, %s127
    %p136 = scmp.eq.s32.totalorder %s15, 1
    %p137 = por %p135, %p136
    %p138 = scmp.ne.s32.totalorder %s127, %s128
    %p139 = scmp.eq.s32.totalorder %s15, 0
    %p140 = por %p138, %p139
    %p141 = scmp.ne.s32.totalorder %s127, %s128
    %p142 = scmp.eq.s32.totalorder %s16, 1
    %p143 = por %p141, %p142
    %p145 = scmp.ne.s32.totalorder %s128, %s144
    %p146 = scmp.eq.s32.totalorder %s16, 0
    %p147 = por %p145, %p146
    %p148 = scmp.le.s32.totalorder 1, %s10
    %p149 = scmp.lt.s32.totalorder %s10, 3
    %p150 = pnand %p148, %p149
    %p151 = pneg %p150
    // Predicated region
    $region9: #{active_boundary_loss.5} parent=5 // pred_check
      _
    $region10: #{active_boundary_loss.5} parent=5 // pred_check_branch
      %153 = sbr.rel (%p150) target = $region12
    $region11: #{active_boundary_loss.5} parent=5 // pred_region
      %s154 = ssub.s32 %s10, 1
    $region12: #{active_boundary_loss.5} parent=5 // pred_fallthru
      _
    %p155 = scmp.lt.s32.totalorder %s10, 2
    // Predicated region
    $region13: #{active_boundary_loss.5} parent=5 // pred_check
      %p156 = pneg %p155
    $region14: #{active_boundary_loss.5} parent=5 // pred_check_branch
      %158 = sbr.rel (%p156) target = $region16
    $region15: #{active_boundary_loss.5} parent=5 // pred_region
      // Predicated region
      $region17: #{active_boundary_loss.5} parent=15 // pred_check
        %p159 = pneg %p30
      $region18: #{active_boundary_loss.5} parent=15 // pred_check_branch
        %161 = sbr.rel (%p159) target = $region20
      $region19: #{active_boundary_loss.5} parent=15 // pred_region
        %p162 = scmp.lt.s32.totalorder %s10, 1
        %s163 = scalar_select %p162, %s10, 1
        %s164 = smul.addr %s163, 16
        %s165 = smul.addr %s164, 8
        %s166 = scalar_lea.vmem %s0, %s165
      $region20: #{active_boundary_loss.5} parent=15 // pred_fallthru
        _
      // Predicated region
      $region21: #{active_boundary_loss.5} parent=15 // pred_check
        %p167 = pneg %p56
      $region22: #{active_boundary_loss.5} parent=15 // pred_check_branch
        %169 = sbr.rel (%p167) target = $region24
      $region23: #{active_boundary_loss.5} parent=15 // pred_region
        %p170 = scmp.lt.s32.totalorder %s10, 1
        %s171 = scalar_select %p170, %s10, 1
        %s172 = smul.addr %s171, 2
        %s173 = smul.addr %s172, 8
        %s174 = scalar_lea.vmem %s1, %s173
      $region24: #{active_boundary_loss.5} parent=15 // pred_fallthru
        _
      // Predicated region
      $region25: #{active_boundary_loss.5} parent=15 // pred_check
        %p175 = pneg %p82
      $region26: #{active_boundary_loss.5} parent=15 // pred_check_branch
        %177 = sbr.rel (%p175) target = $region28
      $region27: #{active_boundary_loss.5} parent=15 // pred_region
        %p178 = scmp.lt.s32.totalorder %s10, 1
        %s179 = scalar_select %p178, %s10, 1
        %s180 = smul.addr %s179, 2
        %s181 = smul.addr %s180, 8
        %s182 = scalar_lea.vmem %s2, %s181
      $region28: #{active_boundary_loss.5} parent=15 // pred_fallthru
        _
      // Predicated region
      $region29: #{active_boundary_loss.5} parent=15 // pred_check
        %p183 = pneg %p108
      $region30: #{active_boundary_loss.5} parent=15 // pred_check_branch
        %185 = sbr.rel (%p183) target = $region32
      $region31: #{active_boundary_loss.5} parent=15 // pred_region
        %p186 = scmp.lt.s32.totalorder %s10, 1
        %s187 = scalar_select %p186, %s10, 1
        %s188 = smul.addr %s187, 2
        %s189 = smul.addr %s188, 8
        %s190 = scalar_lea.vmem %s3, %s189
      $region32: #{active_boundary_loss.5} parent=15 // pred_fallthru
        _
    $region16: #{active_boundary_loss.5} parent=5 // pred_fallthru
      _
    %p191 = scmp.le.s32.totalorder 1, %s10
    %p192 = scmp.lt.s32.totalorder %s10, 3
    %p193 = pnand %p191, %p192
    %p194 = pneg %p193
    // Predicated region
    $region33: #{active_boundary_loss.5} parent=5 // pred_check
      _
    $region34: #{active_boundary_loss.5} parent=5 // pred_check_branch
      %196 = sbr.rel (%p193) target = $region36
    $region35: #{active_boundary_loss.5} parent=5 // pred_region
      %s197 = ssub.s32 %s10, 1
      %p198 = scmp.lt.s32.totalorder %s15, 1
      %s199 = scalar_select %p198, %s15, 1
      %s200 = smul.addr %s199, 16
      %s201 = smul.addr %s200, 8
      %s202 = scalar_lea.vmem %s0, %s201
      %p203 = pneg %p36
      %p204 = pneg %p33
      %p205 = scmp.lt.s32.totalorder %s15, 1
      %s206 = scalar_select %p205, %s15, 1
      %s207 = smul.addr %s206, 2
      %s208 = smul.addr %s207, 8
      %s209 = scalar_lea.vmem %s1, %s208
      %p210 = pneg %p62
      %p211 = pneg %p59
      %p212 = scmp.lt.s32.totalorder %s15, 1
      %s213 = scalar_select %p212, %s15, 1
      %s214 = smul.addr %s213, 2
      %s215 = smul.addr %s214, 8
      %s216 = scalar_lea.vmem %s2, %s215
      %p217 = pneg %p88
      %p218 = pneg %p85
      %p219 = scmp.lt.s32.totalorder %s15, 1
      %s220 = scalar_select %p219, %s15, 1
      %s221 = smul.addr %s220, 2
      %s222 = smul.addr %s221, 8
      %s223 = scalar_lea.vmem %s3, %s222
      %p224 = pneg %p114
      %p225 = pneg %p111
      %p226 = pneg %p140
      %p227 = pneg %p137
      %p228 = scmp.lt.s32.totalorder %s15, 1
      %s229 = scalar_select %p228, %s15, 1
      %s230 = smul.addr %s229, 8
      %s231 = scalar_lea.vmem %s4, %s230
      %p232 = scmp.lt.s32.totalorder %s15, 1
      %s233 = scalar_select %p232, %s15, 1
      %s234 = smul.addr %s233, 16
      %s235 = smul.addr %s234, 8
      %s236 = scalar_lea.vmem %s0, %s235
      %p237 = scmp.lt.s32.totalorder %s15, 1
      %s238 = scalar_select %p237, %s15, 1
      %s239 = smul.addr %s238, 2
      %s240 = smul.addr %s239, 8
      %s241 = scalar_lea.vmem %s1, %s240
      %p242 = scmp.lt.s32.totalorder %s15, 1
      %s243 = scalar_select %p242, %s15, 1
      %s244 = smul.addr %s243, 2
      %s245 = smul.addr %s244, 8
      %s246 = scalar_lea.vmem %s2, %s245
      %p247 = scmp.lt.s32.totalorder %s15, 1
      %s248 = scalar_select %p247, %s15, 1
      %s249 = smul.addr %s248, 2
      %s250 = smul.addr %s249, 8
      %s251 = scalar_lea.vmem %s3, %s250
      %p252 = scmp.lt.s32.totalorder %s15, 1
      %s253 = scalar_select %p252, %s15, 1
      %s254 = smul.addr %s253, 8
      %s255 = scalar_lea.vmem %s4, %s254
      %v256 = vld [vmem:[%s236] sm:$0xff]
      %v257 = vld [vmem:[%s236 + $0x8] sm:$0xff]
      %v258 = vld [vmem:[%s236 + $0x10] sm:$0xff]
      %v259 = vld [vmem:[%s236 + $0x18] sm:$0xff]
      %v260 = vld [vmem:[%s236 + $0x20] sm:$0xff]
      %v261 = vld [vmem:[%s236 + $0x28] sm:$0xff]
      %v262 = vld [vmem:[%s236 + $0x30] sm:$0xff]
      %v263 = vld [vmem:[%s236 + $0x38] sm:$0xff]
      %v264 = vld [vmem:[%s236 + $0x40] sm:$0xff]
      %v265 = vld [vmem:[%s236 + $0x48] sm:$0xff]
      %v266 = vld [vmem:[%s236 + $0x50] sm:$0xff]
      %v267 = vld [vmem:[%s236 + $0x58] sm:$0xff]
      %v268 = vld [vmem:[%s236 + $0x60] sm:$0xff]
      %v269 = vld [vmem:[%s236 + $0x68] sm:$0xff]
      %v270 = vld [vmem:[%s236 + $0x70] sm:$0xff]
      %v271 = vld [vmem:[%s236 + $0x78] sm:$0xff]
      %v272 = vld [vmem:[%s241] sm:$0xff]
      %v273 = vld [vmem:[%s241 + $0x8] sm:$0xff]
      %v274 = vld [vmem:[%s246] sm:$0xff]
      %v275 = vld [vmem:[%s246 + $0x8] sm:$0xff]
      %v276 = vld [vmem:[%s251] sm:$0xff]
      %v277 = vld [vmem:[%s251 + $0x8] sm:$0xff]
      %vm278 = vcmask 1047680
      %279 = vrot.lane.b32.xlu0 %v276, 16
      %v280 = vpop.permute.xlu0 %279
      %v281 = vsel %vm278, %v280, %v276
      %282 = vrot.lane.b32.xlu0 %v277, 16
      %v283 = vpop.permute.xlu0 %282
      %v284 = vsel %vm278, %v283, %v277
      %285 = vrot.lane.b32.xlu0 %v281, 16
      %v286 = vpop.permute.xlu0 %285
      %287 = vrot.lane.b32.xlu0 %v284, 16
      %v288 = vpop.permute.xlu0 %287
      %v289 = vsel %vm278, %v286, %v276
      %v290 = vsel %vm278, %v288, %v277
      %v291 = vlaneseq
      %v292 = vand.u32 %v291, 127
      %vm293 = vcmp.lt.s32.totalorder %v292, 15
      %296 = vrot.lane.b32.xlu0 %v289, 127
      %v297 = vpop.permute.xlu0 %296
      %298 = vrot.lane.b32.xlu0 %v290, 127
      %v299 = vpop.permute.xlu0 %298
      %v302 = vsel %vm293, %v297, 0.0
      %v303 = vsel %vm293, %v299, 0.0
      %v304 = vadd.f32 %v276, %v302
      %v305 = vadd.f32 %v277, %v303
      %vm306 = vcmp.ge.s32.totalorder %v292, 1
      %307 = vrot.lane.b32.xlu0 %v289, 113
      %v308 = vpop.permute.xlu0 %307
      %309 = vrot.lane.b32.xlu0 %v290, 113
      %v310 = vpop.permute.xlu0 %309
      %v313 = vsel %vm306, %v308, 0.0
      %v314 = vsel %vm306, %v310, 0.0
      %v315 = vadd.f32 %v304, %v313
      %v316 = vadd.f32 %v305, %v314
      %v317 = vrot.slane %v315, 1
      %v318 = vrot.slane %v316, 1
      %v319 = vlaneseq
      %v320 = vshrl.u32 %v319, 7
      %vm321 = vcmp.lt.s32.totalorder %v320, 7
      %v322 = vsel %vm321, %v317, %v318
      %v323 = vsel %vm321, %v318, %v317
      %v324 = vadd.s32 %v320, 8
      %vm325 = vcmp.lt.s32.totalorder %v320, 15
      %vm326 = vcmp.lt.s32.totalorder %v324, 15
      %v327 = vsel %vm325, %v322, 0.0
      %v328 = vsel %vm326, %v323, 0.0
      %v329 = vadd.f32 %v315, %v327
      %v330 = vadd.f32 %v316, %v328
      %v331 = vrot.slane %v315, 7
      %v332 = vrot.slane %v316, 7
      %vm333 = vcmp.lt.s32.totalorder %v320, 1
      %v334 = vsel %vm333, %v331, %v332
      %v335 = vsel %vm333, %v332, %v331
      %vm336 = vcmp.ge.s32.totalorder %v320, 1
      %vm337 = vcmp.ge.s32.totalorder %v324, 1
      %v338 = vsel %vm336, %v335, 0.0
      %v339 = vsel %vm337, %v334, 0.0
      %v340 = vadd.f32 %v329, %v338
      %v341 = vadd.f32 %v330, %v339
      %vm342 = vcmp.gt.f32.partialorder %v340, 0.0
      %vm343 = vcmp.gt.f32.partialorder %v341, 0.0
      %vm344 = vcmask 130048
      %v345 = vsel %vm344, %v256, -inf
      %v346 = vsel %vm344, %v258, -inf
      %v347 = vsel %vm344, %v260, -inf
      %v348 = vmax.f32 %v345, %v347
      %v349 = vsel %vm344, %v262, -inf
      %v350 = vmax.f32 %v346, %v349
      %v351 = vsel %vm344, %v264, -inf
      %v352 = vmax.f32 %v348, %v351
      %v353 = vsel %vm344, %v266, -inf
      %v354 = vmax.f32 %v350, %v353
      %v355 = vsel %vm344, %v268, -inf
      %v356 = vmax.f32 %v352, %v355
      %v357 = vsel %vm344, %v270, -inf
      %v358 = vmax.f32 %v354, %v357
      %v359 = vmax.f32 %v356, %v358
      %v360 = vsel %vm344, %v257, -inf
      %v361 = vsel %vm344, %v259, -inf
      %v362 = vsel %vm344, %v261, -inf
      %v363 = vmax.f32 %v360, %v362
      %v364 = vsel %vm344, %v263, -inf
      %v365 = vmax.f32 %v361, %v364
      %v366 = vsel %vm344, %v265, -inf
      %v367 = vmax.f32 %v363, %v366
      %v368 = vsel %vm344, %v267, -inf
      %v369 = vmax.f32 %v365, %v368
      %v370 = vsel %vm344, %v269, -inf
      %v371 = vmax.f32 %v367, %v370
      %v372 = vsel %vm344, %v271, -inf
      %v373 = vmax.f32 %v369, %v372
      %v374 = vmax.f32 %v371, %v373
      %v375 = vsub.f32 %v256, %v359
      %v376 = vsub.f32 %v257, %v374
      %v377 = vsub.f32 %v258, %v359
      %v378 = vsub.f32 %v259, %v374
      %v379 = vsub.f32 %v260, %v359
      %v380 = vsub.f32 %v261, %v374
      %v381 = vsub.f32 %v262, %v359
      %v382 = vsub.f32 %v263, %v374
      %v383 = vsub.f32 %v264, %v359
      %v384 = vsub.f32 %v265, %v374
      %v385 = vsub.f32 %v266, %v359
      %v386 = vsub.f32 %v267, %v374
      %v387 = vsub.f32 %v268, %v359
      %v388 = vsub.f32 %v269, %v374
      %v389 = vsub.f32 %v270, %v359
      %v390 = vsub.f32 %v271, %v374
      %v391 = vmul.f32 %v375, 1.442695
      %v392 = vpow.pop %v391
      %v393 = vmul.f32 %v376, 1.442695
      %v394 = vpow.pop %v393
      %v395 = vmul.f32 %v377, 1.442695
      %v396 = vpow.pop %v395
      %v397 = vmul.f32 %v378, 1.442695
      %v398 = vpow.pop %v397
      %v399 = vmul.f32 %v379, 1.442695
      %v400 = vpow.pop %v399
      %v401 = vmul.f32 %v380, 1.442695
      %v402 = vpow.pop %v401
      %v403 = vmul.f32 %v381, 1.442695
      %v404 = vpow.pop %v403
      %v405 = vmul.f32 %v382, 1.442695
      %v406 = vpow.pop %v405
      %v407 = vmul.f32 %v383, 1.442695
      %v408 = vpow.pop %v407
      %v409 = vmul.f32 %v384, 1.442695
      %v410 = vpow.pop %v409
      %v411 = vmul.f32 %v385, 1.442695
      %v412 = vpow.pop %v411
      %v413 = vmul.f32 %v386, 1.442695
      %v414 = vpow.pop %v413
      %v415 = vmul.f32 %v387, 1.442695
      %v416 = vpow.pop %v415
      %v417 = vmul.f32 %v388, 1.442695
      %v418 = vpow.pop %v417
      %v419 = vmul.f32 %v389, 1.442695
      %v420 = vpow.pop %v419
      %v421 = vmul.f32 %v390, 1.442695
      %v422 = vpow.pop %v421
      %v423 = vsel %vm344, %v392, 0.0
      %v424 = vsel %vm344, %v396, 0.0
      %v425 = vadd.f32 %v423, %v424
      %v426 = vsel %vm344, %v400, 0.0
      %v427 = vadd.f32 %v425, %v426
      %v428 = vsel %vm344, %v404, 0.0
      %v429 = vadd.f32 %v427, %v428
      %v430 = vsel %vm344, %v408, 0.0
      %v431 = vadd.f32 %v429, %v430
      %v432 = vsel %vm344, %v412, 0.0
      %v433 = vadd.f32 %v431, %v432
      %v434 = vsel %vm344, %v416, 0.0
      %v435 = vadd.f32 %v433, %v434
      %v436 = vsel %vm344, %v420, 0.0
      %v437 = vadd.f32 %v435, %v436
      %v438 = vsel %vm344, %v394, 0.0
      %v439 = vsel %vm344, %v398, 0.0
      %v440 = vadd.f32 %v438, %v439
      %v441 = vsel %vm344, %v402, 0.0
      %v442 = vadd.f32 %v440, %v441
      %v443 = vsel %vm344, %v406, 0.0
      %v444 = vadd.f32 %v442, %v443
      %v445 = vsel %vm344, %v410, 0.0
      %v446 = vadd.f32 %v444, %v445
      %v447 = vsel %vm344, %v414, 0.0
      %v448 = vadd.f32 %v446, %v447
      %v449 = vsel %vm344, %v418, 0.0
      %v450 = vadd.f32 %v448, %v449
      %v451 = vsel %vm344, %v422, 0.0
      %v452 = vadd.f32 %v450, %v451
      %v453 = vlog2.pop %v437
      %v454 = vmul.f32 %v453, 0.6931472
      %v455 = vlog2.pop %v452
      %v456 = vmul.f32 %v455, 0.6931472
      %v457 = vsub.f32 %v375, %v454
      %v458 = vsub.f32 %v376, %v456
      %v459 = vsub.f32 %v377, %v454
      %v460 = vsub.f32 %v378, %v456
      %v461 = vsub.f32 %v379, %v454
      %v462 = vsub.f32 %v380, %v456
      %v463 = vsub.f32 %v381, %v454
      %v464 = vsub.f32 %v382, %v456
      %v465 = vsub.f32 %v383, %v454
      %v466 = vsub.f32 %v384, %v456
      %v467 = vsub.f32 %v385, %v454
      %v468 = vsub.f32 %v386, %v456
      %v469 = vsub.f32 %v387, %v454
      %v470 = vsub.f32 %v388, %v456
      %v471 = vsub.f32 %v389, %v454
      %v472 = vsub.f32 %v390, %v456
      %v473 = vrcp.pop %v437
      %v474 = vmul.f32 %v392, %v473
      %v475 = vrcp.pop %v452
      %v476 = vmul.f32 %v394, %v475
      %v477 = vmul.f32 %v396, %v473
      %v478 = vmul.f32 %v398, %v475
      %v479 = vmul.f32 %v400, %v473
      %v480 = vmul.f32 %v402, %v475
      %v481 = vmul.f32 %v404, %v473
      %v482 = vmul.f32 %v406, %v475
      %v483 = vmul.f32 %v408, %v473
      %v484 = vmul.f32 %v410, %v475
      %v485 = vmul.f32 %v412, %v473
      %v486 = vmul.f32 %v414, %v475
      %v487 = vmul.f32 %v416, %v473
      %v488 = vmul.f32 %v418, %v475
      %v489 = vmul.f32 %v420, %v473
      %v490 = vmul.f32 %v422, %v475
      %v491 = vmul.f32 %v474, %v457
      %v492 = vmul.f32 %v476, %v458
      %v493 = vmul.f32 %v477, %v459
      %v494 = vmul.f32 %v478, %v460
      %v495 = vmul.f32 %v479, %v461
      %v496 = vmul.f32 %v480, %v462
      %v497 = vmul.f32 %v481, %v463
      %v498 = vmul.f32 %v482, %v464
      %v499 = vmul.f32 %v483, %v465
      %v500 = vmul.f32 %v484, %v466
      %v501 = vmul.f32 %v485, %v467
      %v502 = vmul.f32 %v486, %v468
      %v503 = vmul.f32 %v487, %v469
      %v504 = vmul.f32 %v488, %v470
      %v505 = vmul.f32 %v489, %v471
      %v506 = vmul.f32 %v490, %v472
      %v507 = vsel %vm344, %v491, 0.0
      %v508 = vsel %vm344, %v493, 0.0
      %v509 = vadd.f32 %v507, %v508
      %v510 = vsel %vm344, %v495, 0.0
      %v511 = vadd.f32 %v509, %v510
      %v512 = vsel %vm344, %v497, 0.0
      %v513 = vadd.f32 %v511, %v512
      %v514 = vsel %vm344, %v499, 0.0
      %v515 = vadd.f32 %v513, %v514
      %v516 = vsel %vm344, %v501, 0.0
      %v517 = vadd.f32 %v515, %v516
      %v518 = vsel %vm344, %v503, 0.0
      %v519 = vadd.f32 %v517, %v518
      %v520 = vsel %vm344, %v505, 0.0
      %v521 = vadd.f32 %v519, %v520
      %v522 = vsel %vm344, %v492, 0.0
      %v523 = vsel %vm344, %v494, 0.0
      %v524 = vadd.f32 %v522, %v523
      %v525 = vsel %vm344, %v496, 0.0
      %v526 = vadd.f32 %v524, %v525
      %v527 = vsel %vm344, %v498, 0.0
      %v528 = vadd.f32 %v526, %v527
      %v529 = vsel %vm344, %v500, 0.0
      %v530 = vadd.f32 %v528, %v529
      %v531 = vsel %vm344, %v502, 0.0
      %v532 = vadd.f32 %v530, %v531
      %v533 = vsel %vm344, %v504, 0.0
      %v534 = vadd.f32 %v532, %v533
      %v535 = vsel %vm344, %v506, 0.0
      %v536 = vadd.f32 %v534, %v535
      %v537 = vrot.slane %v274, 1
      %v538 = vrot.slane %v275, 1
      %v539 = vsel %vm321, %v537, %v538
      %v540 = vsel %vm321, %v538, %v537
      %v541 = vsel %vm325, %v539, 100000.0
      %v542 = vsel %vm326, %v540, 100000.0
      %vm543 = vcmp.lt.f32.partialorder %v541, 1e+09
      %vm544 = vcmp.lt.f32.partialorder %v542, 1e+09
      %v545 = vsel %vm543, %v541, 1e+09
      %v546 = vsel %vm544, %v542, 1e+09
      %v547 = vrot.slane %v474, 1
      %v548 = vrot.slane %v477, 1
      %v549 = vrot.slane %v479, 1
      %v550 = vrot.slane %v481, 1
      %v551 = vrot.slane %v483, 1
      %v552 = vrot.slane %v485, 1
      %v553 = vrot.slane %v487, 1
      %v554 = vrot.slane %v489, 1
      %v555 = vrot.slane %v476, 1
      %v556 = vrot.slane %v478, 1
      %v557 = vrot.slane %v480, 1
      %v558 = vrot.slane %v482, 1
      %v559 = vrot.slane %v484, 1
      %v560 = vrot.slane %v486, 1
      %v561 = vrot.slane %v488, 1
      %v562 = vrot.slane %v490, 1
      %v563 = vsel %vm321, %v547, %v555
      %v564 = vsel %vm321, %v548, %v556
      %v565 = vsel %vm321, %v549, %v557
      %v566 = vsel %vm321, %v550, %v558
      %v567 = vsel %vm321, %v551, %v559
      %v568 = vsel %vm321, %v552, %v560
      %v569 = vsel %vm321, %v553, %v561
      %v570 = vsel %vm321, %v554, %v562
      %v571 = vsel %vm321, %v555, %v547
      %v572 = vsel %vm321, %v556, %v548
      %v573 = vsel %vm321, %v557, %v549
      %v574 = vsel %vm321, %v558, %v550
      %v575 = vsel %vm321, %v559, %v551
      %v576 = vsel %vm321, %v560, %v552
      %v577 = vsel %vm321, %v561, %v553
      %v578 = vsel %vm321, %v562, %v554
      %v579 = vsel %vm325, %v563, %v474
      %v580 = vsel %vm326, %v571, %v476
      %v581 = vsel %vm325, %v564, %v477
      %v582 = vsel %vm326, %v572, %v478
      %v583 = vsel %vm325, %v565, %v479
      %v584 = vsel %vm326, %v573, %v480
      %v585 = vsel %vm325, %v566, %v481
      %v586 = vsel %vm326, %v574, %v482
      %v587 = vsel %vm325, %v567, %v483
      %v588 = vsel %vm326, %v575, %v484
      %v589 = vsel %vm325, %v568, %v485
      %v590 = vsel %vm326, %v576, %v486
      %v591 = vsel %vm325, %v569, %v487
      %v592 = vsel %vm326, %v577, %v488
      %v593 = vsel %vm325, %v570, %v489
      %v594 = vsel %vm326, %v578, %v490
      %v595 = vrot.slane %v521, 1
      %v596 = vrot.slane %v536, 1
      %v597 = vsel %vm321, %v595, %v596
      %v598 = vsel %vm321, %v596, %v595
      %v599 = vsel %vm325, %v597, %v521
      %v600 = vsel %vm326, %v598, %v536
      %v601 = vmul.f32 %v579, %v457
      %v602 = vmul.f32 %v580, %v458
      %v603 = vmul.f32 %v581, %v459
      %v604 = vmul.f32 %v582, %v460
      %v605 = vmul.f32 %v583, %v461
      %v606 = vmul.f32 %v584, %v462
      %v607 = vmul.f32 %v585, %v463
      %v608 = vmul.f32 %v586, %v464
      %v609 = vmul.f32 %v587, %v465
      %v610 = vmul.f32 %v588, %v466
      %v611 = vmul.f32 %v589, %v467
      %v612 = vmul.f32 %v590, %v468
      %v613 = vmul.f32 %v591, %v469
      %v614 = vmul.f32 %v592, %v470
      %v615 = vmul.f32 %v593, %v471
      %v616 = vmul.f32 %v594, %v472
      %v617 = vsel %vm344, %v601, 0.0
      %v618 = vsel %vm344, %v603, 0.0
      %v619 = vadd.f32 %v617, %v618
      %v620 = vsel %vm344, %v605, 0.0
      %v621 = vadd.f32 %v619, %v620
      %v622 = vsel %vm344, %v607, 0.0
      %v623 = vadd.f32 %v621, %v622
      %v624 = vsel %vm344, %v609, 0.0
      %v625 = vadd.f32 %v623, %v624
      %v626 = vsel %vm344, %v611, 0.0
      %v627 = vadd.f32 %v625, %v626
      %v628 = vsel %vm344, %v613, 0.0
      %v629 = vadd.f32 %v627, %v628
      %v630 = vsel %vm344, %v615, 0.0
      %v631 = vadd.f32 %v629, %v630
      %v632 = vsel %vm344, %v602, 0.0
      %v633 = vsel %vm344, %v604, 0.0
      %v634 = vadd.f32 %v632, %v633
      %v635 = vsel %vm344, %v606, 0.0
      %v636 = vadd.f32 %v634, %v635
      %v637 = vsel %vm344, %v608, 0.0
      %v638 = vadd.f32 %v636, %v637
      %v639 = vsel %vm344, %v610, 0.0
      %v640 = vadd.f32 %v638, %v639
      %v641 = vsel %vm344, %v612, 0.0
      %v642 = vadd.f32 %v640, %v641
      %v643 = vsel %vm344, %v614, 0.0
      %v644 = vadd.f32 %v642, %v643
      %v645 = vsel %vm344, %v616, 0.0
      %v646 = vadd.f32 %v644, %v645
      %v647 = vsub.f32 %v599, %v631
      %v648 = vsub.f32 %v600, %v646
      %v649 = vsel %vm543, %v647, 0.0
      %v650 = vsel %vm544, %v648, 0.0
      %v651 = vmax.f32 %v647, -1e+09
      %v652 = vmax.f32 %v648, -1e+09
      %v653 = vsub.f32 -1e+09, %v651
      %v654 = vsub.f32 -1e+09, %v652
      %v655 = vmul.f32 %v653, 1.442695
      %v656 = vpow.pop %v655
      %v657 = vmul.f32 %v654, 1.442695
      %v658 = vpow.pop %v657
      %v659 = vmul.f32 %v656, 0.0
      %v660 = vmul.f32 %v658, 0.0
      %v661 = vsub.f32 %v647, %v651
      %v662 = vsub.f32 %v648, %v652
      %v663 = vmul.f32 %v661, 1.442695
      %v664 = vpow.pop %v663
      %v665 = vmul.f32 %v662, 1.442695
      %v666 = vpow.pop %v665
      %v667 = vadd.f32 %v659, %v664
      %v668 = vadd.f32 %v660, %v666
      %v669 = vrot.slane %v274, 7
      %v670 = vrot.slane %v275, 7
      %v671 = vsel %vm333, %v669, %v670
      %v672 = vsel %vm333, %v670, %v669
      %v673 = vsel %vm336, %v672, 100000.0
      %v674 = vsel %vm337, %v671, 100000.0
      %vm675 = vcmp.lt.f32.partialorder %v673, %v545
      %vm676 = vcmp.lt.f32.partialorder %v674, %v546
      %v677 = vsel %vm675, %v673, %v545
      %v678 = vsel %vm676, %v674, %v546
      %v679 = vsel %vm675, 1, 0
      %v680 = vsel %vm676, 1, 0
      %v681 = vrot.slane %v474, 7
      %v682 = vrot.slane %v477, 7
      %v683 = vrot.slane %v479, 7
      %v684 = vrot.slane %v481, 7
      %v685 = vrot.slane %v483, 7
      %v686 = vrot.slane %v485, 7
      %v687 = vrot.slane %v487, 7
      %v688 = vrot.slane %v489, 7
      %v689 = vrot.slane %v476, 7
      %v690 = vrot.slane %v478, 7
      %v691 = vrot.slane %v480, 7
      %v692 = vrot.slane %v482, 7
      %v693 = vrot.slane %v484, 7
      %v694 = vrot.slane %v486, 7
      %v695 = vrot.slane %v488, 7
      %v696 = vrot.slane %v490, 7
      %v697 = vsel %vm333, %v681, %v689
      %v698 = vsel %vm333, %v682, %v690
      %v699 = vsel %vm333, %v683, %v691
      %v700 = vsel %vm333, %v684, %v692
      %v701 = vsel %vm333, %v685, %v693
      %v702 = vsel %vm333, %v686, %v694
      %v703 = vsel %vm333, %v687, %v695
      %v704 = vsel %vm333, %v688, %v696
      %v705 = vsel %vm333, %v689, %v681
      %v706 = vsel %vm333, %v690, %v682
      %v707 = vsel %vm333, %v691, %v683
      %v708 = vsel %vm333, %v692, %v684
      %v709 = vsel %vm333, %v693, %v685
      %v710 = vsel %vm333, %v694, %v686
      %v711 = vsel %vm333, %v695, %v687
      %v712 = vsel %vm333, %v696, %v688
      %v713 = vsel %vm336, %v705, %v474
      %v714 = vsel %vm337, %v697, %v476
      %v715 = vsel %vm336, %v706, %v477
      %v716 = vsel %vm337, %v698, %v478
      %v717 = vsel %vm336, %v707, %v479
      %v718 = vsel %vm337, %v699, %v480
      %v719 = vsel %vm336, %v708, %v481
      %v720 = vsel %vm337, %v700, %v482
      %v721 = vsel %vm336, %v709, %v483
      %v722 = vsel %vm337, %v701, %v484
      %v723 = vsel %vm336, %v710, %v485
      %v724 = vsel %vm337, %v702, %v486
      %v725 = vsel %vm336, %v711, %v487
      %v726 = vsel %vm337, %v703, %v488
      %v727 = vsel %vm336, %v712, %v489
      %v728 = vsel %vm337, %v704, %v490
      %v729 = vrot.slane %v521, 7
      %v730 = vrot.slane %v536, 7
      %v731 = vsel %vm333, %v729, %v730
      %v732 = vsel %vm333, %v730, %v729
      %v733 = vsel %vm336, %v732, %v521
      %v734 = vsel %vm337, %v731, %v536
      %v735 = vmul.f32 %v713, %v457
      %v736 = vmul.f32 %v714, %v458
      %v737 = vmul.f32 %v715, %v459
      %v738 = vmul.f32 %v716, %v460
      %v739 = vmul.f32 %v717, %v461
      %v740 = vmul.f32 %v718, %v462
      %v741 = vmul.f32 %v719, %v463
      %v742 = vmul.f32 %v720, %v464
      %v743 = vmul.f32 %v721, %v465
      %v744 = vmul.f32 %v722, %v466
      %v745 = vmul.f32 %v723, %v467
      %v746 = vmul.f32 %v724, %v468
      %v747 = vmul.f32 %v725, %v469
      %v748 = vmul.f32 %v726, %v470
      %v749 = vmul.f32 %v727, %v471
      %v750 = vmul.f32 %v728, %v472
      %v751 = vsel %vm344, %v735, 0.0
      %v752 = vsel %vm344, %v737, 0.0
      %v753 = vadd.f32 %v751, %v752
      %v754 = vsel %vm344, %v739, 0.0
      %v755 = vadd.f32 %v753, %v754
      %v756 = vsel %vm344, %v741, 0.0
      %v757 = vadd.f32 %v755, %v756
      %v758 = vsel %vm344, %v743, 0.0
      %v759 = vadd.f32 %v757, %v758
      %v760 = vsel %vm344, %v745, 0.0
      %v761 = vadd.f32 %v759, %v760
      %v762 = vsel %vm344, %v747, 0.0
      %v763 = vadd.f32 %v761, %v762
      %v764 = vsel %vm344, %v749, 0.0
      %v765 = vadd.f32 %v763, %v764
      %v766 = vsel %vm344, %v736, 0.0
      %v767 = vsel %vm344, %v738, 0.0
      %v768 = vadd.f32 %v766, %v767
      %v769 = vsel %vm344, %v740, 0.0
      %v770 = vadd.f32 %v768, %v769
      %v771 = vsel %vm344, %v742, 0.0
      %v772 = vadd.f32 %v770, %v771
      %v773 = vsel %vm344, %v744, 0.0
      %v774 = vadd.f32 %v772, %v773
      %v775 = vsel %vm344, %v746, 0.0
      %v776 = vadd.f32 %v774, %v775
      %v777 = vsel %vm344, %v748, 0.0
      %v778 = vadd.f32 %v776, %v777
      %v779 = vsel %vm344, %v750, 0.0
      %v780 = vadd.f32 %v778, %v779
      %v781 = vsub.f32 %v733, %v765
      %v782 = vsub.f32 %v734, %v780
      %v783 = vsel %vm675, %v781, %v649
      %v784 = vsel %vm676, %v782, %v650
      %v785 = vmax.f32 %v651, %v781
      %v786 = vmax.f32 %v652, %v782
      %v787 = vsub.f32 %v651, %v785
      %v788 = vsub.f32 %v652, %v786
      %v789 = vmul.f32 %v787, 1.442695
      %v790 = vpow.pop %v789
      %v791 = vmul.f32 %v788, 1.442695
      %v792 = vpow.pop %v791
      %v793 = vmul.f32 %v667, %v790
      %v794 = vmul.f32 %v668, %v792
      %v795 = vsub.f32 %v781, %v785
      %v796 = vsub.f32 %v782, %v786
      %v797 = vmul.f32 %v795, 1.442695
      %v798 = vpow.pop %v797
      %v799 = vmul.f32 %v796, 1.442695
      %v800 = vpow.pop %v799
      %v801 = vadd.f32 %v793, %v798
      %v802 = vadd.f32 %v794, %v800
      %803 = vrot.lane.b32.xlu0 %v274, 16
      %v804 = vpop.permute.xlu0 %803
      %v805 = vsel %vm278, %v804, %v274
      %806 = vrot.lane.b32.xlu0 %v275, 16
      %v807 = vpop.permute.xlu0 %806
      %v808 = vsel %vm278, %v807, %v275
      %809 = vrot.lane.b32.xlu0 %v805, 16
      %v810 = vpop.permute.xlu0 %809
      %811 = vrot.lane.b32.xlu0 %v808, 16
      %v812 = vpop.permute.xlu0 %811
      %v813 = vsel %vm278, %v810, %v274
      %v814 = vsel %vm278, %v812, %v275
      %817 = vrot.lane.b32.xlu0 %v813, 113
      %v818 = vpop.permute.xlu0 %817
      %819 = vrot.lane.b32.xlu0 %v814, 113
      %v820 = vpop.permute.xlu0 %819
      %v823 = vsel %vm306, %v818, 100000.0
      %v824 = vsel %vm306, %v820, 100000.0
      %vm825 = vcmp.lt.f32.partialorder %v823, %v677
      %vm826 = vcmp.lt.f32.partialorder %v824, %v678
      %v827 = vsel %vm825, %v823, %v677
      %v828 = vsel %vm826, %v824, %v678
      %v829 = vsel %vm825, 2, %v679
      %v830 = vsel %vm826, 2, %v680
      %831 = vrot.lane.b32.xlu0 %v474, 16
      %v832 = vpop.permute.xlu0 %831
      %v833 = vsel %vm278, %v832, %v474
      %834 = vrot.lane.b32.xlu0 %v476, 16
      %v835 = vpop.permute.xlu0 %834
      %v836 = vsel %vm278, %v835, %v476
      %837 = vrot.lane.b32.xlu0 %v477, 16
      %v838 = vpop.permute.xlu0 %837
      %v839 = vsel %vm278, %v838, %v477
      %840 = vrot.lane.b32.xlu0 %v478, 16
      %v841 = vpop.permute.xlu0 %840
      %v842 = vsel %vm278, %v841, %v478
      %843 = vrot.lane.b32.xlu0 %v479, 16
      %v844 = vpop.permute.xlu0 %843
      %v845 = vsel %vm278, %v844, %v479
      %846 = vrot.lane.b32.xlu0 %v480, 16
      %v847 = vpop.permute.xlu0 %846
      %v848 = vsel %vm278, %v847, %v480
      %849 = vrot.lane.b32.xlu0 %v481, 16
      %v850 = vpop.permute.xlu0 %849
      %v851 = vsel %vm278, %v850, %v481
      %852 = vrot.lane.b32.xlu0 %v482, 16
      %v853 = vpop.permute.xlu0 %852
      %v854 = vsel %vm278, %v853, %v482
      %855 = vrot.lane.b32.xlu0 %v483, 16
      %v856 = vpop.permute.xlu0 %855
      %v857 = vsel %vm278, %v856, %v483
      %858 = vrot.lane.b32.xlu0 %v484, 16
      %v859 = vpop.permute.xlu0 %858
      %v860 = vsel %vm278, %v859, %v484
      %861 = vrot.lane.b32.xlu0 %v485, 16
      %v862 = vpop.permute.xlu0 %861
      %v863 = vsel %vm278, %v862, %v485
      %864 = vrot.lane.b32.xlu0 %v486, 16
      %v865 = vpop.permute.xlu0 %864
      %v866 = vsel %vm278, %v865, %v486
      %867 = vrot.lane.b32.xlu0 %v487, 16
      %v868 = vpop.permute.xlu0 %867
      %v869 = vsel %vm278, %v868, %v487
      %870 = vrot.lane.b32.xlu0 %v488, 16
      %v871 = vpop.permute.xlu0 %870
      %v872 = vsel %vm278, %v871, %v488
      %873 = vrot.lane.b32.xlu0 %v489, 16
      %v874 = vpop.permute.xlu0 %873
      %v875 = vsel %vm278, %v874, %v489
      %876 = vrot.lane.b32.xlu0 %v490, 16
      %v877 = vpop.permute.xlu0 %876
      %v878 = vsel %vm278, %v877, %v490
      %879 = vrot.lane.b32.xlu0 %v833, 16
      %v880 = vpop.permute.xlu0 %879
      %881 = vrot.lane.b32.xlu0 %v836, 16
      %v882 = vpop.permute.xlu0 %881
      %883 = vrot.lane.b32.xlu0 %v839, 16
      %v884 = vpop.permute.xlu0 %883
      %885 = vrot.lane.b32.xlu0 %v842, 16
      %v886 = vpop.permute.xlu0 %885
      %887 = vrot.lane.b32.xlu0 %v845, 16
      %v888 = vpop.permute.xlu0 %887
      %889 = vrot.lane.b32.xlu0 %v848, 16
      %v890 = vpop.permute.xlu0 %889
      %891 = vrot.lane.b32.xlu0 %v851, 16
      %v892 = vpop.permute.xlu0 %891
      %893 = vrot.lane.b32.xlu0 %v854, 16
      %v894 = vpop.permute.xlu0 %893
      %895 = vrot.lane.b32.xlu0 %v857, 16
      %v896 = vpop.permute.xlu0 %895
      %897 = vrot.lane.b32.xlu0 %v860, 16
      %v898 = vpop.permute.xlu0 %897
      %899 = vrot.lane.b32.xlu0 %v863, 16
      %v900 = vpop.permute.xlu0 %899
      %901 = vrot.lane.b32.xlu0 %v866, 16
      %v902 = vpop.permute.xlu0 %901
      %903 = vrot.lane.b32.xlu0 %v869, 16
      %v904 = vpop.permute.xlu0 %903
      %905 = vrot.lane.b32.xlu0 %v872, 16
      %v906 = vpop.permute.xlu0 %905
      %907 = vrot.lane.b32.xlu0 %v875, 16
      %v908 = vpop.permute.xlu0 %907
      %909 = vrot.lane.b32.xlu0 %v878, 16
      %v910 = vpop.permute.xlu0 %909
      %v911 = vsel %vm278, %v880, %v474
      %v912 = vsel %vm278, %v882, %v476
      %v913 = vsel %vm278, %v884, %v477
      %v914 = vsel %vm278, %v886, %v478
      %v915 = vsel %vm278, %v888, %v479
      %v916 = vsel %vm278, %v890, %v480
      %v917 = vsel %vm278, %v892, %v481
      %v918 = vsel %vm278, %v894, %v482
      %v919 = vsel %vm278, %v896, %v483
      %v920 = vsel %vm278, %v898, %v484
      %v921 = vsel %vm278, %v900, %v485
      %v922 = vsel %vm278, %v902, %v486
      %v923 = vsel %vm278, %v904, %v487
      %v924 = vsel %vm278, %v906, %v488
      %v925 = vsel %vm278, %v908, %v489
      %v926 = vsel %vm278, %v910, %v490
      %943 = vrot.lane.b32.xlu0 %v911, 113
      %v944 = vpop.permute.xlu0 %943
      %945 = vrot.lane.b32.xlu0 %v912, 113
      %v946 = vpop.permute.xlu0 %945
      %947 = vrot.lane.b32.xlu0 %v913, 113
      %v948 = vpop.permute.xlu0 %947
      %949 = vrot.lane.b32.xlu0 %v914, 113
      %v950 = vpop.permute.xlu0 %949
      %951 = vrot.lane.b32.xlu0 %v915, 113
      %v952 = vpop.permute.xlu0 %951
      %953 = vrot.lane.b32.xlu0 %v916, 113
      %v954 = vpop.permute.xlu0 %953
      %955 = vrot.lane.b32.xlu0 %v917, 113
      %v956 = vpop.permute.xlu0 %955
      %957 = vrot.lane.b32.xlu0 %v918, 113
      %v958 = vpop.permute.xlu0 %957
      %959 = vrot.lane.b32.xlu0 %v919, 113
      %v960 = vpop.permute.xlu0 %959
      %961 = vrot.lane.b32.xlu0 %v920, 113
      %v962 = vpop.permute.xlu0 %961
      %963 = vrot.lane.b32.xlu0 %v921, 113
      %v964 = vpop.permute.xlu0 %963
      %965 = vrot.lane.b32.xlu0 %v922, 113
      %v966 = vpop.permute.xlu0 %965
      %967 = vrot.lane.b32.xlu0 %v923, 113
      %v968 = vpop.permute.xlu0 %967
      %969 = vrot.lane.b32.xlu0 %v924, 113
      %v970 = vpop.permute.xlu0 %969
      %971 = vrot.lane.b32.xlu0 %v925, 113
      %v972 = vpop.permute.xlu0 %971
      %973 = vrot.lane.b32.xlu0 %v926, 113
      %v974 = vpop.permute.xlu0 %973
      %v991 = vsel %vm306, %v944, %v474
      %v992 = vsel %vm306, %v946, %v476
      %v993 = vsel %vm306, %v948, %v477
      %v994 = vsel %vm306, %v950, %v478
      %v995 = vsel %vm306, %v952, %v479
      %v996 = vsel %vm306, %v954, %v480
      %v997 = vsel %vm306, %v956, %v481
      %v998 = vsel %vm306, %v958, %v482
      %v999 = vsel %vm306, %v960, %v483
      %v1000 = vsel %vm306, %v962, %v484
      %v1001 = vsel %vm306, %v964, %v485
      %v1002 = vsel %vm306, %v966, %v486
      %v1003 = vsel %vm306, %v968, %v487
      %v1004 = vsel %vm306, %v970, %v488
      %v1005 = vsel %vm306, %v972, %v489
      %v1006 = vsel %vm306, %v974, %v490
      %1007 = vrot.lane.b32.xlu0 %v521, 16
      %v1008 = vpop.permute.xlu0 %1007
      %v1009 = vsel %vm278, %v1008, %v521
      %1010 = vrot.lane.b32.xlu0 %v536, 16
      %v1011 = vpop.permute.xlu0 %1010
      %v1012 = vsel %vm278, %v1011, %v536
      %1013 = vrot.lane.b32.xlu0 %v1009, 16
      %v1014 = vpop.permute.xlu0 %1013
      %1015 = vrot.lane.b32.xlu0 %v1012, 16
      %v1016 = vpop.permute.xlu0 %1015
      %v1017 = vsel %vm278, %v1014, %v521
      %v1018 = vsel %vm278, %v1016, %v536
      %1021 = vrot.lane.b32.xlu0 %v1017, 113
      %v1022 = vpop.permute.xlu0 %1021
      %1023 = vrot.lane.b32.xlu0 %v1018, 113
      %v1024 = vpop.permute.xlu0 %1023
      %v1027 = vsel %vm306, %v1022, %v521
      %v1028 = vsel %vm306, %v1024, %v536
      %v1029 = vmul.f32 %v991, %v457
      %v1030 = vmul.f32 %v992, %v458
      %v1031 = vmul.f32 %v993, %v459
      %v1032 = vmul.f32 %v994, %v460
      %v1033 = vmul.f32 %v995, %v461
      %v1034 = vmul.f32 %v996, %v462
      %v1035 = vmul.f32 %v997, %v463
      %v1036 = vmul.f32 %v998, %v464
      %v1037 = vmul.f32 %v999, %v465
      %v1038 = vmul.f32 %v1000, %v466
      %v1039 = vmul.f32 %v1001, %v467
      %v1040 = vmul.f32 %v1002, %v468
      %v1041 = vmul.f32 %v1003, %v469
      %v1042 = vmul.f32 %v1004, %v470
      %v1043 = vmul.f32 %v1005, %v471
      %v1044 = vmul.f32 %v1006, %v472
      %v1045 = vsel %vm344, %v1029, 0.0
      %v1046 = vsel %vm344, %v1031, 0.0
      %v1047 = vadd.f32 %v1045, %v1046
      %v1048 = vsel %vm344, %v1033, 0.0
      %v1049 = vadd.f32 %v1047, %v1048
      %v1050 = vsel %vm344, %v1035, 0.0
      %v1051 = vadd.f32 %v1049, %v1050
      %v1052 = vsel %vm344, %v1037, 0.0
      %v1053 = vadd.f32 %v1051, %v1052
      %v1054 = vsel %vm344, %v1039, 0.0
      %v1055 = vadd.f32 %v1053, %v1054
      %v1056 = vsel %vm344, %v1041, 0.0
      %v1057 = vadd.f32 %v1055, %v1056
      %v1058 = vsel %vm344, %v1043, 0.0
      %v1059 = vadd.f32 %v1057, %v1058
      %v1060 = vsel %vm344, %v1030, 0.0
      %v1061 = vsel %vm344, %v1032, 0.0
      %v1062 = vadd.f32 %v1060, %v1061
      %v1063 = vsel %vm344, %v1034, 0.0
      %v1064 = vadd.f32 %v1062, %v1063
      %v1065 = vsel %vm344, %v1036, 0.0
      %v1066 = vadd.f32 %v1064, %v1065
      %v1067 = vsel %vm344, %v1038, 0.0
      %v1068 = vadd.f32 %v1066, %v1067
      %v1069 = vsel %vm344, %v1040, 0.0
      %v1070 = vadd.f32 %v1068, %v1069
      %v1071 = vsel %vm344, %v1042, 0.0
      %v1072 = vadd.f32 %v1070, %v1071
      %v1073 = vsel %vm344, %v1044, 0.0
      %v1074 = vadd.f32 %v1072, %v1073
      %v1075 = vsub.f32 %v1027, %v1059
      %v1076 = vsub.f32 %v1028, %v1074
      %v1077 = vsel %vm825, %v1075, %v783
      %v1078 = vsel %vm826, %v1076, %v784
      %v1079 = vmax.f32 %v785, %v1075
      %v1080 = vmax.f32 %v786, %v1076
      %v1081 = vsub.f32 %v785, %v1079
      %v1082 = vsub.f32 %v786, %v1080
      %v1083 = vmul.f32 %v1081, 1.442695
      %v1084 = vpow.pop %v1083
      %v1085 = vmul.f32 %v1082, 1.442695
      %v1086 = vpow.pop %v1085
      %v1087 = vmul.f32 %v801, %v1084
      %v1088 = vmul.f32 %v802, %v1086
      %v1089 = vsub.f32 %v1075, %v1079
      %v1090 = vsub.f32 %v1076, %v1080
      %v1091 = vmul.f32 %v1089, 1.442695
      %v1092 = vpow.pop %v1091
      %v1093 = vmul.f32 %v1090, 1.442695
      %v1094 = vpow.pop %v1093
      %v1095 = vadd.f32 %v1087, %v1092
      %v1096 = vadd.f32 %v1088, %v1094
      %1097 = vrot.lane.b32.xlu0 %v813, 127
      %v1098 = vpop.permute.xlu0 %1097
      %1099 = vrot.lane.b32.xlu0 %v814, 127
      %v1100 = vpop.permute.xlu0 %1099
      %v1103 = vsel %vm293, %v1098, 100000.0
      %v1104 = vsel %vm293, %v1100, 100000.0
      %vm1105 = vcmp.lt.f32.partialorder %v1103, %v827
      %vm1106 = vcmp.lt.f32.partialorder %v1104, %v828
      %v1107 = vsel %vm1105, %v1103, %v827
      %v1108 = vsel %vm1106, %v1104, %v828
      %v1109 = vsel %vm1105, 3, %v829
      %v1110 = vsel %vm1106, 3, %v830
      %1111 = vrot.lane.b32.xlu0 %v911, 127
      %v1112 = vpop.permute.xlu0 %1111
      %1113 = vrot.lane.b32.xlu0 %v912, 127
      %v1114 = vpop.permute.xlu0 %1113
      %1115 = vrot.lane.b32.xlu0 %v913, 127
      %v1116 = vpop.permute.xlu0 %1115
      %1117 = vrot.lane.b32.xlu0 %v914, 127
      %v1118 = vpop.permute.xlu0 %1117
      %1119 = vrot.lane.b32.xlu0 %v915, 127
      %v1120 = vpop.permute.xlu0 %1119
      %1121 = vrot.lane.b32.xlu0 %v916, 127
      %v1122 = vpop.permute.xlu0 %1121
      %1123 = vrot.lane.b32.xlu0 %v917, 127
      %v1124 = vpop.permute.xlu0 %1123
      %1125 = vrot.lane.b32.xlu0 %v918, 127
      %v1126 = vpop.permute.xlu0 %1125
      %1127 = vrot.lane.b32.xlu0 %v919, 127
      %v1128 = vpop.permute.xlu0 %1127
      %1129 = vrot.lane.b32.xlu0 %v920, 127
      %v1130 = vpop.permute.xlu0 %1129
      %1131 = vrot.lane.b32.xlu0 %v921, 127
      %v1132 = vpop.permute.xlu0 %1131
      %1133 = vrot.lane.b32.xlu0 %v922, 127
      %v1134 = vpop.permute.xlu0 %1133
      %1135 = vrot.lane.b32.xlu0 %v923, 127
      %v1136 = vpop.permute.xlu0 %1135
      %1137 = vrot.lane.b32.xlu0 %v924, 127
      %v1138 = vpop.permute.xlu0 %1137
      %1139 = vrot.lane.b32.xlu0 %v925, 127
      %v1140 = vpop.permute.xlu0 %1139
      %1141 = vrot.lane.b32.xlu0 %v926, 127
      %v1142 = vpop.permute.xlu0 %1141
      %v1159 = vsel %vm293, %v1112, %v474
      %v1160 = vsel %vm293, %v1114, %v476
      %v1161 = vsel %vm293, %v1116, %v477
      %v1162 = vsel %vm293, %v1118, %v478
      %v1163 = vsel %vm293, %v1120, %v479
      %v1164 = vsel %vm293, %v1122, %v480
      %v1165 = vsel %vm293, %v1124, %v481
      %v1166 = vsel %vm293, %v1126, %v482
      %v1167 = vsel %vm293, %v1128, %v483
      %v1168 = vsel %vm293, %v1130, %v484
      %v1169 = vsel %vm293, %v1132, %v485
      %v1170 = vsel %vm293, %v1134, %v486
      %v1171 = vsel %vm293, %v1136, %v487
      %v1172 = vsel %vm293, %v1138, %v488
      %v1173 = vsel %vm293, %v1140, %v489
      %v1174 = vsel %vm293, %v1142, %v490
      %1175 = vrot.lane.b32.xlu0 %v1017, 127
      %v1176 = vpop.permute.xlu0 %1175
      %1177 = vrot.lane.b32.xlu0 %v1018, 127
      %v1178 = vpop.permute.xlu0 %1177
      %v1181 = vsel %vm293, %v1176, %v521
      %v1182 = vsel %vm293, %v1178, %v536
      %v1183 = vmul.f32 %v1159, %v457
      %v1184 = vmul.f32 %v1160, %v458
      %v1185 = vmul.f32 %v1161, %v459
      %v1186 = vmul.f32 %v1162, %v460
      %v1187 = vmul.f32 %v1163, %v461
      %v1188 = vmul.f32 %v1164, %v462
      %v1189 = vmul.f32 %v1165, %v463
      %v1190 = vmul.f32 %v1166, %v464
      %v1191 = vmul.f32 %v1167, %v465
      %v1192 = vmul.f32 %v1168, %v466
      %v1193 = vmul.f32 %v1169, %v467
      %v1194 = vmul.f32 %v1170, %v468
      %v1195 = vmul.f32 %v1171, %v469
      %v1196 = vmul.f32 %v1172, %v470
      %v1197 = vmul.f32 %v1173, %v471
      %v1198 = vmul.f32 %v1174, %v472
      %v1199 = vsel %vm344, %v1183, 0.0
      %v1200 = vsel %vm344, %v1185, 0.0
      %v1201 = vadd.f32 %v1199, %v1200
      %v1202 = vsel %vm344, %v1187, 0.0
      %v1203 = vadd.f32 %v1201, %v1202
      %v1204 = vsel %vm344, %v1189, 0.0
      %v1205 = vadd.f32 %v1203, %v1204
      %v1206 = vsel %vm344, %v1191, 0.0
      %v1207 = vadd.f32 %v1205, %v1206
      %v1208 = vsel %vm344, %v1193, 0.0
      %v1209 = vadd.f32 %v1207, %v1208
      %v1210 = vsel %vm344, %v1195, 0.0
      %v1211 = vadd.f32 %v1209, %v1210
      %v1212 = vsel %vm344, %v1197, 0.0
      %v1213 = vadd.f32 %v1211, %v1212
      %v1214 = vsel %vm344, %v1184, 0.0
      %v1215 = vsel %vm344, %v1186, 0.0
      %v1216 = vadd.f32 %v1214, %v1215
      %v1217 = vsel %vm344, %v1188, 0.0
      %v1218 = vadd.f32 %v1216, %v1217
      %v1219 = vsel %vm344, %v1190, 0.0
      %v1220 = vadd.f32 %v1218, %v1219
      %v1221 = vsel %vm344, %v1192, 0.0
      %v1222 = vadd.f32 %v1220, %v1221
      %v1223 = vsel %vm344, %v1194, 0.0
      %v1224 = vadd.f32 %v1222, %v1223
      %v1225 = vsel %vm344, %v1196, 0.0
      %v1226 = vadd.f32 %v1224, %v1225
      %v1227 = vsel %vm344, %v1198, 0.0
      %v1228 = vadd.f32 %v1226, %v1227
      %v1229 = vsub.f32 %v1181, %v1213
      %v1230 = vsub.f32 %v1182, %v1228
      %v1231 = vsel %vm1105, %v1229, %v1077
      %v1232 = vsel %vm1106, %v1230, %v1078
      %v1233 = vmax.f32 %v1079, %v1229
      %v1234 = vmax.f32 %v1080, %v1230
      %v1235 = vsub.f32 %v1079, %v1233
      %v1236 = vsub.f32 %v1080, %v1234
      %v1237 = vmul.f32 %v1235, 1.442695
      %v1238 = vpow.pop %v1237
      %v1239 = vmul.f32 %v1236, 1.442695
      %v1240 = vpow.pop %v1239
      %v1241 = vmul.f32 %v1095, %v1238
      %v1242 = vmul.f32 %v1096, %v1240
      %v1243 = vsub.f32 %v1229, %v1233
      %v1244 = vsub.f32 %v1230, %v1234
      %v1245 = vmul.f32 %v1243, 1.442695
      %v1246 = vpow.pop %v1245
      %v1247 = vmul.f32 %v1244, 1.442695
      %v1248 = vpow.pop %v1247
      %v1249 = vadd.f32 %v1241, %v1246
      %v1250 = vadd.f32 %v1242, %v1248
      %1251 = vrot.lane.b32.xlu0 %v673, 16
      %v1252 = vpop.permute.xlu0 %1251
      %v1253 = vsel %vm278, %v1252, %v673
      %1254 = vrot.lane.b32.xlu0 %v674, 16
      %v1255 = vpop.permute.xlu0 %1254
      %v1256 = vsel %vm278, %v1255, %v674
      %1257 = vrot.lane.b32.xlu0 %v1253, 16
      %v1258 = vpop.permute.xlu0 %1257
      %1259 = vrot.lane.b32.xlu0 %v1256, 16
      %v1260 = vpop.permute.xlu0 %1259
      %v1261 = vsel %vm278, %v1258, %v673
      %v1262 = vsel %vm278, %v1260, %v674
      %1265 = vrot.lane.b32.xlu0 %v1261, 127
      %v1266 = vpop.permute.xlu0 %1265
      %1267 = vrot.lane.b32.xlu0 %v1262, 127
      %v1268 = vpop.permute.xlu0 %1267
      %v1271 = vsel %vm293, %v1266, 100000.0
      %v1272 = vsel %vm293, %v1268, 100000.0
      %vm1273 = vcmp.lt.f32.partialorder %v1271, %v1107
      %vm1274 = vcmp.lt.f32.partialorder %v1272, %v1108
      %v1275 = vsel %vm1273, %v1271, %v1107
      %v1276 = vsel %vm1274, %v1272, %v1108
      %v1277 = vsel %vm1273, 4, %v1109
      %v1278 = vsel %vm1274, 4, %v1110
      %1279 = vrot.lane.b32.xlu0 %v713, 16
      %v1280 = vpop.permute.xlu0 %1279
      %v1281 = vsel %vm278, %v1280, %v713
      %1282 = vrot.lane.b32.xlu0 %v714, 16
      %v1283 = vpop.permute.xlu0 %1282
      %v1284 = vsel %vm278, %v1283, %v714
      %1285 = vrot.lane.b32.xlu0 %v715, 16
      %v1286 = vpop.permute.xlu0 %1285
      %v1287 = vsel %vm278, %v1286, %v715
      %1288 = vrot.lane.b32.xlu0 %v716, 16
      %v1289 = vpop.permute.xlu0 %1288
      %v1290 = vsel %vm278, %v1289, %v716
      %1291 = vrot.lane.b32.xlu0 %v717, 16
      %v1292 = vpop.permute.xlu0 %1291
      %v1293 = vsel %vm278, %v1292, %v717
      %1294 = vrot.lane.b32.xlu0 %v718, 16
      %v1295 = vpop.permute.xlu0 %1294
      %v1296 = vsel %vm278, %v1295, %v718
      %1297 = vrot.lane.b32.xlu0 %v719, 16
      %v1298 = vpop.permute.xlu0 %1297
      %v1299 = vsel %vm278, %v1298, %v719
      %1300 = vrot.lane.b32.xlu0 %v720, 16
      %v1301 = vpop.permute.xlu0 %1300
      %v1302 = vsel %vm278, %v1301, %v720
      %1303 = vrot.lane.b32.xlu0 %v721, 16
      %v1304 = vpop.permute.xlu0 %1303
      %v1305 = vsel %vm278, %v1304, %v721
      %1306 = vrot.lane.b32.xlu0 %v722, 16
      %v1307 = vpop.permute.xlu0 %1306
      %v1308 = vsel %vm278, %v1307, %v722
      %1309 = vrot.lane.b32.xlu0 %v723, 16
      %v1310 = vpop.permute.xlu0 %1309
      %v1311 = vsel %vm278, %v1310, %v723
      %1312 = vrot.lane.b32.xlu0 %v724, 16
      %v1313 = vpop.permute.xlu0 %1312
      %v1314 = vsel %vm278, %v1313, %v724
      %1315 = vrot.lane.b32.xlu0 %v725, 16
      %v1316 = vpop.permute.xlu0 %1315
      %v1317 = vsel %vm278, %v1316, %v725
      %1318 = vrot.lane.b32.xlu0 %v726, 16
      %v1319 = vpop.permute.xlu0 %1318
      %v1320 = vsel %vm278, %v1319, %v726
      %1321 = vrot.lane.b32.xlu0 %v727, 16
      %v1322 = vpop.permute.xlu0 %1321
      %v1323 = vsel %vm278, %v1322, %v727
      %1324 = vrot.lane.b32.xlu0 %v728, 16
      %v1325 = vpop.permute.xlu0 %1324
      %v1326 = vsel %vm278, %v1325, %v728
      %1327 = vrot.lane.b32.xlu0 %v1281, 16
      %v1328 = vpop.permute.xlu0 %1327
      %1329 = vrot.lane.b32.xlu0 %v1284, 16
      %v1330 = vpop.permute.xlu0 %1329
      %1331 = vrot.lane.b32.xlu0 %v1287, 16
      %v1332 = vpop.permute.xlu0 %1331
      %1333 = vrot.lane.b32.xlu0 %v1290, 16
      %v1334 = vpop.permute.xlu0 %1333
      %1335 = vrot.lane.b32.xlu0 %v1293, 16
      %v1336 = vpop.permute.xlu0 %1335
      %1337 = vrot.lane.b32.xlu0 %v1296, 16
      %v1338 = vpop.permute.xlu0 %1337
      %1339 = vrot.lane.b32.xlu0 %v1299, 16
      %v1340 = vpop.permute.xlu0 %1339
      %1341 = vrot.lane.b32.xlu0 %v1302, 16
      %v1342 = vpop.permute.xlu0 %1341
      %1343 = vrot.lane.b32.xlu0 %v1305, 16
      %v1344 = vpop.permute.xlu0 %1343
      %1345 = vrot.lane.b32.xlu0 %v1308, 16
      %v1346 = vpop.permute.xlu0 %1345
      %1347 = vrot.lane.b32.xlu0 %v1311, 16
      %v1348 = vpop.permute.xlu0 %1347
      %1349 = vrot.lane.b32.xlu0 %v1314, 16
      %v1350 = vpop.permute.xlu0 %1349
      %1351 = vrot.lane.b32.xlu0 %v1317, 16
      %v1352 = vpop.permute.xlu0 %1351
      %1353 = vrot.lane.b32.xlu0 %v1320, 16
      %v1354 = vpop.permute.xlu0 %1353
      %1355 = vrot.lane.b32.xlu0 %v1323, 16
      %v1356 = vpop.permute.xlu0 %1355
      %1357 = vrot.lane.b32.xlu0 %v1326, 16
      %v1358 = vpop.permute.xlu0 %1357
      %v1359 = vsel %vm278, %v1328, %v713
      %v1360 = vsel %vm278, %v1330, %v714
      %v1361 = vsel %vm278, %v1332, %v715
      %v1362 = vsel %vm278, %v1334, %v716
      %v1363 = vsel %vm278, %v1336, %v717
      %v1364 = vsel %vm278, %v1338, %v718
      %v1365 = vsel %vm278, %v1340, %v719
      %v1366 = vsel %vm278, %v1342, %v720
      %v1367 = vsel %vm278, %v1344, %v721
      %v1368 = vsel %vm278, %v1346, %v722
      %v1369 = vsel %vm278, %v1348, %v723
      %v1370 = vsel %vm278, %v1350, %v724
      %v1371 = vsel %vm278, %v1352, %v725
      %v1372 = vsel %vm278, %v1354, %v726
      %v1373 = vsel %vm278, %v1356, %v727
      %v1374 = vsel %vm278, %v1358, %v728
      %1391 = vrot.lane.b32.xlu0 %v1359, 127
      %v1392 = vpop.permute.xlu0 %1391
      %1393 = vrot.lane.b32.xlu0 %v1360, 127
      %v1394 = vpop.permute.xlu0 %1393
      %1395 = vrot.lane.b32.xlu0 %v1361, 127
      %v1396 = vpop.permute.xlu0 %1395
      %1397 = vrot.lane.b32.xlu0 %v1362, 127
      %v1398 = vpop.permute.xlu0 %1397
      %1399 = vrot.lane.b32.xlu0 %v1363, 127
      %v1400 = vpop.permute.xlu0 %1399
      %1401 = vrot.lane.b32.xlu0 %v1364, 127
      %v1402 = vpop.permute.xlu0 %1401
      %1403 = vrot.lane.b32.xlu0 %v1365, 127
      %v1404 = vpop.permute.xlu0 %1403
      %1405 = vrot.lane.b32.xlu0 %v1366, 127
      %v1406 = vpop.permute.xlu0 %1405
      %1407 = vrot.lane.b32.xlu0 %v1367, 127
      %v1408 = vpop.permute.xlu0 %1407
      %1409 = vrot.lane.b32.xlu0 %v1368, 127
      %v1410 = vpop.permute.xlu0 %1409
      %1411 = vrot.lane.b32.xlu0 %v1369, 127
      %v1412 = vpop.permute.xlu0 %1411
      %1413 = vrot.lane.b32.xlu0 %v1370, 127
      %v1414 = vpop.permute.xlu0 %1413
      %1415 = vrot.lane.b32.xlu0 %v1371, 127
      %v1416 = vpop.permute.xlu0 %1415
      %1417 = vrot.lane.b32.xlu0 %v1372, 127
      %v1418 = vpop.permute.xlu0 %1417
      %1419 = vrot.lane.b32.xlu0 %v1373, 127
      %v1420 = vpop.permute.xlu0 %1419
      %1421 = vrot.lane.b32.xlu0 %v1374, 127
      %v1422 = vpop.permute.xlu0 %1421
      %v1439 = vsel %vm293, %v1392, %v713
      %v1440 = vsel %vm293, %v1394, %v714
      %v1441 = vsel %vm293, %v1396, %v715
      %v1442 = vsel %vm293, %v1398, %v716
      %v1443 = vsel %vm293, %v1400, %v717
      %v1444 = vsel %vm293, %v1402, %v718
      %v1445 = vsel %vm293, %v1404, %v719
      %v1446 = vsel %vm293, %v1406, %v720
      %v1447 = vsel %vm293, %v1408, %v721
      %v1448 = vsel %vm293, %v1410, %v722
      %v1449 = vsel %vm293, %v1412, %v723
      %v1450 = vsel %vm293, %v1414, %v724
      %v1451 = vsel %vm293, %v1416, %v725
      %v1452 = vsel %vm293, %v1418, %v726
      %v1453 = vsel %vm293, %v1420, %v727
      %v1454 = vsel %vm293, %v1422, %v728
      %1455 = vrot.lane.b32.xlu0 %v733, 16
      %v1456 = vpop.permute.xlu0 %1455
      %v1457 = vsel %vm278, %v1456, %v733
      %1458 = vrot.lane.b32.xlu0 %v734, 16
      %v1459 = vpop.permute.xlu0 %1458
      %v1460 = vsel %vm278, %v1459, %v734
      %1461 = vrot.lane.b32.xlu0 %v1457, 16
      %v1462 = vpop.permute.xlu0 %1461
      %1463 = vrot.lane.b32.xlu0 %v1460, 16
      %v1464 = vpop.permute.xlu0 %1463
      %v1465 = vsel %vm278, %v1462, %v733
      %v1466 = vsel %vm278, %v1464, %v734
      %1469 = vrot.lane.b32.xlu0 %v1465, 127
      %v1470 = vpop.permute.xlu0 %1469
      %1471 = vrot.lane.b32.xlu0 %v1466, 127
      %v1472 = vpop.permute.xlu0 %1471
      %v1475 = vsel %vm293, %v1470, %v733
      %v1476 = vsel %vm293, %v1472, %v734
      %v1477 = vmul.f32 %v1439, %v457
      %v1478 = vmul.f32 %v1440, %v458
      %v1479 = vmul.f32 %v1441, %v459
      %v1480 = vmul.f32 %v1442, %v460
      %v1481 = vmul.f32 %v1443, %v461
      %v1482 = vmul.f32 %v1444, %v462
      %v1483 = vmul.f32 %v1445, %v463
      %v1484 = vmul.f32 %v1446, %v464
      %v1485 = vmul.f32 %v1447, %v465
      %v1486 = vmul.f32 %v1448, %v466
      %v1487 = vmul.f32 %v1449, %v467
      %v1488 = vmul.f32 %v1450, %v468
      %v1489 = vmul.f32 %v1451, %v469
      %v1490 = vmul.f32 %v1452, %v470
      %v1491 = vmul.f32 %v1453, %v471
      %v1492 = vmul.f32 %v1454, %v472
      %v1493 = vsel %vm344, %v1477, 0.0
      %v1494 = vsel %vm344, %v1479, 0.0
      %v1495 = vadd.f32 %v1493, %v1494
      %v1496 = vsel %vm344, %v1481, 0.0
      %v1497 = vadd.f32 %v1495, %v1496
      %v1498 = vsel %vm344, %v1483, 0.0
      %v1499 = vadd.f32 %v1497, %v1498
      %v1500 = vsel %vm344, %v1485, 0.0
      %v1501 = vadd.f32 %v1499, %v1500
      %v1502 = vsel %vm344, %v1487, 0.0
      %v1503 = vadd.f32 %v1501, %v1502
      %v1504 = vsel %vm344, %v1489, 0.0
      %v1505 = vadd.f32 %v1503, %v1504
      %v1506 = vsel %vm344, %v1491, 0.0
      %v1507 = vadd.f32 %v1505, %v1506
      %v1508 = vsel %vm344, %v1478, 0.0
      %v1509 = vsel %vm344, %v1480, 0.0
      %v1510 = vadd.f32 %v1508, %v1509
      %v1511 = vsel %vm344, %v1482, 0.0
      %v1512 = vadd.f32 %v1510, %v1511
      %v1513 = vsel %vm344, %v1484, 0.0
      %v1514 = vadd.f32 %v1512, %v1513
      %v1515 = vsel %vm344, %v1486, 0.0
      %v1516 = vadd.f32 %v1514, %v1515
      %v1517 = vsel %vm344, %v1488, 0.0
      %v1518 = vadd.f32 %v1516, %v1517
      %v1519 = vsel %vm344, %v1490, 0.0
      %v1520 = vadd.f32 %v1518, %v1519
      %v1521 = vsel %vm344, %v1492, 0.0
      %v1522 = vadd.f32 %v1520, %v1521
      %v1523 = vsub.f32 %v1475, %v1507
      %v1524 = vsub.f32 %v1476, %v1522
      %v1525 = vsel %vm1273, %v1523, %v1231
      %v1526 = vsel %vm1274, %v1524, %v1232
      %v1527 = vmax.f32 %v1233, %v1523
      %v1528 = vmax.f32 %v1234, %v1524
      %v1529 = vsub.f32 %v1233, %v1527
      %v1530 = vsub.f32 %v1234, %v1528
      %v1531 = vmul.f32 %v1529, 1.442695
      %v1532 = vpow.pop %v1531
      %v1533 = vmul.f32 %v1530, 1.442695
      %v1534 = vpow.pop %v1533
      %v1535 = vmul.f32 %v1249, %v1532
      %v1536 = vmul.f32 %v1250, %v1534
      %v1537 = vsub.f32 %v1523, %v1527
      %v1538 = vsub.f32 %v1524, %v1528
      %v1539 = vmul.f32 %v1537, 1.442695
      %v1540 = vpow.pop %v1539
      %v1541 = vmul.f32 %v1538, 1.442695
      %v1542 = vpow.pop %v1541
      %v1543 = vadd.f32 %v1535, %v1540
      %v1544 = vadd.f32 %v1536, %v1542
      %1545 = vrot.lane.b32.xlu0 %v541, 16
      %v1546 = vpop.permute.xlu0 %1545
      %v1547 = vsel %vm278, %v1546, %v541
      %1548 = vrot.lane.b32.xlu0 %v542, 16
      %v1549 = vpop.permute.xlu0 %1548
      %v1550 = vsel %vm278, %v1549, %v542
      %1551 = vrot.lane.b32.xlu0 %v1547, 16
      %v1552 = vpop.permute.xlu0 %1551
      %1553 = vrot.lane.b32.xlu0 %v1550, 16
      %v1554 = vpop.permute.xlu0 %1553
      %v1555 = vsel %vm278, %v1552, %v541
      %v1556 = vsel %vm278, %v1554, %v542
      %1559 = vrot.lane.b32.xlu0 %v1555, 127
      %v1560 = vpop.permute.xlu0 %1559
      %1561 = vrot.lane.b32.xlu0 %v1556, 127
      %v1562 = vpop.permute.xlu0 %1561
      %v1565 = vsel %vm293, %v1560, 100000.0
      %v1566 = vsel %vm293, %v1562, 100000.0
      %vm1567 = vcmp.lt.f32.partialorder %v1565, %v1275
      %vm1568 = vcmp.lt.f32.partialorder %v1566, %v1276
      %v1569 = vsel %vm1567, %v1565, %v1275
      %v1570 = vsel %vm1568, %v1566, %v1276
      %v1571 = vsel %vm1567, 5, %v1277
      %v1572 = vsel %vm1568, 5, %v1278
      %1573 = vrot.lane.b32.xlu0 %v579, 16
      %v1574 = vpop.permute.xlu0 %1573
      %v1575 = vsel %vm278, %v1574, %v579
      %1576 = vrot.lane.b32.xlu0 %v580, 16
      %v1577 = vpop.permute.xlu0 %1576
      %v1578 = vsel %vm278, %v1577, %v580
      %1579 = vrot.lane.b32.xlu0 %v581, 16
      %v1580 = vpop.permute.xlu0 %1579
      %v1581 = vsel %vm278, %v1580, %v581
      %1582 = vrot.lane.b32.xlu0 %v582, 16
      %v1583 = vpop.permute.xlu0 %1582
      %v1584 = vsel %vm278, %v1583, %v582
      %1585 = vrot.lane.b32.xlu0 %v583, 16
      %v1586 = vpop.permute.xlu0 %1585
      %v1587 = vsel %vm278, %v1586, %v583
      %1588 = vrot.lane.b32.xlu0 %v584, 16
      %v1589 = vpop.permute.xlu0 %1588
      %v1590 = vsel %vm278, %v1589, %v584
      %1591 = vrot.lane.b32.xlu0 %v585, 16
      %v1592 = vpop.permute.xlu0 %1591
      %v1593 = vsel %vm278, %v1592, %v585
      %1594 = vrot.lane.b32.xlu0 %v586, 16
      %v1595 = vpop.permute.xlu0 %1594
      %v1596 = vsel %vm278, %v1595, %v586
      %1597 = vrot.lane.b32.xlu0 %v587, 16
      %v1598 = vpop.permute.xlu0 %1597
      %v1599 = vsel %vm278, %v1598, %v587
      %1600 = vrot.lane.b32.xlu0 %v588, 16
      %v1601 = vpop.permute.xlu0 %1600
      %v1602 = vsel %vm278, %v1601, %v588
      %1603 = vrot.lane.b32.xlu0 %v589, 16
      %v1604 = vpop.permute.xlu0 %1603
      %v1605 = vsel %vm278, %v1604, %v589
      %1606 = vrot.lane.b32.xlu0 %v590, 16
      %v1607 = vpop.permute.xlu0 %1606
      %v1608 = vsel %vm278, %v1607, %v590
      %1609 = vrot.lane.b32.xlu0 %v591, 16
      %v1610 = vpop.permute.xlu0 %1609
      %v1611 = vsel %vm278, %v1610, %v591
      %1612 = vrot.lane.b32.xlu0 %v592, 16
      %v1613 = vpop.permute.xlu0 %1612
      %v1614 = vsel %vm278, %v1613, %v592
      %1615 = vrot.lane.b32.xlu0 %v593, 16
      %v1616 = vpop.permute.xlu0 %1615
      %v1617 = vsel %vm278, %v1616, %v593
      %1618 = vrot.lane.b32.xlu0 %v594, 16
      %v1619 = vpop.permute.xlu0 %1618
      %v1620 = vsel %vm278, %v1619, %v594
      %1621 = vrot.lane.b32.xlu0 %v1575, 16
      %v1622 = vpop.permute.xlu0 %1621
      %1623 = vrot.lane.b32.xlu0 %v1578, 16
      %v1624 = vpop.permute.xlu0 %1623
      %1625 = vrot.lane.b32.xlu0 %v1581, 16
      %v1626 = vpop.permute.xlu0 %1625
      %1627 = vrot.lane.b32.xlu0 %v1584, 16
      %v1628 = vpop.permute.xlu0 %1627
      %1629 = vrot.lane.b32.xlu0 %v1587, 16
      %v1630 = vpop.permute.xlu0 %1629
      %1631 = vrot.lane.b32.xlu0 %v1590, 16
      %v1632 = vpop.permute.xlu0 %1631
      %1633 = vrot.lane.b32.xlu0 %v1593, 16
      %v1634 = vpop.permute.xlu0 %1633
      %1635 = vrot.lane.b32.xlu0 %v1596, 16
      %v1636 = vpop.permute.xlu0 %1635
      %1637 = vrot.lane.b32.xlu0 %v1599, 16
      %v1638 = vpop.permute.xlu0 %1637
      %1639 = vrot.lane.b32.xlu0 %v1602, 16
      %v1640 = vpop.permute.xlu0 %1639
      %1641 = vrot.lane.b32.xlu0 %v1605, 16
      %v1642 = vpop.permute.xlu0 %1641
      %1643 = vrot.lane.b32.xlu0 %v1608, 16
      %v1644 = vpop.permute.xlu0 %1643
      %1645 = vrot.lane.b32.xlu0 %v1611, 16
      %v1646 = vpop.permute.xlu0 %1645
      %1647 = vrot.lane.b32.xlu0 %v1614, 16
      %v1648 = vpop.permute.xlu0 %1647
      %1649 = vrot.lane.b32.xlu0 %v1617, 16
      %v1650 = vpop.permute.xlu0 %1649
      %1651 = vrot.lane.b32.xlu0 %v1620, 16
      %v1652 = vpop.permute.xlu0 %1651
      %v1653 = vsel %vm278, %v1622, %v579
      %v1654 = vsel %vm278, %v1624, %v580
      %v1655 = vsel %vm278, %v1626, %v581
      %v1656 = vsel %vm278, %v1628, %v582
      %v1657 = vsel %vm278, %v1630, %v583
      %v1658 = vsel %vm278, %v1632, %v584
      %v1659 = vsel %vm278, %v1634, %v585
      %v1660 = vsel %vm278, %v1636, %v586
      %v1661 = vsel %vm278, %v1638, %v587
      %v1662 = vsel %vm278, %v1640, %v588
      %v1663 = vsel %vm278, %v1642, %v589
      %v1664 = vsel %vm278, %v1644, %v590
      %v1665 = vsel %vm278, %v1646, %v591
      %v1666 = vsel %vm278, %v1648, %v592
      %v1667 = vsel %vm278, %v1650, %v593
      %v1668 = vsel %vm278, %v1652, %v594
      %1685 = vrot.lane.b32.xlu0 %v1653, 127
      %v1686 = vpop.permute.xlu0 %1685
      %1687 = vrot.lane.b32.xlu0 %v1654, 127
      %v1688 = vpop.permute.xlu0 %1687
      %1689 = vrot.lane.b32.xlu0 %v1655, 127
      %v1690 = vpop.permute.xlu0 %1689
      %1691 = vrot.lane.b32.xlu0 %v1656, 127
      %v1692 = vpop.permute.xlu0 %1691
      %1693 = vrot.lane.b32.xlu0 %v1657, 127
      %v1694 = vpop.permute.xlu0 %1693
      %1695 = vrot.lane.b32.xlu0 %v1658, 127
      %v1696 = vpop.permute.xlu0 %1695
      %1697 = vrot.lane.b32.xlu0 %v1659, 127
      %v1698 = vpop.permute.xlu0 %1697
      %1699 = vrot.lane.b32.xlu0 %v1660, 127
      %v1700 = vpop.permute.xlu0 %1699
      %1701 = vrot.lane.b32.xlu0 %v1661, 127
      %v1702 = vpop.permute.xlu0 %1701
      %1703 = vrot.lane.b32.xlu0 %v1662, 127
      %v1704 = vpop.permute.xlu0 %1703
      %1705 = vrot.lane.b32.xlu0 %v1663, 127
      %v1706 = vpop.permute.xlu0 %1705
      %1707 = vrot.lane.b32.xlu0 %v1664, 127
      %v1708 = vpop.permute.xlu0 %1707
      %1709 = vrot.lane.b32.xlu0 %v1665, 127
      %v1710 = vpop.permute.xlu0 %1709
      %1711 = vrot.lane.b32.xlu0 %v1666, 127
      %v1712 = vpop.permute.xlu0 %1711
      %1713 = vrot.lane.b32.xlu0 %v1667, 127
      %v1714 = vpop.permute.xlu0 %1713
      %1715 = vrot.lane.b32.xlu0 %v1668, 127
      %v1716 = vpop.permute.xlu0 %1715
      %v1733 = vsel %vm293, %v1686, %v579
      %v1734 = vsel %vm293, %v1688, %v580
      %v1735 = vsel %vm293, %v1690, %v581
      %v1736 = vsel %vm293, %v1692, %v582
      %v1737 = vsel %vm293, %v1694, %v583
      %v1738 = vsel %vm293, %v1696, %v584
      %v1739 = vsel %vm293, %v1698, %v585
      %v1740 = vsel %vm293, %v1700, %v586
      %v1741 = vsel %vm293, %v1702, %v587
      %v1742 = vsel %vm293, %v1704, %v588
      %v1743 = vsel %vm293, %v1706, %v589
      %v1744 = vsel %vm293, %v1708, %v590
      %v1745 = vsel %vm293, %v1710, %v591
      %v1746 = vsel %vm293, %v1712, %v592
      %v1747 = vsel %vm293, %v1714, %v593
      %v1748 = vsel %vm293, %v1716, %v594
      %1749 = vrot.lane.b32.xlu0 %v599, 16
      %v1750 = vpop.permute.xlu0 %1749
      %v1751 = vsel %vm278, %v1750, %v599
      %1752 = vrot.lane.b32.xlu0 %v600, 16
      %v1753 = vpop.permute.xlu0 %1752
      %v1754 = vsel %vm278, %v1753, %v600
      %1755 = vrot.lane.b32.xlu0 %v1751, 16
      %v1756 = vpop.permute.xlu0 %1755
      %1757 = vrot.lane.b32.xlu0 %v1754, 16
      %v1758 = vpop.permute.xlu0 %1757
      %v1759 = vsel %vm278, %v1756, %v599
      %v1760 = vsel %vm278, %v1758, %v600
      %1763 = vrot.lane.b32.xlu0 %v1759, 127
      %v1764 = vpop.permute.xlu0 %1763
      %1765 = vrot.lane.b32.xlu0 %v1760, 127
      %v1766 = vpop.permute.xlu0 %1765
      %v1769 = vsel %vm293, %v1764, %v599
      %v1770 = vsel %vm293, %v1766, %v600
      %v1771 = vmul.f32 %v1733, %v457
      %v1772 = vmul.f32 %v1734, %v458
      %v1773 = vmul.f32 %v1735, %v459
      %v1774 = vmul.f32 %v1736, %v460
      %v1775 = vmul.f32 %v1737, %v461
      %v1776 = vmul.f32 %v1738, %v462
      %v1777 = vmul.f32 %v1739, %v463
      %v1778 = vmul.f32 %v1740, %v464
      %v1779 = vmul.f32 %v1741, %v465
      %v1780 = vmul.f32 %v1742, %v466
      %v1781 = vmul.f32 %v1743, %v467
      %v1782 = vmul.f32 %v1744, %v468
      %v1783 = vmul.f32 %v1745, %v469
      %v1784 = vmul.f32 %v1746, %v470
      %v1785 = vmul.f32 %v1747, %v471
      %v1786 = vmul.f32 %v1748, %v472
      %v1787 = vsel %vm344, %v1771, 0.0
      %v1788 = vsel %vm344, %v1773, 0.0
      %v1789 = vadd.f32 %v1787, %v1788
      %v1790 = vsel %vm344, %v1775, 0.0
      %v1791 = vadd.f32 %v1789, %v1790
      %v1792 = vsel %vm344, %v1777, 0.0
      %v1793 = vadd.f32 %v1791, %v1792
      %v1794 = vsel %vm344, %v1779, 0.0
      %v1795 = vadd.f32 %v1793, %v1794
      %v1796 = vsel %vm344, %v1781, 0.0
      %v1797 = vadd.f32 %v1795, %v1796
      %v1798 = vsel %vm344, %v1783, 0.0
      %v1799 = vadd.f32 %v1797, %v1798
      %v1800 = vsel %vm344, %v1785, 0.0
      %v1801 = vadd.f32 %v1799, %v1800
      %v1802 = vsel %vm344, %v1772, 0.0
      %v1803 = vsel %vm344, %v1774, 0.0
      %v1804 = vadd.f32 %v1802, %v1803
      %v1805 = vsel %vm344, %v1776, 0.0
      %v1806 = vadd.f32 %v1804, %v1805
      %v1807 = vsel %vm344, %v1778, 0.0
      %v1808 = vadd.f32 %v1806, %v1807
      %v1809 = vsel %vm344, %v1780, 0.0
      %v1810 = vadd.f32 %v1808, %v1809
      %v1811 = vsel %vm344, %v1782, 0.0
      %v1812 = vadd.f32 %v1810, %v1811
      %v1813 = vsel %vm344, %v1784, 0.0
      %v1814 = vadd.f32 %v1812, %v1813
      %v1815 = vsel %vm344, %v1786, 0.0
      %v1816 = vadd.f32 %v1814, %v1815
      %v1817 = vsub.f32 %v1769, %v1801
      %v1818 = vsub.f32 %v1770, %v1816
      %v1819 = vsel %vm1567, %v1817, %v1525
      %v1820 = vsel %vm1568, %v1818, %v1526
      %v1821 = vmax.f32 %v1527, %v1817
      %v1822 = vmax.f32 %v1528, %v1818
      %v1823 = vsub.f32 %v1527, %v1821
      %v1824 = vsub.f32 %v1528, %v1822
      %v1825 = vmul.f32 %v1823, 1.442695
      %v1826 = vpow.pop %v1825
      %v1827 = vmul.f32 %v1824, 1.442695
      %v1828 = vpow.pop %v1827
      %v1829 = vmul.f32 %v1543, %v1826
      %v1830 = vmul.f32 %v1544, %v1828
      %v1831 = vsub.f32 %v1817, %v1821
      %v1832 = vsub.f32 %v1818, %v1822
      %v1833 = vmul.f32 %v1831, 1.442695
      %v1834 = vpow.pop %v1833
      %v1835 = vmul.f32 %v1832, 1.442695
      %v1836 = vpow.pop %v1835
      %v1837 = vadd.f32 %v1829, %v1834
      %v1838 = vadd.f32 %v1830, %v1836
      %1839 = vrot.lane.b32.xlu0 %v1261, 113
      %v1840 = vpop.permute.xlu0 %1839
      %1841 = vrot.lane.b32.xlu0 %v1262, 113
      %v1842 = vpop.permute.xlu0 %1841
      %v1845 = vsel %vm306, %v1840, 100000.0
      %v1846 = vsel %vm306, %v1842, 100000.0
      %vm1847 = vcmp.lt.f32.partialorder %v1845, %v1569
      %vm1848 = vcmp.lt.f32.partialorder %v1846, %v1570
      %v1849 = vsel %vm1847, %v1845, %v1569
      %v1850 = vsel %vm1848, %v1846, %v1570
      %v1851 = vsel %vm1847, 6, %v1571
      %v1852 = vsel %vm1848, 6, %v1572
      %1853 = vrot.lane.b32.xlu0 %v1359, 113
      %v1854 = vpop.permute.xlu0 %1853
      %1855 = vrot.lane.b32.xlu0 %v1360, 113
      %v1856 = vpop.permute.xlu0 %1855
      %1857 = vrot.lane.b32.xlu0 %v1361, 113
      %v1858 = vpop.permute.xlu0 %1857
      %1859 = vrot.lane.b32.xlu0 %v1362, 113
      %v1860 = vpop.permute.xlu0 %1859
      %1861 = vrot.lane.b32.xlu0 %v1363, 113
      %v1862 = vpop.permute.xlu0 %1861
      %1863 = vrot.lane.b32.xlu0 %v1364, 113
      %v1864 = vpop.permute.xlu0 %1863
      %1865 = vrot.lane.b32.xlu0 %v1365, 113
      %v1866 = vpop.permute.xlu0 %1865
      %1867 = vrot.lane.b32.xlu0 %v1366, 113
      %v1868 = vpop.permute.xlu0 %1867
      %1869 = vrot.lane.b32.xlu0 %v1367, 113
      %v1870 = vpop.permute.xlu0 %1869
      %1871 = vrot.lane.b32.xlu0 %v1368, 113
      %v1872 = vpop.permute.xlu0 %1871
      %1873 = vrot.lane.b32.xlu0 %v1369, 113
      %v1874 = vpop.permute.xlu0 %1873
      %1875 = vrot.lane.b32.xlu0 %v1370, 113
      %v1876 = vpop.permute.xlu0 %1875
      %1877 = vrot.lane.b32.xlu0 %v1371, 113
      %v1878 = vpop.permute.xlu0 %1877
      %1879 = vrot.lane.b32.xlu0 %v1372, 113
      %v1880 = vpop.permute.xlu0 %1879
      %1881 = vrot.lane.b32.xlu0 %v1373, 113
      %v1882 = vpop.permute.xlu0 %1881
      %1883 = vrot.lane.b32.xlu0 %v1374, 113
      %v1884 = vpop.permute.xlu0 %1883
      %v1901 = vsel %vm306, %v1854, %v713
      %v1902 = vsel %vm306, %v1856, %v714
      %v1903 = vsel %vm306, %v1858, %v715
      %v1904 = vsel %vm306, %v1860, %v716
      %v1905 = vsel %vm306, %v1862, %v717
      %v1906 = vsel %vm306, %v1864, %v718
      %v1907 = vsel %vm306, %v1866, %v719
      %v1908 = vsel %vm306, %v1868, %v720
      %v1909 = vsel %vm306, %v1870, %v721
      %v1910 = vsel %vm306, %v1872, %v722
      %v1911 = vsel %vm306, %v1874, %v723
      %v1912 = vsel %vm306, %v1876, %v724
      %v1913 = vsel %vm306, %v1878, %v725
      %v1914 = vsel %vm306, %v1880, %v726
      %v1915 = vsel %vm306, %v1882, %v727
      %v1916 = vsel %vm306, %v1884, %v728
      %1917 = vrot.lane.b32.xlu0 %v1465, 113
      %v1918 = vpop.permute.xlu0 %1917
      %1919 = vrot.lane.b32.xlu0 %v1466, 113
      %v1920 = vpop.permute.xlu0 %1919
      %v1923 = vsel %vm306, %v1918, %v733
      %v1924 = vsel %vm306, %v1920, %v734
      %v1925 = vmul.f32 %v1901, %v457
      %v1926 = vmul.f32 %v1902, %v458
      %v1927 = vmul.f32 %v1903, %v459
      %v1928 = vmul.f32 %v1904, %v460
      %v1929 = vmul.f32 %v1905, %v461
      %v1930 = vmul.f32 %v1906, %v462
      %v1931 = vmul.f32 %v1907, %v463
      %v1932 = vmul.f32 %v1908, %v464
      %v1933 = vmul.f32 %v1909, %v465
      %v1934 = vmul.f32 %v1910, %v466
      %v1935 = vmul.f32 %v1911, %v467
      %v1936 = vmul.f32 %v1912, %v468
      %v1937 = vmul.f32 %v1913, %v469
      %v1938 = vmul.f32 %v1914, %v470
      %v1939 = vmul.f32 %v1915, %v471
      %v1940 = vmul.f32 %v1916, %v472
      %v1941 = vsel %vm344, %v1925, 0.0
      %v1942 = vsel %vm344, %v1927, 0.0
      %v1943 = vadd.f32 %v1941, %v1942
      %v1944 = vsel %vm344, %v1929, 0.0
      %v1945 = vadd.f32 %v1943, %v1944
      %v1946 = vsel %vm344, %v1931, 0.0
      %v1947 = vadd.f32 %v1945, %v1946
      %v1948 = vsel %vm344, %v1933, 0.0
      %v1949 = vadd.f32 %v1947, %v1948
      %v1950 = vsel %vm344, %v1935, 0.0
      %v1951 = vadd.f32 %v1949, %v1950
      %v1952 = vsel %vm344, %v1937, 0.0
      %v1953 = vadd.f32 %v1951, %v1952
      %v1954 = vsel %vm344, %v1939, 0.0
      %v1955 = vadd.f32 %v1953, %v1954
      %v1956 = vsel %vm344, %v1926, 0.0
      %v1957 = vsel %vm344, %v1928, 0.0
      %v1958 = vadd.f32 %v1956, %v1957
      %v1959 = vsel %vm344, %v1930, 0.0
      %v1960 = vadd.f32 %v1958, %v1959
      %v1961 = vsel %vm344, %v1932, 0.0
      %v1962 = vadd.f32 %v1960, %v1961
      %v1963 = vsel %vm344, %v1934, 0.0
      %v1964 = vadd.f32 %v1962, %v1963
      %v1965 = vsel %vm344, %v1936, 0.0
      %v1966 = vadd.f32 %v1964, %v1965
      %v1967 = vsel %vm344, %v1938, 0.0
      %v1968 = vadd.f32 %v1966, %v1967
      %v1969 = vsel %vm344, %v1940, 0.0
      %v1970 = vadd.f32 %v1968, %v1969
      %v1971 = vsub.f32 %v1923, %v1955
      %v1972 = vsub.f32 %v1924, %v1970
      %v1973 = vsel %vm1847, %v1971, %v1819
      %v1974 = vsel %vm1848, %v1972, %v1820
      %v1975 = vmax.f32 %v1821, %v1971
      %v1976 = vmax.f32 %v1822, %v1972
      %v1977 = vsub.f32 %v1821, %v1975
      %v1978 = vsub.f32 %v1822, %v1976
      %v1979 = vmul.f32 %v1977, 1.442695
      %v1980 = vpow.pop %v1979
      %v1981 = vmul.f32 %v1978, 1.442695
      %v1982 = vpow.pop %v1981
      %v1983 = vmul.f32 %v1837, %v1980
      %v1984 = vmul.f32 %v1838, %v1982
      %v1985 = vsub.f32 %v1971, %v1975
      %v1986 = vsub.f32 %v1972, %v1976
      %v1987 = vmul.f32 %v1985, 1.442695
      %v1988 = vpow.pop %v1987
      %v1989 = vmul.f32 %v1986, 1.442695
      %v1990 = vpow.pop %v1989
      %v1991 = vadd.f32 %v1983, %v1988
      %v1992 = vadd.f32 %v1984, %v1990
      %1993 = vrot.lane.b32.xlu0 %v1555, 113
      %v1994 = vpop.permute.xlu0 %1993
      %1995 = vrot.lane.b32.xlu0 %v1556, 113
      %v1996 = vpop.permute.xlu0 %1995
      %v1999 = vsel %vm306, %v1994, 100000.0
      %v2000 = vsel %vm306, %v1996, 100000.0
      %vm2001 = vcmp.lt.f32.partialorder %v1999, %v1849
      %vm2002 = vcmp.lt.f32.partialorder %v2000, %v1850
      %v2003 = vsel %vm2001, %v1999, %v1849
      %v2004 = vsel %vm2002, %v2000, %v1850
      %v2005 = vsel %vm2001, 7, %v1851
      %v2006 = vsel %vm2002, 7, %v1852
      %2007 = vrot.lane.b32.xlu0 %v1653, 113
      %v2008 = vpop.permute.xlu0 %2007
      %2009 = vrot.lane.b32.xlu0 %v1654, 113
      %v2010 = vpop.permute.xlu0 %2009
      %2011 = vrot.lane.b32.xlu0 %v1655, 113
      %v2012 = vpop.permute.xlu0 %2011
      %2013 = vrot.lane.b32.xlu0 %v1656, 113
      %v2014 = vpop.permute.xlu0 %2013
      %2015 = vrot.lane.b32.xlu0 %v1657, 113
      %v2016 = vpop.permute.xlu0 %2015
      %2017 = vrot.lane.b32.xlu0 %v1658, 113
      %v2018 = vpop.permute.xlu0 %2017
      %2019 = vrot.lane.b32.xlu0 %v1659, 113
      %v2020 = vpop.permute.xlu0 %2019
      %2021 = vrot.lane.b32.xlu0 %v1660, 113
      %v2022 = vpop.permute.xlu0 %2021
      %2023 = vrot.lane.b32.xlu0 %v1661, 113
      %v2024 = vpop.permute.xlu0 %2023
      %2025 = vrot.lane.b32.xlu0 %v1662, 113
      %v2026 = vpop.permute.xlu0 %2025
      %2027 = vrot.lane.b32.xlu0 %v1663, 113
      %v2028 = vpop.permute.xlu0 %2027
      %2029 = vrot.lane.b32.xlu0 %v1664, 113
      %v2030 = vpop.permute.xlu0 %2029
      %2031 = vrot.lane.b32.xlu0 %v1665, 113
      %v2032 = vpop.permute.xlu0 %2031
      %2033 = vrot.lane.b32.xlu0 %v1666, 113
      %v2034 = vpop.permute.xlu0 %2033
      %2035 = vrot.lane.b32.xlu0 %v1667, 113
      %v2036 = vpop.permute.xlu0 %2035
      %2037 = vrot.lane.b32.xlu0 %v1668, 113
      %v2038 = vpop.permute.xlu0 %2037
      %v2055 = vsel %vm306, %v2008, %v579
      %v2056 = vsel %vm306, %v2010, %v580
      %v2057 = vsel %vm306, %v2012, %v581
      %v2058 = vsel %vm306, %v2014, %v582
      %v2059 = vsel %vm306, %v2016, %v583
      %v2060 = vsel %vm306, %v2018, %v584
      %v2061 = vsel %vm306, %v2020, %v585
      %v2062 = vsel %vm306, %v2022, %v586
      %v2063 = vsel %vm306, %v2024, %v587
      %v2064 = vsel %vm306, %v2026, %v588
      %v2065 = vsel %vm306, %v2028, %v589
      %v2066 = vsel %vm306, %v2030, %v590
      %v2067 = vsel %vm306, %v2032, %v591
      %v2068 = vsel %vm306, %v2034, %v592
      %v2069 = vsel %vm306, %v2036, %v593
      %v2070 = vsel %vm306, %v2038, %v594
      %2071 = vrot.lane.b32.xlu0 %v1759, 113
      %v2072 = vpop.permute.xlu0 %2071
      %2073 = vrot.lane.b32.xlu0 %v1760, 113
      %v2074 = vpop.permute.xlu0 %2073
      %v2077 = vsel %vm306, %v2072, %v599
      %v2078 = vsel %vm306, %v2074, %v600
      %v2079 = vmul.f32 %v2055, %v457
      %v2080 = vmul.f32 %v2056, %v458
      %v2081 = vmul.f32 %v2057, %v459
      %v2082 = vmul.f32 %v2058, %v460
      %v2083 = vmul.f32 %v2059, %v461
      %v2084 = vmul.f32 %v2060, %v462
      %v2085 = vmul.f32 %v2061, %v463
      %v2086 = vmul.f32 %v2062, %v464
      %v2087 = vmul.f32 %v2063, %v465
      %v2088 = vmul.f32 %v2064, %v466
      %v2089 = vmul.f32 %v2065, %v467
      %v2090 = vmul.f32 %v2066, %v468
      %v2091 = vmul.f32 %v2067, %v469
      %v2092 = vmul.f32 %v2068, %v470
      %v2093 = vmul.f32 %v2069, %v471
      %v2094 = vmul.f32 %v2070, %v472
      %v2095 = vsel %vm344, %v2079, 0.0
      %v2096 = vsel %vm344, %v2081, 0.0
      %v2097 = vadd.f32 %v2095, %v2096
      %v2098 = vsel %vm344, %v2083, 0.0
      %v2099 = vadd.f32 %v2097, %v2098
      %v2100 = vsel %vm344, %v2085, 0.0
      %v2101 = vadd.f32 %v2099, %v2100
      %v2102 = vsel %vm344, %v2087, 0.0
      %v2103 = vadd.f32 %v2101, %v2102
      %v2104 = vsel %vm344, %v2089, 0.0
      %v2105 = vadd.f32 %v2103, %v2104
      %v2106 = vsel %vm344, %v2091, 0.0
      %v2107 = vadd.f32 %v2105, %v2106
      %v2108 = vsel %vm344, %v2093, 0.0
      %v2109 = vadd.f32 %v2107, %v2108
      %v2110 = vsel %vm344, %v2080, 0.0
      %v2111 = vsel %vm344, %v2082, 0.0
      %v2112 = vadd.f32 %v2110, %v2111
      %v2113 = vsel %vm344, %v2084, 0.0
      %v2114 = vadd.f32 %v2112, %v2113
      %v2115 = vsel %vm344, %v2086, 0.0
      %v2116 = vadd.f32 %v2114, %v2115
      %v2117 = vsel %vm344, %v2088, 0.0
      %v2118 = vadd.f32 %v2116, %v2117
      %v2119 = vsel %vm344, %v2090, 0.0
      %v2120 = vadd.f32 %v2118, %v2119
      %v2121 = vsel %vm344, %v2092, 0.0
      %v2122 = vadd.f32 %v2120, %v2121
      %v2123 = vsel %vm344, %v2094, 0.0
      %v2124 = vadd.f32 %v2122, %v2123
      %v2125 = vsub.f32 %v2077, %v2109
      %v2126 = vsub.f32 %v2078, %v2124
      %v2127 = vsel %vm2001, %v2125, %v1973
      %v2128 = vsel %vm2002, %v2126, %v1974
      %v2129 = vmax.f32 %v1975, %v2125
      %v2130 = vmax.f32 %v1976, %v2126
      %v2131 = vsub.f32 %v1975, %v2129
      %v2132 = vsub.f32 %v1976, %v2130
      %v2133 = vmul.f32 %v2131, 1.442695
      %v2134 = vpow.pop %v2133
      %v2135 = vmul.f32 %v2132, 1.442695
      %v2136 = vpow.pop %v2135
      %v2137 = vmul.f32 %v1991, %v2134
      %v2138 = vmul.f32 %v1992, %v2136
      %v2139 = vsub.f32 %v2125, %v2129
      %v2140 = vsub.f32 %v2126, %v2130
      %v2141 = vmul.f32 %v2139, 1.442695
      %v2142 = vpow.pop %v2141
      %v2143 = vmul.f32 %v2140, 1.442695
      %v2144 = vpow.pop %v2143
      %v2145 = vadd.f32 %v2137, %v2142
      %v2146 = vadd.f32 %v2138, %v2144
      %vm2147 = vcmp.lt.f32.partialorder %v274, %v2003
      %vm2148 = vcmp.lt.f32.partialorder %v275, %v2004
      %v2149 = vsel %vm2147, 8, %v2005
      %v2150 = vsel %vm2148, 8, %v2006
      %v2151 = vlog2.pop %v2145
      %v2152 = vmul.f32 %v2151, 0.6931472
      %v2153 = vlog2.pop %v2146
      %v2154 = vmul.f32 %v2153, 0.6931472
      %v2155 = vadd.f32 %v2129, %v2152
      %v2156 = vadd.f32 %v2130, %v2154
      %v2157 = vsub.f32 %v2155, %v2127
      %v2158 = vsub.f32 %v2156, %v2128
      %vm2159 = vcmp.ne.s32.totalorder %v2149, 8
      %vm2160 = vcmp.ne.s32.totalorder %v2150, 8
      %vm2161 = vmand %vm342, %vm2159
      %vm2162 = vmand %vm343, %vm2160
      %v2163 = vsel %vm2161, %v2157, 0.0
      %v2164 = vsel %vm2162, %v2158, 0.0
      %v2165 = vsel %vm344, %v2163, 0.0
      %v2166 = vsel %vm344, %v2164, 0.0
      %v2167 = vadd.f32 %v2165, %v2166
      %2168 = vadd.xlane.f32.xlu0 %v2167
      %v2169 = vpop.xlane.xlu0 %2168
      %v2170 = vrot.slane %v2169, 4
      %v2171 = vadd.f32 %v2169, %v2170
      %v2172 = vrot.slane %v2171, 2
      %v2173 = vadd.f32 %v2171, %v2172
      %v2174 = vrot.slane %v2173, 1
      %v2175 = vadd.f32 %v2173, %v2174
      %s2176 = vtos %v2175
      %v2177 = vmin.f32 %v274, 20.0
      %v2178 = vmin.f32 %v275, 20.0
      %v2179 = vrcp.pop 20.0
      %v2180 = vmul.f32 %v2177, %v2179
      %v2181 = vmul.f32 %v2178, %v2179
      %v2182 = vsel %vm2161, %v2180, 0.0
      %v2183 = vsel %vm2162, %v2181, 0.0
      %v2184 = vsel %vm344, %v2182, 0.0
      %v2185 = vsel %vm344, %v2183, 0.0
      %v2186 = vadd.f32 %v2184, %v2185
      %2187 = vadd.xlane.f32.xlu0 %v2186
      %v2188 = vpop.xlane.xlu0 %2187
      %v2189 = vrot.slane %v2188, 4
      %v2190 = vadd.f32 %v2188, %v2189
      %v2191 = vrot.slane %v2190, 2
      %v2192 = vadd.f32 %v2190, %v2191
      %v2193 = vrot.slane %v2192, 1
      %v2194 = vadd.f32 %v2192, %v2193
      %s2195 = vtos %v2194
      %vm2196 = vcmp.eq.s32.totalorder %v272, 0
      %vm2197 = vcmp.eq.s32.totalorder %v273, 0
      %vm2198 = vcmp.eq.s32.totalorder %v272, 1
      %vm2199 = vcmp.eq.s32.totalorder %v273, 1
      %vm2200 = vcmp.eq.s32.totalorder %v272, 2
      %vm2201 = vcmp.eq.s32.totalorder %v273, 2
      %vm2202 = vcmp.eq.s32.totalorder %v272, 3
      %vm2203 = vcmp.eq.s32.totalorder %v273, 3
      %vm2204 = vcmp.eq.s32.totalorder %v272, 4
      %vm2205 = vcmp.eq.s32.totalorder %v273, 4
      %vm2206 = vcmp.eq.s32.totalorder %v272, 5
      %vm2207 = vcmp.eq.s32.totalorder %v273, 5
      %vm2208 = vcmp.eq.s32.totalorder %v272, 6
      %vm2209 = vcmp.eq.s32.totalorder %v273, 6
      %vm2210 = vcmp.eq.s32.totalorder %v272, 7
      %vm2211 = vcmp.eq.s32.totalorder %v273, 7
      %v2212 = vsel %vm2196, %v457, 0.0
      %v2213 = vsel %vm2197, %v458, 0.0
      %v2214 = vsel %vm2198, %v459, 0.0
      %v2215 = vsel %vm2199, %v460, 0.0
      %v2216 = vsel %vm2200, %v461, 0.0
      %v2217 = vsel %vm2201, %v462, 0.0
      %v2218 = vsel %vm2202, %v463, 0.0
      %v2219 = vsel %vm2203, %v464, 0.0
      %v2220 = vsel %vm2204, %v465, 0.0
      %v2221 = vsel %vm2205, %v466, 0.0
      %v2222 = vsel %vm2206, %v467, 0.0
      %v2223 = vsel %vm2207, %v468, 0.0
      %v2224 = vsel %vm2208, %v469, 0.0
      %v2225 = vsel %vm2209, %v470, 0.0
      %v2226 = vsel %vm2210, %v471, 0.0
      %v2227 = vsel %vm2211, %v472, 0.0
      %v2228 = vsel %vm344, %v2212, 0.0
      %v2229 = vsel %vm344, %v2214, 0.0
      %v2230 = vadd.f32 %v2228, %v2229
      %v2231 = vsel %vm344, %v2216, 0.0
      %v2232 = vadd.f32 %v2230, %v2231
      %v2233 = vsel %vm344, %v2218, 0.0
      %v2234 = vadd.f32 %v2232, %v2233
      %v2235 = vsel %vm344, %v2220, 0.0
      %v2236 = vadd.f32 %v2234, %v2235
      %v2237 = vsel %vm344, %v2222, 0.0
      %v2238 = vadd.f32 %v2236, %v2237
      %v2239 = vsel %vm344, %v2224, 0.0
      %v2240 = vadd.f32 %v2238, %v2239
      %v2241 = vsel %vm344, %v2226, 0.0
      %v2242 = vadd.f32 %v2240, %v2241
      %v2243 = vsel %vm344, %v2213, 0.0
      %v2244 = vsel %vm344, %v2215, 0.0
      %v2245 = vadd.f32 %v2243, %v2244
      %v2246 = vsel %vm344, %v2217, 0.0
      %v2247 = vadd.f32 %v2245, %v2246
      %v2248 = vsel %vm344, %v2219, 0.0
      %v2249 = vadd.f32 %v2247, %v2248
      %v2250 = vsel %vm344, %v2221, 0.0
      %v2251 = vadd.f32 %v2249, %v2250
      %v2252 = vsel %vm344, %v2223, 0.0
      %v2253 = vadd.f32 %v2251, %v2252
      %v2254 = vsel %vm344, %v2225, 0.0
      %v2255 = vadd.f32 %v2253, %v2254
      %v2256 = vsel %vm344, %v2227, 0.0
      %v2257 = vadd.f32 %v2255, %v2256
      %vm2258 = vcmp.ne.s32.totalorder %v272, 255
      %vm2259 = vcmp.ne.s32.totalorder %v273, 255
      %v2260 = vsub.f32 0.0, %v2242
      %v2261 = vsub.f32 0.0, %v2257
      %v2262 = vsel %vm2258, %v2260, 0.0
      %v2263 = vsel %vm2259, %v2261, 0.0
      %v2264 = vsel %vm344, %v2262, 0.0
      %v2265 = vsel %vm344, %v2263, 0.0
      %v2266 = vadd.f32 %v2264, %v2265
      %2267 = vadd.xlane.f32.xlu0 %v2266
      %v2268 = vpop.xlane.xlu0 %2267
      %v2269 = vrot.slane %v2268, 4
      %v2270 = vadd.f32 %v2268, %v2269
      %v2271 = vrot.slane %v2270, 2
      %v2272 = vadd.f32 %v2270, %v2271
      %v2273 = vrot.slane %v2272, 1
      %v2274 = vadd.f32 %v2272, %v2273
      %s2275 = vtos %v2274
      %vm2276 = vcmp.eq.s32.totalorder %v320, 0
      %vm2277 = vcmp.eq.s32.totalorder %v292, 0
      %vm2278 = vmand %vm2276, %vm2277
      %v2279 = vstv %s2176
      %v2280 = vsel %vm2278, %v2279, 0.0
      %vm2281 = vcmp.eq.s32.totalorder %v292, 1
      %vm2282 = vmand %vm2276, %vm2281
      %v2283 = vstv %s2195
      %v2284 = vsel %vm2282, %v2283, 0.0
      %v2285 = vadd.f32 %v2280, %v2284
      %vm2286 = vcmp.eq.s32.totalorder %v292, 2
      %vm2287 = vmand %vm2276, %vm2286
      %v2288 = vstv %s2275
      %v2289 = vsel %vm2287, %v2288, 0.0
      %v2290 = vadd.f32 %v2285, %v2289
      %2291 = vst [vmem:[%s255] sm:$0xff] %v2290
      %p2292 = scmp.lt.s32.totalorder %s15, 1
      %s2293 = scalar_select %p2292, %s15, 1
      %s2294 = smul.addr %s2293, 8
      %s2295 = scalar_lea.vmem %s4, %s2294
      // Predicated region
      $region37: #{active_boundary_loss.5} parent=35 // pred_check
        %p2296 = pneg %p137
      $region38: #{active_boundary_loss.5} parent=35 // pred_check_branch
        %2298 = sbr.rel (%p2296) target = $region40
      $region39: #{active_boundary_loss.5} parent=35 // pred_region
        _
      $region40: #{active_boundary_loss.5} parent=35 // pred_fallthru
        _
    $region36: #{active_boundary_loss.5} parent=5 // pred_fallthru
      _
    %p2299 = scmp.le.s32.totalorder 2, %s10
    // Predicated region
    $region41: #{active_boundary_loss.5} parent=5 // pred_check
      %p2300 = pneg %p2299
    $region42: #{active_boundary_loss.5} parent=5 // pred_check_branch
      %2302 = sbr.rel (%p2300) target = $region44
    $region43: #{active_boundary_loss.5} parent=5 // pred_region
      %s2303 = ssub.s32 %s10, 2
      // Predicated region
      $region45: #{active_boundary_loss.5} parent=43 // pred_check
        %p2304 = pneg %p143
      $region46: #{active_boundary_loss.5} parent=43 // pred_check_branch
        %2306 = sbr.rel (%p2304) target = $region48
      $region47: #{active_boundary_loss.5} parent=43 // pred_region
        %p2307 = scmp.lt.s32.totalorder %s16, 1
        %s2308 = scalar_select %p2307, %s16, 1
        %s2309 = smul.addr %s2308, 8
        %s2310 = scalar_lea.vmem %s4, %s2309
      $region48: #{active_boundary_loss.5} parent=43 // pred_fallthru
        _
    $region44: #{active_boundary_loss.5} parent=5 // pred_fallthru
      _
  $region6: #{active_boundary_loss.5} parent=0 // loop_footer
    %s14 = sadd.s32 1, %s10
  $region7: #{active_boundary_loss.5} parent=0 // loop_footer_branch
    %9 = sbr.rel target = $region3
  $region8: #{active_boundary_loss.5} parent=0 // loop_exit
    _

</llo_original>
